<compile_context>
chip_gen: v6e
topology: v6e:2x2x1
jax: 0.10.0
libtpu: 0.0.40
codegen_flags: <defaults>
</compile_context>

<pallas_src>
import functools

import jax
import jax.numpy as jnp
from jax.experimental import pallas as pl
from jax.experimental.pallas import tpu as pltpu


def _round_up(x, m):
    return ((x + m - 1) // m) * m


def _largest_divisor_leq(n, cap):
    for d in range(min(n, cap), 0, -1):
        if n % d == 0:
            return d
    return 1


# -----------------------------------------------------------------------------
# Kernel 1: serial GRU recurrence, tiled over (batch, time); hidden state is
# carried in a VMEM scratch accumulator across the "arbitrary" time axis.
# -----------------------------------------------------------------------------
def gru_recurrence_kernel(gi_ref, h0_ref, whh_ref, bhhn_ref, h_out_ref, h_scr):
    tT = gi_ref.shape[0]
    tB, E = h_scr.shape

    # New batch tile (t-tile index 0): (re)initialize the carried hidden state.
    @pl.when(pl.program_id(1) == 0)
    def _():
        h_scr[...] = h0_ref[...]

    # Per-gate, pre-transposed recurrent weights (no in-kernel transpose, no
    # lane-misaligned slicing of a (B, 3E) tile).
    whh_r = whh_ref[0]
    whh_z = whh_ref[1]
    whh_n = whh_ref[2]
    mxu_dtype = whh_r.dtype
    # Hoist the bias broadcast out of the unrolled loop (no per-step
    # broadcast_in_dim replication).
    bhh_n = jnp.broadcast_to(bhhn_ref[...], (tB, E))

    def step(t, h):
        h_mx = h.astype(mxu_dtype)  # bf16 MXU operands on v6e/v7x; f32 gates
        gh_r = jnp.dot(h_mx, whh_r, preferred_element_type=jnp.float32)
        gh_z = jnp.dot(h_mx, whh_z, preferred_element_type=jnp.float32)
        gh_n = jnp.dot(h_mx, whh_n, preferred_element_type=jnp.float32)
        # b_hh_r / b_hh_z are already folded into gi in the wrapper; b_hh_n
        # must stay inside the r * (...) term (PyTorch GRU semantics).
        r = jax.nn.sigmoid(gi_ref[t, 0] + gh_r)
        z = jax.nn.sigmoid(gi_ref[t, 1] + gh_z)
        n = jnp.tanh(gi_ref[t, 2] + r * (gh_n + bhh_n))
        h_new = n + z * (h - n)          # == (1-z)*n + z*h, one fewer VPU op
        h_out_ref[t] = h_new
        return h_new

    # tT is kept small (<= 8) so a full unroll stays cheap and keeps LLO
    # scheduling visibility without instruction-memory blowup at large T.
    h_scr[...] = jax.lax.fori_loop(0, tT, step, h_scr[...], unroll=True)


def gru_recurrence(gi_all, h0, whh_stack, bhh_n, *, time_tile=8):
    T, _, B_pad, E = gi_all.shape
    tT = _largest_divisor_leq(T, time_tile)
    # Batch axis is embarrassingly parallel: expose it as a "parallel" grid
    # axis (megacore split on v7x) when there are >= 2 sublane groups.
    if B_pad > 8 and B_pad % 16 == 0:
        tB = B_pad // 2
    else:
        tB = B_pad
    grid = (B_pad // tB, T // tT)

    return pl.pallas_call(
        gru_recurrence_kernel,
        out_shape=jax.ShapeDtypeStruct((T, B_pad, E), jnp.float32),
        grid_spec=pltpu.PrefetchScalarGridSpec(
            num_scalar_prefetch=0,
            grid=grid,
            in_specs=[
                pl.BlockSpec((tT, 3, tB, E), lambda b, t: (t, 0, b, 0)),  # gi
                pl.BlockSpec((tB, E), lambda b, t: (b, 0)),               # h0
                pl.BlockSpec((3, E, E), lambda b, t: (0, 0, 0)),          # W_hh.T (per gate)
                pl.BlockSpec((1, E), lambda b, t: (0, 0)),                # b_hh_n
            ],
            out_specs=pl.BlockSpec((tT, tB, E), lambda b, t: (t, b, 0)),  # H
            scratch_shapes=[pltpu.VMEM((tB, E), jnp.float32)],            # carried h
        ),
        compiler_params=pltpu.CompilerParams(
            dimension_semantics=("parallel", "arbitrary"),
            vmem_limit_bytes=32 * 1024 * 1024),
    )(gi_all, h0, whh_stack, bhh_n)


# -----------------------------------------------------------------------------
# Kernel 2: attend_vocab as one lane-dense batched matmul  H_flat @ C.T
# -----------------------------------------------------------------------------
def attend_vocab_kernel(h_ref, ct_ref, out_ref):
    out_ref[...] = jnp.dot(h_ref[...], ct_ref[...],
                           preferred_element_type=jnp.float32
                           ).astype(out_ref.dtype)


def attend_vocab(h_flat, c_t_pad, out_dtype=jnp.float32,
                 vmem_budget=24 * 1024 * 1024):
    M, E = h_flat.shape
    V_pad = c_t_pad.shape[1]            # already padded to a multiple of 128
    in_sz = jnp.dtype(c_t_pad.dtype).itemsize
    out_sz = jnp.dtype(out_dtype).itemsize

    # Lane-dense vocab tile: largest multiple of 128 (<= 512) dividing V_pad.
    tn = 512
    while tn > 128 and V_pad % tn:
        tn -= 128
    tn = min(tn, V_pad)

    # Grow the row tile as large as the double-buffered VMEM budget allows:
    # with j as the inner axis C is re-streamed once per row tile, so big tm
    # cuts HBM traffic on the mem-bound side.
    def fits(tm):
        return (2 * (tm * E + E * tn) * in_sz + 2 * tm * tn * out_sz) <= vmem_budget

    tm = _round_up(M, 8)
    while tm > 8 and not fits(tm):
        tm = _round_up(tm // 2, 8)
    M_pad = _round_up(M, tm)

    h_in = h_flat.astype(c_t_pad.dtype)          # bf16 MXU operands if configured
    if M_pad != M:
        h_in = jnp.pad(h_in, ((0, M_pad - M), (0, 0)))

    grid = (M_pad // tm, V_pad // tn)
    cost = pl.CostEstimate(
        flops=2 * M_pad * E * V_pad,
        transcendentals=0,
        bytes_accessed=(M_pad * E * in_sz
                        + grid[0] * E * V_pad * in_sz
                        + M_pad * V_pad * out_sz))

    out = pl.pallas_call(
        attend_vocab_kernel,
        out_shape=jax.ShapeDtypeStruct((M_pad, V_pad), out_dtype),
        grid_spec=pltpu.PrefetchScalarGridSpec(
            num_scalar_prefetch=0,
            grid=grid,
            in_specs=[pl.BlockSpec((tm, E), lambda i, j: (i, 0)),
                      pl.BlockSpec((E, tn), lambda i, j: (0, j))],
            out_specs=pl.BlockSpec((tm, tn), lambda i, j: (i, j)),
        ),
        compiler_params=pltpu.CompilerParams(
            dimension_semantics=("parallel", "parallel"),
            vmem_limit_bytes=32 * 1024 * 1024),
        cost_estimate=cost,
    )(h_in, c_t_pad)
    return out[:M]


# -----------------------------------------------------------------------------
# One-time parameter preparation (pre-transpose / pad / cast — NOT per call)
# -----------------------------------------------------------------------------
def prepare_params(raw, mxu_dtype=jnp.float32):
    E = raw["W_p"].shape[0]
    V = raw["C"].shape[0]
    V_pad = _round_up(V, 128)

    C = raw["C"].astype(jnp.float32)                                  # (V, E)
    c_t_pad = jnp.pad(C.T, ((0, 0), (0, V_pad - V))).astype(mxu_dtype)  # (E, V_pad)

    W_hh = raw["W_hh"]
    whh_stack = jnp.stack([W_hh[0:E].T, W_hh[E:2 * E].T, W_hh[2 * E:3 * E].T]
                          ).astype(mxu_dtype)                          # (3, E, E)

    b_hh = raw["b_hh"]
    # Fold the r/z parts of b_hh into the input-side bias; keep b_hh_n separate
    # (it must remain inside the r*(...) term to match PyTorch GRU exactly).
    b_gi = raw["b_ih"] + jnp.concatenate(
        [b_hh[:, 0:E], b_hh[:, E:2 * E], jnp.zeros((1, E), jnp.float32)], axis=1)

    return {
        "C": C,                          # f32, used for the embedding gather
        "C_t_pad": c_t_pad,              # (E, V_pad), mxu dtype, padded once
        "W_p_t": raw["W_p"].T,           # (E, E)
        "b_p": raw["b_p"],               # (1, E)
        "W_ih_t": raw["W_ih"].T,         # (E, 3E)
        "b_gi": b_gi,                    # (1, 3E)
        "whh_stack": whh_stack,          # (3, E, E) mxu dtype
        "b_hh_n": b_hh[:, 2 * E:3 * E],  # (1, E)
    }


# -----------------------------------------------------------------------------
# Forward wrapper
# -----------------------------------------------------------------------------
@functools.partial(jax.jit, static_argnames=("num_vocab",))
def reason_decoder_forward(dec_in, encode_hidden, p, *, num_vocab):
    """dec_in: (T, B, 1) int32 teacher-forced token ids -> (T, B, V) logits."""
    T, B, _ = dec_in.shape
    E = encode_hidden.shape[1]
    tokens = dec_in[:, :, 0]                                         # (T, B)

    # ---- hoisted token-parallel precompute (plain XLA) ----------------------
    h0 = jax.nn.relu(encode_hidden @ p["W_p_t"] + p["b_p"])          # (B, E)
    x = p["C"][tokens]                                               # (T, B, E)
    gi = x.reshape(T * B, E) @ p["W_ih_t"] + p["b_gi"]               # (T*B, 3E)
    gi = gi.reshape(T, B, 3, E).transpose(0, 2, 1, 3)                # (T, 3, B, E)

    # Pad batch to a sublane multiple (removes masked vst on the serial path).
    B_pad = _round_up(B, 8)
    if B_pad != B:
        gi = jnp.pad(gi, ((0, 0), (0, 0), (0, B_pad - B), (0, 0)))
        h0 = jnp.pad(h0, ((0, B_pad - B), (0, 0)))

    # ---- serial part: Pallas GRU recurrence ---------------------------------
    H = gru_recurrence(gi, h0, p["whh_stack"], p["b_hh_n"])          # (T, B_pad, E)
    H = H[:, :B, :]                                                  # drop padding

    # ---- hoisted logits: one lane-dense batched matmul ----------------------
    logits = attend_vocab(H.reshape(T * B, E), p["C_t_pad"])         # (T*B, V_pad)
    return logits[:, :num_vocab].reshape(T, B, num_vocab)


# -----------------------------------------------------------------------------
# Pure-JAX reference of the same math (for verification)
# -----------------------------------------------------------------------------
def reference_forward(dec_in, encode_hidden, raw):
    E = encode_hidden.shape[1]
    C = raw["C"]
    h = jax.nn.relu(encode_hidden @ raw["W_p"].T + raw["b_p"])

    def step(h, tok):
        xx = C[tok[:, 0]]
        gi = xx @ raw["W_ih"].T + raw["b_ih"]
        gh = h @ raw["W_hh"].T + raw["b_hh"]
        r = jax.nn.sigmoid(gi[:, :E] + gh[:, :E])
        z = jax.nn.sigmoid(gi[:, E:2 * E] + gh[:, E:2 * E])
        n = jnp.tanh(gi[:, 2 * E:] + r * gh[:, 2 * E:])
        h_new = (1.0 - z) * n + z * h
        return h_new, h_new @ C.T

    _, out = jax.lax.scan(step, h, dec_in)
    return out


if __name__ == "__main__":
    # batch, embedding_dim, num_vocab, max_target_length
    # (V=50 exercises vocab padding to 128; B=4 exercises sublane padding to 8;
    #  T=16 with tT=8 exercises the scratch-carried hidden state across tiles.)
    B, E, V, T = 4, 32, 50, 16
    SOS_token = 2

    key = jax.random.PRNGKey(0)
    ks = jax.random.split(key, 10)
    s = 0.1
    raw = {
        "C":    jax.random.normal(ks[0], (V, E), jnp.float32) * s,       # shared_emb.weight
        "W_p":  jax.random.normal(ks[1], (E, E), jnp.float32) * s,       # projector.weight
        "b_p":  jax.random.normal(ks[2], (1, E), jnp.float32) * s,       # projector.bias
        "W_ih": jax.random.normal(ks[3], (3 * E, E), jnp.float32) * s,   # rnn.weight_ih_l0
        "W_hh": jax.random.normal(ks[4], (3 * E, E), jnp.float32) * s,   # rnn.weight_hh_l0
        "b_ih": jax.random.normal(ks[5], (1, 3 * E), jnp.float32) * s,   # rnn.bias_ih_l0
        "b_hh": jax.random.normal(ks[6], (1, 3 * E), jnp.float32) * s,   # rnn.bias_hh_l0
    }

    encode_hidden = jax.random.normal(ks[7], (B, E), jnp.float32)
    target_batches = jax.random.randint(ks[8], (B, T), 0, V, jnp.int32)

    # Teacher forcing: input at step 0 is SOS, at step t>0 it is target[:, t-1].
    dec_tokens = jnp.concatenate(
        [jnp.full((B, 1), SOS_token, jnp.int32), target_batches[:, :-1]], axis=1)  # (B, T)
    dec_in = dec_tokens.T[:, :, None].astype(jnp.int32)                            # (T, B, 1)

    ref = reference_forward(dec_in, encode_hidden, raw)

    # f32 MXU path: exact verification.
    prep_f32 = prepare_params(raw, mxu_dtype=jnp.float32)
    out = reason_decoder_forward(dec_in, encode_hidden, prep_f32, num_vocab=V)
    out = jax.block_until_ready(out)
    assert out.shape == (T, B, V)
    assert jnp.allclose(out, ref, atol=1e-4, rtol=1e-4), "f32 mismatch vs JAX reference"

    # bf16 MXU-operand path (production config for v6e/v7x; gate math stays f32).
    prep_bf16 = prepare_params(raw, mxu_dtype=jnp.bfloat16)
    out_bf16 = reason_decoder_forward(dec_in, encode_hidden, prep_bf16, num_vocab=V)
    out_bf16 = jax.block_until_ready(out_bf16)
    assert out_bf16.shape == (T, B, V)
    assert float(jnp.max(jnp.abs(out_bf16 - ref))) < 1e-1, "bf16 path grossly off"

    print("KERNEL_OK")
</pallas_src>

<mosaic_0001>
module attributes {stable_mosaic.version = 11 : i64} {
  func.func @gru_recurrence_kernel(%arg0: i32, %arg1: i32, %arg2: memref<8x3x8x32xf32, #tpu.memory_space<vmem>>, %arg3: memref<8x32xf32, #tpu.memory_space<vmem>>, %arg4: memref<3x32x32xf32, #tpu.memory_space<vmem>>, %arg5: memref<1x32xf32, #tpu.memory_space<vmem>>, %arg6: memref<8x8x32xf32, #tpu.memory_space<vmem>>, %arg7: memref<8x32xf32, #tpu.memory_space<vmem>>) attributes {dimension_semantics = [#tpu.dimension_semantics<parallel>, #tpu.dimension_semantics<arbitrary>], iteration_bounds = array<i64: 1, 2>, scalar_prefetch = 0 : i64, scratch_operands = 1 : i64, tpu.core_type = #tpu.core_type<tc>, window_params = [{transform_indices = @transform_0, window_bounds = array<i64: 8, 3, 8, 32>}, {transform_indices = @transform_1, window_bounds = array<i64: 8, 32>}, {pipeline_mode = #tpu.pipeline_mode<synchronous>, transform_indices = @transform_2, window_bounds = array<i64: 3, 32, 32>}, {pipeline_mode = #tpu.pipeline_mode<synchronous>, transform_indices = @transform_3, window_bounds = array<i64: 1, 32>}, {transform_indices = @transform_4, window_bounds = array<i64: 8, 8, 32>}]} {
    %c0_i32 = arith.constant 0 : i32
    %0 = arith.cmpi eq, %arg1, %c0_i32 : i32
    %1 = arith.extui %0 : i1 to i32
    %c0_i32_0 = arith.constant 0 : i32
    %2 = arith.cmpi ne, %1, %c0_i32_0 : i32
    scf.if %2 {
      %c0_141 = arith.constant 0 : index
      %c0_142 = arith.constant 0 : index
      %294 = vector.load %arg3[%c0_141, %c0_142] : memref<8x32xf32, #tpu.memory_space<vmem>>, vector<8x32xf32>
      %c0_143 = arith.constant 0 : index
      %c0_144 = arith.constant 0 : index
      %295 = vector.load %arg7[%c0_143, %c0_144] : memref<8x32xf32, #tpu.memory_space<vmem>>, vector<8x32xf32>
      tpu.vector_store %arg7[%c0_143, %c0_144], %294 {strides = array<i32>} : memref<8x32xf32, #tpu.memory_space<vmem>>, vector<8x32xf32>,
    } else {
    }
    %c0 = arith.constant 0 : index
    %c0_1 = arith.constant 0 : index
    %c0_2 = arith.constant 0 : index
    %3 = vector.load %arg4[%c0, %c0_1, %c0_2] : memref<3x32x32xf32, #tpu.memory_space<vmem>>, vector<1x32x32xf32>
    %4 = vector.shape_cast %3 : vector<1x32x32xf32> to vector<32x32xf32>
    %c1 = arith.constant 1 : index
    %c0_3 = arith.constant 0 : index
    %c0_4 = arith.constant 0 : index
    %5 = vector.load %arg4[%c1, %c0_3, %c0_4] : memref<3x32x32xf32, #tpu.memory_space<vmem>>, vector<1x32x32xf32>
    %6 = vector.shape_cast %5 : vector<1x32x32xf32> to vector<32x32xf32>
    %c2 = arith.constant 2 : index
    %c0_5 = arith.constant 0 : index
    %c0_6 = arith.constant 0 : index
    %7 = vector.load %arg4[%c2, %c0_5, %c0_6] : memref<3x32x32xf32, #tpu.memory_space<vmem>>, vector<1x32x32xf32>
    %8 = vector.shape_cast %7 : vector<1x32x32xf32> to vector<32x32xf32>
    %c0_7 = arith.constant 0 : index
    %c0_8 = arith.constant 0 : index
    %9 = vector.load %arg5[%c0_7, %c0_8] : memref<1x32xf32, #tpu.memory_space<vmem>>, vector<1x32xf32>
    %10 = vector.shape_cast %9 : vector<1x32xf32> to vector<1x32xf32>
    %11 = vector.broadcast %10 : vector<1x32xf32> to vector<8x32xf32>
    %c0_9 = arith.constant 0 : index
    %c0_10 = arith.constant 0 : index
    %12 = vector.load %arg7[%c0_9, %c0_10] : memref<8x32xf32, #tpu.memory_space<vmem>>, vector<8x32xf32>
    %c0_i32_11 = arith.constant 0 : i32
    %cst = arith.constant dense<0.000000e+00> : vector<8x32xf32>
    %13 = tpu.matmul %12, %4, %cst {dimension_numbers = #tpu.dot_dimension_numbers<[1], [0], [0], [1], [0, 0, 1, 1], [], []>} : vector<8x32xf32>, vector<32x32xf32>, vector<8x32xf32> -> vector<8x32xf32>
    %cst_12 = arith.constant dense<0.000000e+00> : vector<8x32xf32>
    %14 = tpu.matmul %12, %6, %cst_12 {dimension_numbers = #tpu.dot_dimension_numbers<[1], [0], [0], [1], [0, 0, 1, 1], [], []>} : vector<8x32xf32>, vector<32x32xf32>, vector<8x32xf32> -> vector<8x32xf32>
    %cst_13 = arith.constant dense<0.000000e+00> : vector<8x32xf32>
    %15 = tpu.matmul %12, %8, %cst_13 {dimension_numbers = #tpu.dot_dimension_numbers<[1], [0], [0], [1], [0, 0, 1, 1], [], []>} : vector<8x32xf32>, vector<32x32xf32>, vector<8x32xf32> -> vector<8x32xf32>
    %16 = arith.index_cast %c0_i32_11 : i32 to index
    %c0_14 = arith.constant 0 : index
    %c0_15 = arith.constant 0 : index
    %c0_16 = arith.constant 0 : index
    %17 = vector.load %arg2[%16, %c0_14, %c0_15, %c0_16] : memref<8x3x8x32xf32, #tpu.memory_space<vmem>>, vector<1x1x8x32xf32>
    %18 = vector.shape_cast %17 : vector<1x1x8x32xf32> to vector<8x32xf32>
    %19 = arith.addf %18, %13 : vector<8x32xf32>
    %20 = arith.negf %19 : vector<8x32xf32>
    %21 = math.exp %20 : vector<8x32xf32>
    %cst_17 = arith.constant 1.000000e+00 : f32
    %22 = vector.broadcast %cst_17 : f32 to vector<8x32xf32>
    %23 = arith.addf %22, %21 : vector<8x32xf32>
    %24 = arith.divf %22, %23 : vector<8x32xf32>
    %25 = arith.index_cast %c0_i32_11 : i32 to index
    %c1_18 = arith.constant 1 : index
    %c0_19 = arith.constant 0 : index
    %c0_20 = arith.constant 0 : index
    %26 = vector.load %arg2[%25, %c1_18, %c0_19, %c0_20] : memref<8x3x8x32xf32, #tpu.memory_space<vmem>>, vector<1x1x8x32xf32>
    %27 = vector.shape_cast %26 : vector<1x1x8x32xf32> to vector<8x32xf32>
    %28 = arith.addf %27, %14 : vector<8x32xf32>
    %29 = arith.negf %28 : vector<8x32xf32>
    %30 = math.exp %29 : vector<8x32xf32>
    %cst_21 = arith.constant 1.000000e+00 : f32
    %31 = vector.broadcast %cst_21 : f32 to vector<8x32xf32>
    %32 = arith.addf %31, %30 : vector<8x32xf32>
    %33 = arith.divf %31, %32 : vector<8x32xf32>
    %34 = arith.index_cast %c0_i32_11 : i32 to index
    %c2_22 = arith.constant 2 : index
    %c0_23 = arith.constant 0 : index
    %c0_24 = arith.constant 0 : index
    %35 = vector.load %arg2[%34, %c2_22, %c0_23, %c0_24] : memref<8x3x8x32xf32, #tpu.memory_space<vmem>>, vector<1x1x8x32xf32>
    %36 = vector.shape_cast %35 : vector<1x1x8x32xf32> to vector<8x32xf32>
    %37 = arith.addf %15, %11 : vector<8x32xf32>
    %38 = arith.mulf %24, %37 : vector<8x32xf32>
    %39 = arith.addf %36, %38 : vector<8x32xf32>
    %40 = math.tanh %39 : vector<8x32xf32>
    %41 = arith.subf %12, %40 : vector<8x32xf32>
    %42 = arith.mulf %33, %41 : vector<8x32xf32>
    %43 = arith.addf %40, %42 : vector<8x32xf32>
    %44 = arith.index_cast %c0_i32_11 : i32 to index
    %c0_25 = arith.constant 0 : index
    %c0_26 = arith.constant 0 : index
    %45 = vector.load %arg6[%44, %c0_25, %c0_26] : memref<8x8x32xf32, #tpu.memory_space<vmem>>, vector<1x8x32xf32>
    %46 = vector.shape_cast %45 : vector<1x8x32xf32> to vector<8x32xf32>
    %47 = vector.shape_cast %43 : vector<8x32xf32> to vector<1x8x32xf32>
    tpu.vector_store %arg6[%44, %c0_25, %c0_26], %47 {strides = array<i32>} : memref<8x8x32xf32, #tpu.memory_space<vmem>>, vector<1x8x32xf32>,
    %c1_i32 = arith.constant 1 : i32
    %cst_27 = arith.constant dense<0.000000e+00> : vector<8x32xf32>
    %48 = tpu.matmul %43, %4, %cst_27 {dimension_numbers = #tpu.dot_dimension_numbers<[1], [0], [0], [1], [0, 0, 1, 1], [], []>} : vector<8x32xf32>, vector<32x32xf32>, vector<8x32xf32> -> vector<8x32xf32>
    %cst_28 = arith.constant dense<0.000000e+00> : vector<8x32xf32>
    %49 = tpu.matmul %43, %6, %cst_28 {dimension_numbers = #tpu.dot_dimension_numbers<[1], [0], [0], [1], [0, 0, 1, 1], [], []>} : vector<8x32xf32>, vector<32x32xf32>, vector<8x32xf32> -> vector<8x32xf32>
    %cst_29 = arith.constant dense<0.000000e+00> : vector<8x32xf32>
    %50 = tpu.matmul %43, %8, %cst_29 {dimension_numbers = #tpu.dot_dimension_numbers<[1], [0], [0], [1], [0, 0, 1, 1], [], []>} : vector<8x32xf32>, vector<32x32xf32>, vector<8x32xf32> -> vector<8x32xf32>
    %51 = arith.index_cast %c1_i32 : i32 to index
    %c0_30 = arith.constant 0 : index
    %c0_31 = arith.constant 0 : index
    %c0_32 = arith.constant 0 : index
    %52 = vector.load %arg2[%51, %c0_30, %c0_31, %c0_32] : memref<8x3x8x32xf32, #tpu.memory_space<vmem>>, vector<1x1x8x32xf32>
    %53 = vector.shape_cast %52 : vector<1x1x8x32xf32> to vector<8x32xf32>
    %54 = arith.addf %53, %48 : vector<8x32xf32>
    %55 = arith.negf %54 : vector<8x32xf32>
    %56 = math.exp %55 : vector<8x32xf32>
    %cst_33 = arith.constant 1.000000e+00 : f32
    %57 = vector.broadcast %cst_33 : f32 to vector<8x32xf32>
    %58 = arith.addf %57, %56 : vector<8x32xf32>
    %59 = arith.divf %57, %58 : vector<8x32xf32>
    %60 = arith.index_cast %c1_i32 : i32 to index
    %c1_34 = arith.constant 1 : index
    %c0_35 = arith.constant 0 : index
    %c0_36 = arith.constant 0 : index
    %61 = vector.load %arg2[%60, %c1_34, %c0_35, %c0_36] : memref<8x3x8x32xf32, #tpu.memory_space<vmem>>, vector<1x1x8x32xf32>
    %62 = vector.shape_cast %61 : vector<1x1x8x32xf32> to vector<8x32xf32>
    %63 = arith.addf %62, %49 : vector<8x32xf32>
    %64 = arith.negf %63 : vector<8x32xf32>
    %65 = math.exp %64 : vector<8x32xf32>
    %cst_37 = arith.constant 1.000000e+00 : f32
    %66 = vector.broadcast %cst_37 : f32 to vector<8x32xf32>
    %67 = arith.addf %66, %65 : vector<8x32xf32>
    %68 = arith.divf %66, %67 : vector<8x32xf32>
    %69 = arith.index_cast %c1_i32 : i32 to index
    %c2_38 = arith.constant 2 : index
    %c0_39 = arith.constant 0 : index
    %c0_40 = arith.constant 0 : index
    %70 = vector.load %arg2[%69, %c2_38, %c0_39, %c0_40] : memref<8x3x8x32xf32, #tpu.memory_space<vmem>>, vector<1x1x8x32xf32>
    %71 = vector.shape_cast %70 : vector<1x1x8x32xf32> to vector<8x32xf32>
    %72 = arith.addf %50, %11 : vector<8x32xf32>
    %73 = arith.mulf %59, %72 : vector<8x32xf32>
    %74 = arith.addf %71, %73 : vector<8x32xf32>
    %75 = math.tanh %74 : vector<8x32xf32>
    %76 = arith.subf %43, %75 : vector<8x32xf32>
    %77 = arith.mulf %68, %76 : vector<8x32xf32>
    %78 = arith.addf %75, %77 : vector<8x32xf32>
    %79 = arith.index_cast %c1_i32 : i32 to index
    %c0_41 = arith.constant 0 : index
    %c0_42 = arith.constant 0 : index
    %80 = vector.load %arg6[%79, %c0_41, %c0_42] : memref<8x8x32xf32, #tpu.memory_space<vmem>>, vector<1x8x32xf32>
    %81 = vector.shape_cast %80 : vector<1x8x32xf32> to vector<8x32xf32>
    %82 = vector.shape_cast %78 : vector<8x32xf32> to vector<1x8x32xf32>
    tpu.vector_store %arg6[%79, %c0_41, %c0_42], %82 {strides = array<i32>} : memref<8x8x32xf32, #tpu.memory_space<vmem>>, vector<1x8x32xf32>,
    %c2_i32 = arith.constant 2 : i32
    %cst_43 = arith.constant dense<0.000000e+00> : vector<8x32xf32>
    %83 = tpu.matmul %78, %4, %cst_43 {dimension_numbers = #tpu.dot_dimension_numbers<[1], [0], [0], [1], [0, 0, 1, 1], [], []>} : vector<8x32xf32>, vector<32x32xf32>, vector<8x32xf32> -> vector<8x32xf32>
    %cst_44 = arith.constant dense<0.000000e+00> : vector<8x32xf32>
    %84 = tpu.matmul %78, %6, %cst_44 {dimension_numbers = #tpu.dot_dimension_numbers<[1], [0], [0], [1], [0, 0, 1, 1], [], []>} : vector<8x32xf32>, vector<32x32xf32>, vector<8x32xf32> -> vector<8x32xf32>
    %cst_45 = arith.constant dense<0.000000e+00> : vector<8x32xf32>
    %85 = tpu.matmul %78, %8, %cst_45 {dimension_numbers = #tpu.dot_dimension_numbers<[1], [0], [0], [1], [0, 0, 1, 1], [], []>} : vector<8x32xf32>, vector<32x32xf32>, vector<8x32xf32> -> vector<8x32xf32>
    %86 = arith.index_cast %c2_i32 : i32 to index
    %c0_46 = arith.constant 0 : index
    %c0_47 = arith.constant 0 : index
    %c0_48 = arith.constant 0 : index
    %87 = vector.load %arg2[%86, %c0_46, %c0_47, %c0_48] : memref<8x3x8x32xf32, #tpu.memory_space<vmem>>, vector<1x1x8x32xf32>
    %88 = vector.shape_cast %87 : vector<1x1x8x32xf32> to vector<8x32xf32>
    %89 = arith.addf %88, %83 : vector<8x32xf32>
    %90 = arith.negf %89 : vector<8x32xf32>
    %91 = math.exp %90 : vector<8x32xf32>
    %cst_49 = arith.constant 1.000000e+00 : f32
    %92 = vector.broadcast %cst_49 : f32 to vector<8x32xf32>
    %93 = arith.addf %92, %91 : vector<8x32xf32>
    %94 = arith.divf %92, %93 : vector<8x32xf32>
    %95 = arith.index_cast %c2_i32 : i32 to index
    %c1_50 = arith.constant 1 : index
    %c0_51 = arith.constant 0 : index
    %c0_52 = arith.constant 0 : index
    %96 = vector.load %arg2[%95, %c1_50, %c0_51, %c0_52] : memref<8x3x8x32xf32, #tpu.memory_space<vmem>>, vector<1x1x8x32xf32>
    %97 = vector.shape_cast %96 : vector<1x1x8x32xf32> to vector<8x32xf32>
    %98 = arith.addf %97, %84 : vector<8x32xf32>
    %99 = arith.negf %98 : vector<8x32xf32>
    %100 = math.exp %99 : vector<8x32xf32>
    %cst_53 = arith.constant 1.000000e+00 : f32
    %101 = vector.broadcast %cst_53 : f32 to vector<8x32xf32>
    %102 = arith.addf %101, %100 : vector<8x32xf32>
    %103 = arith.divf %101, %102 : vector<8x32xf32>
    %104 = arith.index_cast %c2_i32 : i32 to index
    %c2_54 = arith.constant 2 : index
    %c0_55 = arith.constant 0 : index
    %c0_56 = arith.constant 0 : index
    %105 = vector.load %arg2[%104, %c2_54, %c0_55, %c0_56] : memref<8x3x8x32xf32, #tpu.memory_space<vmem>>, vector<1x1x8x32xf32>
    %106 = vector.shape_cast %105 : vector<1x1x8x32xf32> to vector<8x32xf32>
    %107 = arith.addf %85, %11 : vector<8x32xf32>
    %108 = arith.mulf %94, %107 : vector<8x32xf32>
    %109 = arith.addf %106, %108 : vector<8x32xf32>
    %110 = math.tanh %109 : vector<8x32xf32>
    %111 = arith.subf %78, %110 : vector<8x32xf32>
    %112 = arith.mulf %103, %111 : vector<8x32xf32>
    %113 = arith.addf %110, %112 : vector<8x32xf32>
    %114 = arith.index_cast %c2_i32 : i32 to index
    %c0_57 = arith.constant 0 : index
    %c0_58 = arith.constant 0 : index
    %115 = vector.load %arg6[%114, %c0_57, %c0_58] : memref<8x8x32xf32, #tpu.memory_space<vmem>>, vector<1x8x32xf32>
    %116 = vector.shape_cast %115 : vector<1x8x32xf32> to vector<8x32xf32>
    %117 = vector.shape_cast %113 : vector<8x32xf32> to vector<1x8x32xf32>
    tpu.vector_store %arg6[%114, %c0_57, %c0_58], %117 {strides = array<i32>} : memref<8x8x32xf32, #tpu.memory_space<vmem>>, vector<1x8x32xf32>,
    %c3_i32 = arith.constant 3 : i32
    %cst_59 = arith.constant dense<0.000000e+00> : vector<8x32xf32>
    %118 = tpu.matmul %113, %4, %cst_59 {dimension_numbers = #tpu.dot_dimension_numbers<[1], [0], [0], [1], [0, 0, 1, 1], [], []>} : vector<8x32xf32>, vector<32x32xf32>, vector<8x32xf32> -> vector<8x32xf32>
    %cst_60 = arith.constant dense<0.000000e+00> : vector<8x32xf32>
    %119 = tpu.matmul %113, %6, %cst_60 {dimension_numbers = #tpu.dot_dimension_numbers<[1], [0], [0], [1], [0, 0, 1, 1], [], []>} : vector<8x32xf32>, vector<32x32xf32>, vector<8x32xf32> -> vector<8x32xf32>
    %cst_61 = arith.constant dense<0.000000e+00> : vector<8x32xf32>
    %120 = tpu.matmul %113, %8, %cst_61 {dimension_numbers = #tpu.dot_dimension_numbers<[1], [0], [0], [1], [0, 0, 1, 1], [], []>} : vector<8x32xf32>, vector<32x32xf32>, vector<8x32xf32> -> vector<8x32xf32>
    %121 = arith.index_cast %c3_i32 : i32 to index
    %c0_62 = arith.constant 0 : index
    %c0_63 = arith.constant 0 : index
    %c0_64 = arith.constant 0 : index
    %122 = vector.load %arg2[%121, %c0_62, %c0_63, %c0_64] : memref<8x3x8x32xf32, #tpu.memory_space<vmem>>, vector<1x1x8x32xf32>
    %123 = vector.shape_cast %122 : vector<1x1x8x32xf32> to vector<8x32xf32>
    %124 = arith.addf %123, %118 : vector<8x32xf32>
    %125 = arith.negf %124 : vector<8x32xf32>
    %126 = math.exp %125 : vector<8x32xf32>
    %cst_65 = arith.constant 1.000000e+00 : f32
    %127 = vector.broadcast %cst_65 : f32 to vector<8x32xf32>
    %128 = arith.addf %127, %126 : vector<8x32xf32>
    %129 = arith.divf %127, %128 : vector<8x32xf32>
    %130 = arith.index_cast %c3_i32 : i32 to index
    %c1_66 = arith.constant 1 : index
    %c0_67 = arith.constant 0 : index
    %c0_68 = arith.constant 0 : index
    %131 = vector.load %arg2[%130, %c1_66, %c0_67, %c0_68] : memref<8x3x8x32xf32, #tpu.memory_space<vmem>>, vector<1x1x8x32xf32>
    %132 = vector.shape_cast %131 : vector<1x1x8x32xf32> to vector<8x32xf32>
    %133 = arith.addf %132, %119 : vector<8x32xf32>
    %134 = arith.negf %133 : vector<8x32xf32>
    %135 = math.exp %134 : vector<8x32xf32>
    %cst_69 = arith.constant 1.000000e+00 : f32
    %136 = vector.broadcast %cst_69 : f32 to vector<8x32xf32>
    %137 = arith.addf %136, %135 : vector<8x32xf32>
    %138 = arith.divf %136, %137 : vector<8x32xf32>
    %139 = arith.index_cast %c3_i32 : i32 to index
    %c2_70 = arith.constant 2 : index
    %c0_71 = arith.constant 0 : index
    %c0_72 = arith.constant 0 : index
    %140 = vector.load %arg2[%139, %c2_70, %c0_71, %c0_72] : memref<8x3x8x32xf32, #tpu.memory_space<vmem>>, vector<1x1x8x32xf32>
    %141 = vector.shape_cast %140 : vector<1x1x8x32xf32> to vector<8x32xf32>
    %142 = arith.addf %120, %11 : vector<8x32xf32>
    %143 = arith.mulf %129, %142 : vector<8x32xf32>
    %144 = arith.addf %141, %143 : vector<8x32xf32>
    %145 = math.tanh %144 : vector<8x32xf32>
    %146 = arith.subf %113, %145 : vector<8x32xf32>
    %147 = arith.mulf %138, %146 : vector<8x32xf32>
    %148 = arith.addf %145, %147 : vector<8x32xf32>
    %149 = arith.index_cast %c3_i32 : i32 to index
    %c0_73 = arith.constant 0 : index
    %c0_74 = arith.constant 0 : index
    %150 = vector.load %arg6[%149, %c0_73, %c0_74] : memref<8x8x32xf32, #tpu.memory_space<vmem>>, vector<1x8x32xf32>
    %151 = vector.shape_cast %150 : vector<1x8x32xf32> to vector<8x32xf32>
    %152 = vector.shape_cast %148 : vector<8x32xf32> to vector<1x8x32xf32>
    tpu.vector_store %arg6[%149, %c0_73, %c0_74], %152 {strides = array<i32>} : memref<8x8x32xf32, #tpu.memory_space<vmem>>, vector<1x8x32xf32>,
    %c4_i32 = arith.constant 4 : i32
    %cst_75 = arith.constant dense<0.000000e+00> : vector<8x32xf32>
    %153 = tpu.matmul %148, %4, %cst_75 {dimension_numbers = #tpu.dot_dimension_numbers<[1], [0], [0], [1], [0, 0, 1, 1], [], []>} : vector<8x32xf32>, vector<32x32xf32>, vector<8x32xf32> -> vector<8x32xf32>
    %cst_76 = arith.constant dense<0.000000e+00> : vector<8x32xf32>
    %154 = tpu.matmul %148, %6, %cst_76 {dimension_numbers = #tpu.dot_dimension_numbers<[1], [0], [0], [1], [0, 0, 1, 1], [], []>} : vector<8x32xf32>, vector<32x32xf32>, vector<8x32xf32> -> vector<8x32xf32>
    %cst_77 = arith.constant dense<0.000000e+00> : vector<8x32xf32>
    %155 = tpu.matmul %148, %8, %cst_77 {dimension_numbers = #tpu.dot_dimension_numbers<[1], [0], [0], [1], [0, 0, 1, 1], [], []>} : vector<8x32xf32>, vector<32x32xf32>, vector<8x32xf32> -> vector<8x32xf32>
    %156 = arith.index_cast %c4_i32 : i32 to index
    %c0_78 = arith.constant 0 : index
    %c0_79 = arith.constant 0 : index
    %c0_80 = arith.constant 0 : index
    %157 = vector.load %arg2[%156, %c0_78, %c0_79, %c0_80] : memref<8x3x8x32xf32, #tpu.memory_space<vmem>>, vector<1x1x8x32xf32>
    %158 = vector.shape_cast %157 : vector<1x1x8x32xf32> to vector<8x32xf32>
    %159 = arith.addf %158, %153 : vector<8x32xf32>
    %160 = arith.negf %159 : vector<8x32xf32>
    %161 = math.exp %160 : vector<8x32xf32>
    %cst_81 = arith.constant 1.000000e+00 : f32
    %162 = vector.broadcast %cst_81 : f32 to vector<8x32xf32>
    %163 = arith.addf %162, %161 : vector<8x32xf32>
    %164 = arith.divf %162, %163 : vector<8x32xf32>
    %165 = arith.index_cast %c4_i32 : i32 to index
    %c1_82 = arith.constant 1 : index
    %c0_83 = arith.constant 0 : index
    %c0_84 = arith.constant 0 : index
    %166 = vector.load %arg2[%165, %c1_82, %c0_83, %c0_84] : memref<8x3x8x32xf32, #tpu.memory_space<vmem>>, vector<1x1x8x32xf32>
    %167 = vector.shape_cast %166 : vector<1x1x8x32xf32> to vector<8x32xf32>
    %168 = arith.addf %167, %154 : vector<8x32xf32>
    %169 = arith.negf %168 : vector<8x32xf32>
    %170 = math.exp %169 : vector<8x32xf32>
    %cst_85 = arith.constant 1.000000e+00 : f32
    %171 = vector.broadcast %cst_85 : f32 to vector<8x32xf32>
    %172 = arith.addf %171, %170 : vector<8x32xf32>
    %173 = arith.divf %171, %172 : vector<8x32xf32>
    %174 = arith.index_cast %c4_i32 : i32 to index
    %c2_86 = arith.constant 2 : index
    %c0_87 = arith.constant 0 : index
    %c0_88 = arith.constant 0 : index
    %175 = vector.load %arg2[%174, %c2_86, %c0_87, %c0_88] : memref<8x3x8x32xf32, #tpu.memory_space<vmem>>, vector<1x1x8x32xf32>
    %176 = vector.shape_cast %175 : vector<1x1x8x32xf32> to vector<8x32xf32>
    %177 = arith.addf %155, %11 : vector<8x32xf32>
    %178 = arith.mulf %164, %177 : vector<8x32xf32>
    %179 = arith.addf %176, %178 : vector<8x32xf32>
    %180 = math.tanh %179 : vector<8x32xf32>
    %181 = arith.subf %148, %180 : vector<8x32xf32>
    %182 = arith.mulf %173, %181 : vector<8x32xf32>
    %183 = arith.addf %180, %182 : vector<8x32xf32>
    %184 = arith.index_cast %c4_i32 : i32 to index
    %c0_89 = arith.constant 0 : index
    %c0_90 = arith.constant 0 : index
    %185 = vector.load %arg6[%184, %c0_89, %c0_90] : memref<8x8x32xf32, #tpu.memory_space<vmem>>, vector<1x8x32xf32>
    %186 = vector.shape_cast %185 : vector<1x8x32xf32> to vector<8x32xf32>
    %187 = vector.shape_cast %183 : vector<8x32xf32> to vector<1x8x32xf32>
    tpu.vector_store %arg6[%184, %c0_89, %c0_90], %187 {strides = array<i32>} : memref<8x8x32xf32, #tpu.memory_space<vmem>>, vector<1x8x32xf32>,
    %c5_i32 = arith.constant 5 : i32
    %cst_91 = arith.constant dense<0.000000e+00> : vector<8x32xf32>
    %188 = tpu.matmul %183, %4, %cst_91 {dimension_numbers = #tpu.dot_dimension_numbers<[1], [0], [0], [1], [0, 0, 1, 1], [], []>} : vector<8x32xf32>, vector<32x32xf32>, vector<8x32xf32> -> vector<8x32xf32>
    %cst_92 = arith.constant dense<0.000000e+00> : vector<8x32xf32>
    %189 = tpu.matmul %183, %6, %cst_92 {dimension_numbers = #tpu.dot_dimension_numbers<[1], [0], [0], [1], [0, 0, 1, 1], [], []>} : vector<8x32xf32>, vector<32x32xf32>, vector<8x32xf32> -> vector<8x32xf32>
    %cst_93 = arith.constant dense<0.000000e+00> : vector<8x32xf32>
    %190 = tpu.matmul %183, %8, %cst_93 {dimension_numbers = #tpu.dot_dimension_numbers<[1], [0], [0], [1], [0, 0, 1, 1], [], []>} : vector<8x32xf32>, vector<32x32xf32>, vector<8x32xf32> -> vector<8x32xf32>
    %191 = arith.index_cast %c5_i32 : i32 to index
    %c0_94 = arith.constant 0 : index
    %c0_95 = arith.constant 0 : index
    %c0_96 = arith.constant 0 : index
    %192 = vector.load %arg2[%191, %c0_94, %c0_95, %c0_96] : memref<8x3x8x32xf32, #tpu.memory_space<vmem>>, vector<1x1x8x32xf32>
    %193 = vector.shape_cast %192 : vector<1x1x8x32xf32> to vector<8x32xf32>
    %194 = arith.addf %193, %188 : vector<8x32xf32>
    %195 = arith.negf %194 : vector<8x32xf32>
    %196 = math.exp %195 : vector<8x32xf32>
    %cst_97 = arith.constant 1.000000e+00 : f32
    %197 = vector.broadcast %cst_97 : f32 to vector<8x32xf32>
    %198 = arith.addf %197, %196 : vector<8x32xf32>
    %199 = arith.divf %197, %198 : vector<8x32xf32>
    %200 = arith.index_cast %c5_i32 : i32 to index
    %c1_98 = arith.constant 1 : index
    %c0_99 = arith.constant 0 : index
    %c0_100 = arith.constant 0 : index
    %201 = vector.load %arg2[%200, %c1_98, %c0_99, %c0_100] : memref<8x3x8x32xf32, #tpu.memory_space<vmem>>, vector<1x1x8x32xf32>
    %202 = vector.shape_cast %201 : vector<1x1x8x32xf32> to vector<8x32xf32>
    %203 = arith.addf %202, %189 : vector<8x32xf32>
    %204 = arith.negf %203 : vector<8x32xf32>
    %205 = math.exp %204 : vector<8x32xf32>
    %cst_101 = arith.constant 1.000000e+00 : f32
    %206 = vector.broadcast %cst_101 : f32 to vector<8x32xf32>
    %207 = arith.addf %206, %205 : vector<8x32xf32>
    %208 = arith.divf %206, %207 : vector<8x32xf32>
    %209 = arith.index_cast %c5_i32 : i32 to index
    %c2_102 = arith.constant 2 : index
    %c0_103 = arith.constant 0 : index
    %c0_104 = arith.constant 0 : index
    %210 = vector.load %arg2[%209, %c2_102, %c0_103, %c0_104] : memref<8x3x8x32xf32, #tpu.memory_space<vmem>>, vector<1x1x8x32xf32>
    %211 = vector.shape_cast %210 : vector<1x1x8x32xf32> to vector<8x32xf32>
    %212 = arith.addf %190, %11 : vector<8x32xf32>
    %213 = arith.mulf %199, %212 : vector<8x32xf32>
    %214 = arith.addf %211, %213 : vector<8x32xf32>
    %215 = math.tanh %214 : vector<8x32xf32>
    %216 = arith.subf %183, %215 : vector<8x32xf32>
    %217 = arith.mulf %208, %216 : vector<8x32xf32>
    %218 = arith.addf %215, %217 : vector<8x32xf32>
    %219 = arith.index_cast %c5_i32 : i32 to index
    %c0_105 = arith.constant 0 : index
    %c0_106 = arith.constant 0 : index
    %220 = vector.load %arg6[%219, %c0_105, %c0_106] : memref<8x8x32xf32, #tpu.memory_space<vmem>>, vector<1x8x32xf32>
    %221 = vector.shape_cast %220 : vector<1x8x32xf32> to vector<8x32xf32>
    %222 = vector.shape_cast %218 : vector<8x32xf32> to vector<1x8x32xf32>
    tpu.vector_store %arg6[%219, %c0_105, %c0_106], %222 {strides = array<i32>} : memref<8x8x32xf32, #tpu.memory_space<vmem>>, vector<1x8x32xf32>,
    %c6_i32 = arith.constant 6 : i32
    %cst_107 = arith.constant dense<0.000000e+00> : vector<8x32xf32>
    %223 = tpu.matmul %218, %4, %cst_107 {dimension_numbers = #tpu.dot_dimension_numbers<[1], [0], [0], [1], [0, 0, 1, 1], [], []>} : vector<8x32xf32>, vector<32x32xf32>, vector<8x32xf32> -> vector<8x32xf32>
    %cst_108 = arith.constant dense<0.000000e+00> : vector<8x32xf32>
    %224 = tpu.matmul %218, %6, %cst_108 {dimension_numbers = #tpu.dot_dimension_numbers<[1], [0], [0], [1], [0, 0, 1, 1], [], []>} : vector<8x32xf32>, vector<32x32xf32>, vector<8x32xf32> -> vector<8x32xf32>
    %cst_109 = arith.constant dense<0.000000e+00> : vector<8x32xf32>
    %225 = tpu.matmul %218, %8, %cst_109 {dimension_numbers = #tpu.dot_dimension_numbers<[1], [0], [0], [1], [0, 0, 1, 1], [], []>} : vector<8x32xf32>, vector<32x32xf32>, vector<8x32xf32> -> vector<8x32xf32>
    %226 = arith.index_cast %c6_i32 : i32 to index
    %c0_110 = arith.constant 0 : index
    %c0_111 = arith.constant 0 : index
    %c0_112 = arith.constant 0 : index
    %227 = vector.load %arg2[%226, %c0_110, %c0_111, %c0_112] : memref<8x3x8x32xf32, #tpu.memory_space<vmem>>, vector<1x1x8x32xf32>
    %228 = vector.shape_cast %227 : vector<1x1x8x32xf32> to vector<8x32xf32>
    %229 = arith.addf %228, %223 : vector<8x32xf32>
    %230 = arith.negf %229 : vector<8x32xf32>
    %231 = math.exp %230 : vector<8x32xf32>
    %cst_113 = arith.constant 1.000000e+00 : f32
    %232 = vector.broadcast %cst_113 : f32 to vector<8x32xf32>
    %233 = arith.addf %232, %231 : vector<8x32xf32>
    %234 = arith.divf %232, %233 : vector<8x32xf32>
    %235 = arith.index_cast %c6_i32 : i32 to index
    %c1_114 = arith.constant 1 : index
    %c0_115 = arith.constant 0 : index
    %c0_116 = arith.constant 0 : index
    %236 = vector.load %arg2[%235, %c1_114, %c0_115, %c0_116] : memref<8x3x8x32xf32, #tpu.memory_space<vmem>>, vector<1x1x8x32xf32>
    %237 = vector.shape_cast %236 : vector<1x1x8x32xf32> to vector<8x32xf32>
    %238 = arith.addf %237, %224 : vector<8x32xf32>
    %239 = arith.negf %238 : vector<8x32xf32>
    %240 = math.exp %239 : vector<8x32xf32>
    %cst_117 = arith.constant 1.000000e+00 : f32
    %241 = vector.broadcast %cst_117 : f32 to vector<8x32xf32>
    %242 = arith.addf %241, %240 : vector<8x32xf32>
    %243 = arith.divf %241, %242 : vector<8x32xf32>
    %244 = arith.index_cast %c6_i32 : i32 to index
    %c2_118 = arith.constant 2 : index
    %c0_119 = arith.constant 0 : index
    %c0_120 = arith.constant 0 : index
    %245 = vector.load %arg2[%244, %c2_118, %c0_119, %c0_120] : memref<8x3x8x32xf32, #tpu.memory_space<vmem>>, vector<1x1x8x32xf32>
    %246 = vector.shape_cast %245 : vector<1x1x8x32xf32> to vector<8x32xf32>
    %247 = arith.addf %225, %11 : vector<8x32xf32>
    %248 = arith.mulf %234, %247 : vector<8x32xf32>
    %249 = arith.addf %246, %248 : vector<8x32xf32>
    %250 = math.tanh %249 : vector<8x32xf32>
    %251 = arith.subf %218, %250 : vector<8x32xf32>
    %252 = arith.mulf %243, %251 : vector<8x32xf32>
    %253 = arith.addf %250, %252 : vector<8x32xf32>
    %254 = arith.index_cast %c6_i32 : i32 to index
    %c0_121 = arith.constant 0 : index
    %c0_122 = arith.constant 0 : index
    %255 = vector.load %arg6[%254, %c0_121, %c0_122] : memref<8x8x32xf32, #tpu.memory_space<vmem>>, vector<1x8x32xf32>
    %256 = vector.shape_cast %255 : vector<1x8x32xf32> to vector<8x32xf32>
    %257 = vector.shape_cast %253 : vector<8x32xf32> to vector<1x8x32xf32>
    tpu.vector_store %arg6[%254, %c0_121, %c0_122], %257 {strides = array<i32>} : memref<8x8x32xf32, #tpu.memory_space<vmem>>, vector<1x8x32xf32>,
    %c7_i32 = arith.constant 7 : i32
    %cst_123 = arith.constant dense<0.000000e+00> : vector<8x32xf32>
    %258 = tpu.matmul %253, %4, %cst_123 {dimension_numbers = #tpu.dot_dimension_numbers<[1], [0], [0], [1], [0, 0, 1, 1], [], []>} : vector<8x32xf32>, vector<32x32xf32>, vector<8x32xf32> -> vector<8x32xf32>
    %cst_124 = arith.constant dense<0.000000e+00> : vector<8x32xf32>
    %259 = tpu.matmul %253, %6, %cst_124 {dimension_numbers = #tpu.dot_dimension_numbers<[1], [0], [0], [1], [0, 0, 1, 1], [], []>} : vector<8x32xf32>, vector<32x32xf32>, vector<8x32xf32> -> vector<8x32xf32>
    %cst_125 = arith.constant dense<0.000000e+00> : vector<8x32xf32>
    %260 = tpu.matmul %253, %8, %cst_125 {dimension_numbers = #tpu.dot_dimension_numbers<[1], [0], [0], [1], [0, 0, 1, 1], [], []>} : vector<8x32xf32>, vector<32x32xf32>, vector<8x32xf32> -> vector<8x32xf32>
    %261 = arith.index_cast %c7_i32 : i32 to index
    %c0_126 = arith.constant 0 : index
    %c0_127 = arith.constant 0 : index
    %c0_128 = arith.constant 0 : index
    %262 = vector.load %arg2[%261, %c0_126, %c0_127, %c0_128] : memref<8x3x8x32xf32, #tpu.memory_space<vmem>>, vector<1x1x8x32xf32>
    %263 = vector.shape_cast %262 : vector<1x1x8x32xf32> to vector<8x32xf32>
    %264 = arith.addf %263, %258 : vector<8x32xf32>
    %265 = arith.negf %264 : vector<8x32xf32>
    %266 = math.exp %265 : vector<8x32xf32>
    %cst_129 = arith.constant 1.000000e+00 : f32
    %267 = vector.broadcast %cst_129 : f32 to vector<8x32xf32>
    %268 = arith.addf %267, %266 : vector<8x32xf32>
    %269 = arith.divf %267, %268 : vector<8x32xf32>
    %270 = arith.index_cast %c7_i32 : i32 to index
    %c1_130 = arith.constant 1 : index
    %c0_131 = arith.constant 0 : index
    %c0_132 = arith.constant 0 : index
    %271 = vector.load %arg2[%270, %c1_130, %c0_131, %c0_132] : memref<8x3x8x32xf32, #tpu.memory_space<vmem>>, vector<1x1x8x32xf32>
    %272 = vector.shape_cast %271 : vector<1x1x8x32xf32> to vector<8x32xf32>
    %273 = arith.addf %272, %259 : vector<8x32xf32>
    %274 = arith.negf %273 : vector<8x32xf32>
    %275 = math.exp %274 : vector<8x32xf32>
    %cst_133 = arith.constant 1.000000e+00 : f32
    %276 = vector.broadcast %cst_133 : f32 to vector<8x32xf32>
    %277 = arith.addf %276, %275 : vector<8x32xf32>
    %278 = arith.divf %276, %277 : vector<8x32xf32>
    %279 = arith.index_cast %c7_i32 : i32 to index
    %c2_134 = arith.constant 2 : index
    %c0_135 = arith.constant 0 : index
    %c0_136 = arith.constant 0 : index
    %280 = vector.load %arg2[%279, %c2_134, %c0_135, %c0_136] : memref<8x3x8x32xf32, #tpu.memory_space<vmem>>, vector<1x1x8x32xf32>
    %281 = vector.shape_cast %280 : vector<1x1x8x32xf32> to vector<8x32xf32>
    %282 = arith.addf %260, %11 : vector<8x32xf32>
    %283 = arith.mulf %269, %282 : vector<8x32xf32>
    %284 = arith.addf %281, %283 : vector<8x32xf32>
    %285 = math.tanh %284 : vector<8x32xf32>
    %286 = arith.subf %253, %285 : vector<8x32xf32>
    %287 = arith.mulf %278, %286 : vector<8x32xf32>
    %288 = arith.addf %285, %287 : vector<8x32xf32>
    %289 = arith.index_cast %c7_i32 : i32 to index
    %c0_137 = arith.constant 0 : index
    %c0_138 = arith.constant 0 : index
    %290 = vector.load %arg6[%289, %c0_137, %c0_138] : memref<8x8x32xf32, #tpu.memory_space<vmem>>, vector<1x8x32xf32>
    %291 = vector.shape_cast %290 : vector<1x8x32xf32> to vector<8x32xf32>
    %292 = vector.shape_cast %288 : vector<8x32xf32> to vector<1x8x32xf32>
    tpu.vector_store %arg6[%289, %c0_137, %c0_138], %292 {strides = array<i32>} : memref<8x8x32xf32, #tpu.memory_space<vmem>>, vector<1x8x32xf32>,
    %c8_i32 = arith.constant 8 : i32
    %c0_139 = arith.constant 0 : index
    %c0_140 = arith.constant 0 : index
    %293 = vector.load %arg7[%c0_139, %c0_140] : memref<8x32xf32, #tpu.memory_space<vmem>>, vector<8x32xf32>
    tpu.vector_store %arg7[%c0_139, %c0_140], %288 {strides = array<i32>} : memref<8x32xf32, #tpu.memory_space<vmem>>, vector<8x32xf32>,
    return
  }
  func.func @transform_0(%arg0: i32, %arg1: i32) -> (i32, i32, i32, i32) {
    %c0_i32 = arith.constant 0 : i32
    %c0_i32_0 = arith.constant 0 : i32
    %c0_i32_1 = arith.constant 0 : i32
    return %arg1, %c0_i32, %arg0, %c0_i32_0 : i32, i32, i32, i32
  }
  func.func @transform_1(%arg0: i32, %arg1: i32) -> (i32, i32) {
    %c0_i32 = arith.constant 0 : i32
    %c0_i32_0 = arith.constant 0 : i32
    return %arg0, %c0_i32 : i32, i32
  }
  func.func @transform_2(%arg0: i32, %arg1: i32) -> (i32, i32, i32) {
    %c0_i32 = arith.constant 0 : i32
    %c0_i32_0 = arith.constant 0 : i32
    %c0_i32_1 = arith.constant 0 : i32
    %c0_i32_2 = arith.constant 0 : i32
    return %c0_i32, %c0_i32_0, %c0_i32_1 : i32, i32, i32
  }
  func.func @transform_3(%arg0: i32, %arg1: i32) -> (i32, i32) {
    %c0_i32 = arith.constant 0 : i32
    %c0_i32_0 = arith.constant 0 : i32
    %c0_i32_1 = arith.constant 0 : i32
    return %c0_i32, %c0_i32_0 : i32, i32
  }
  func.func @transform_4(%arg0: i32, %arg1: i32) -> (i32, i32, i32) {
    %c0_i32 = arith.constant 0 : i32
    %c0_i32_0 = arith.constant 0 : i32
    return %arg1, %arg0, %c0_i32 : i32, i32, i32
  }
}

module attributes {stable_mosaic.version = 11 : i64} {
  func.func @attend_vocab_kernel(%arg0: i32, %arg1: i32, %arg2: memref<64x32xf32, #tpu.memory_space<vmem>>, %arg3: memref<32x128xf32, #tpu.memory_space<vmem>>, %arg4: memref<64x128xf32, #tpu.memory_space<vmem>>) attributes {dimension_semantics = [#tpu.dimension_semantics<parallel>, #tpu.dimension_semantics<parallel>], iteration_bounds = array<i64: 1, 1>, scalar_prefetch = 0 : i64, scratch_operands = 0 : i64, tpu.core_type = #tpu.core_type<tc>, window_params = [{transform_indices = @transform_0, window_bounds = array<i64: 64, 32>}, {transform_indices = @transform_1, window_bounds = array<i64: 32, 128>}, {transform_indices = @transform_2, window_bounds = array<i64: 64, 128>}]} {
    %c0 = arith.constant 0 : index
    %c0_0 = arith.constant 0 : index
    %0 = vector.load %arg2[%c0, %c0_0] : memref<64x32xf32, #tpu.memory_space<vmem>>, vector<64x32xf32>
    %c0_1 = arith.constant 0 : index
    %c0_2 = arith.constant 0 : index
    %1 = vector.load %arg3[%c0_1, %c0_2] : memref<32x128xf32, #tpu.memory_space<vmem>>, vector<32x128xf32>
    %cst = arith.constant dense<0.000000e+00> : vector<64x128xf32>
    %2 = tpu.matmul %0, %1, %cst {dimension_numbers = #tpu.dot_dimension_numbers<[1], [0], [0], [1], [0, 0, 1, 1], [], []>} : vector<64x32xf32>, vector<32x128xf32>, vector<64x128xf32> -> vector<64x128xf32>
    %c0_3 = arith.constant 0 : index
    %c0_4 = arith.constant 0 : index
    %3 = vector.load %arg4[%c0_3, %c0_4] : memref<64x128xf32, #tpu.memory_space<vmem>>, vector<64x128xf32>
    tpu.vector_store %arg4[%c0_3, %c0_4], %2 {strides = array<i32>} : memref<64x128xf32, #tpu.memory_space<vmem>>, vector<64x128xf32>,
    return
  }
  func.func @transform_0(%arg0: i32, %arg1: i32) -> (i32, i32) {
    %c0_i32 = arith.constant 0 : i32
    %c0_i32_0 = arith.constant 0 : i32
    return %arg0, %c0_i32 : i32, i32
  }
  func.func @transform_1(%arg0: i32, %arg1: i32) -> (i32, i32) {
    %c0_i32 = arith.constant 0 : i32
    %c0_i32_0 = arith.constant 0 : i32
    return %c0_i32, %arg1 : i32, i32
  }
  func.func @transform_2(%arg0: i32, %arg1: i32) -> (i32, i32) {
    %c0_i32 = arith.constant 0 : i32
    return %arg0, %arg1 : i32, i32
  }
}

</mosaic_0001>

<llo_original>
// kernel: reason_decoder_forward.2
$region0: #{reason_decoder_forward.2}
  #allocation0 [shape = 'u32[]', space=smem, size = 0x4, offset = 0x4, fixed_abs, tag = 'smem constant byte address 0x4 - core index']
  #allocation1 [shape = 'u32[144,128]{1,0:T(1,128)}', space=vmem, size = 0x12000, scoped, tag = 'internal scratch']
  #allocation2 [shape = 'f32[8,32]{1,0:T(8,128)}', space=vmem, size = 0x1000, scoped, tag = 'scratch operand']
  %s0 = inlined_call_operand.vmem [shape: f32[16,3,8,32], index: 0, kind: input, shape index: {}]
  %s1 = inlined_call_operand.vmem [shape: f32[8,32], index: 1, kind: input, shape index: {}]
  %s2 = inlined_call_operand.vmem [shape: f32[3,32,32], index: 2, kind: input, shape index: {}]
  %s3 = inlined_call_operand.vmem [shape: f32[1,32], index: 3, kind: input, shape index: {}]
  %s4 = inlined_call_operand.vmem [shape: f32[16,8,32], index: 4, kind: output, shape index: {}]
  %s5 = sld [smem:[#allocation0]]
  $region53: #{reason_decoder_forward.2} parent=0
    _
  %s7 = ssub.s32 1, %s5
  %s8 = scalar_select 0, %s7, %s5
  loop: start=0, step=1, limit=4
  $region2: #{reason_decoder_forward.2} parent=0 // loop_pre_header
    _
  $region3: #{reason_decoder_forward.2} parent=0 // loop_header
    %s10 = sphi 0, %s14
    %p11 = scmp.ge.s32.totalorder %s10, 4
    %s17 = sphi 0, %s29
    %s18 = sphi 0, %s25
    %s19 = sphi 0, %s17
    %s20 = sphi 0, %s18
    %s21 = sphi 0, %s19
    %s22 = sphi 0, %s20
    %s34 = sphi 0, %s36
    %s37 = sphi 0, %s34
    %s38 = sphi 0, %s37
    %s54 = sphi 0, %s38
    %s60 = sphi 0, %s62
    %s63 = sphi 0, %s60
    %s64 = sphi 0, %s63
    %s80 = sphi 0, %s64
    %s84 = sphi 0, %s84
    %s86 = sphi 0, %s84
    %s87 = sphi 0, %s86
    %s101 = sphi 0, %s87
    %s105 = sphi 0, %s105
    %s107 = sphi 0, %s105
    %s108 = sphi 0, %s107
    %s122 = sphi 0, %s108
    %s130 = sphi 0, %s132
    %s133 = sphi 0, %s130
    %s134 = sphi 0, %s133
    %s150 = sphi 0, %s134
  $region4: #{reason_decoder_forward.2} parent=0 // loop_header_branch
    %13 = sbr.rel (%p11) target = $region8
  $region5: #{reason_decoder_forward.2} parent=0 // loop_body
    %s15 = ssub.s32 %s10, 1
    %s16 = ssub.s32 %s10, 2
    %s23 = sadd.s32 1, %s18
    %p24 = scmp.ge.s32.totalorder %s23, 2
    %s25 = scalar_select %p24, 0, %s23
    %s26 = sadd.s32 1, %s17
    %s27 = scalar_select %p24, %s26, %s17
    %p28 = scmp.ge.s32.totalorder %s27, 1
    %s29 = scalar_select %p28, 0, %s27
    %s30 = ssub.s32 %s18, %s25
    %s31 = ssub.s32 %s17, %s29
    %s32 = sor.u32 %s30, %s31
    %p33 = scmp.eq.s32.totalorder %s32, 0
    %s35 = sadd.s32 %s34, 1
    %s36 = scalar_select %p33, %s34, %s35
    %p39 = pneg %p33
    %p40 = scmp.eq.s32.totalorder %s10, 1
    %p41 = por %p39, %p40
    %p42 = scmp.ne.s32.totalorder %s34, %s37
    %p43 = scmp.eq.s32.totalorder %s10, 0
    %p44 = por %p42, %p43
    %p45 = scmp.ne.s32.totalorder %s34, %s37
    %p46 = scmp.eq.s32.totalorder %s15, 1
    %p47 = por %p45, %p46
    %p48 = scmp.ne.s32.totalorder %s37, %s38
    %p49 = scmp.eq.s32.totalorder %s15, 0
    %p50 = por %p48, %p49
    %p51 = scmp.ne.s32.totalorder %s37, %s38
    %p52 = scmp.eq.s32.totalorder %s16, 1
    %p53 = por %p51, %p52
    %p55 = scmp.ne.s32.totalorder %s38, %s54
    %p56 = scmp.eq.s32.totalorder %s16, 0
    %p57 = por %p55, %p56
    %s58 = ssub.s32 %s17, %s29
    %p59 = scmp.eq.s32.totalorder %s58, 0
    %s61 = sadd.s32 %s60, 1
    %s62 = scalar_select %p59, %s60, %s61
    %p65 = pneg %p59
    %p66 = scmp.eq.s32.totalorder %s10, 1
    %p67 = por %p65, %p66
    %p68 = scmp.ne.s32.totalorder %s60, %s63
    %p69 = scmp.eq.s32.totalorder %s10, 0
    %p70 = por %p68, %p69
    %p71 = scmp.ne.s32.totalorder %s60, %s63
    %p72 = scmp.eq.s32.totalorder %s15, 1
    %p73 = por %p71, %p72
    %p74 = scmp.ne.s32.totalorder %s63, %s64
    %p75 = scmp.eq.s32.totalorder %s15, 0
    %p76 = por %p74, %p75
    %p77 = scmp.ne.s32.totalorder %s63, %s64
    %p78 = scmp.eq.s32.totalorder %s16, 1
    %p79 = por %p77, %p78
    %p81 = scmp.ne.s32.totalorder %s64, %s80
    %p82 = scmp.eq.s32.totalorder %s16, 0
    %p83 = por %p81, %p82
    %s85 = sadd.s32 %s84, 1
    %p88 = scmp.eq.s32.totalorder %s10, 1
    %p89 = scmp.ne.s32.totalorder %s84, %s86
    %p90 = scmp.eq.s32.totalorder %s10, 0
    %p91 = por %p89, %p90
    %p92 = scmp.ne.s32.totalorder %s84, %s86
    %p93 = scmp.eq.s32.totalorder %s15, 1
    %p94 = por %p92, %p93
    %p95 = scmp.ne.s32.totalorder %s86, %s87
    %p96 = scmp.eq.s32.totalorder %s15, 0
    %p97 = por %p95, %p96
    %p98 = scmp.ne.s32.totalorder %s86, %s87
    %p99 = scmp.eq.s32.totalorder %s16, 1
    %p100 = por %p98, %p99
    %p102 = scmp.ne.s32.totalorder %s87, %s101
    %p103 = scmp.eq.s32.totalorder %s16, 0
    %p104 = por %p102, %p103
    %s106 = sadd.s32 %s105, 1
    %p109 = scmp.eq.s32.totalorder %s10, 1
    %p110 = scmp.ne.s32.totalorder %s105, %s107
    %p111 = scmp.eq.s32.totalorder %s10, 0
    %p112 = por %p110, %p111
    %p113 = scmp.ne.s32.totalorder %s105, %s107
    %p114 = scmp.eq.s32.totalorder %s15, 1
    %p115 = por %p113, %p114
    %p116 = scmp.ne.s32.totalorder %s107, %s108
    %p117 = scmp.eq.s32.totalorder %s15, 0
    %p118 = por %p116, %p117
    %p119 = scmp.ne.s32.totalorder %s107, %s108
    %p120 = scmp.eq.s32.totalorder %s16, 1
    %p121 = por %p119, %p120
    %p123 = scmp.ne.s32.totalorder %s108, %s122
    %p124 = scmp.eq.s32.totalorder %s16, 0
    %p125 = por %p123, %p124
    %s126 = ssub.s32 %s18, %s25
    %s127 = ssub.s32 %s17, %s29
    %s128 = sor.u32 %s126, %s127
    %p129 = scmp.eq.s32.totalorder %s128, 0
    %s131 = sadd.s32 %s130, 1
    %s132 = scalar_select %p129, %s130, %s131
    %p135 = pneg %p129
    %p136 = scmp.eq.s32.totalorder %s10, 1
    %p137 = por %p135, %p136
    %p138 = scmp.ne.s32.totalorder %s130, %s133
    %p139 = scmp.eq.s32.totalorder %s10, 0
    %p140 = por %p138, %p139
    %p141 = scmp.ne.s32.totalorder %s130, %s133
    %p142 = scmp.eq.s32.totalorder %s15, 1
    %p143 = por %p141, %p142
    %p144 = scmp.ne.s32.totalorder %s133, %s134
    %p145 = scmp.eq.s32.totalorder %s15, 0
    %p146 = por %p144, %p145
    %p147 = scmp.ne.s32.totalorder %s133, %s134
    %p148 = scmp.eq.s32.totalorder %s16, 1
    %p149 = por %p147, %p148
    %p151 = scmp.ne.s32.totalorder %s134, %s150
    %p152 = scmp.eq.s32.totalorder %s16, 0
    %p153 = por %p151, %p152
    %p154 = scmp.le.s32.totalorder 1, %s10
    %p155 = scmp.lt.s32.totalorder %s10, 3
    %p156 = pnand %p154, %p155
    %p157 = pneg %p156
    // Predicated region
    $region9: #{reason_decoder_forward.2} parent=5 // pred_check
      _
    $region10: #{reason_decoder_forward.2} parent=5 // pred_check_branch
      %159 = sbr.rel (%p156) target = $region12
    $region11: #{reason_decoder_forward.2} parent=5 // pred_region
      %s160 = ssub.s32 %s10, 1
      // Predicated region
      $region13: #{reason_decoder_forward.2} parent=11 // pred_check
        %p161 = pneg %p76
      $region14: #{reason_decoder_forward.2} parent=11 // pred_check_branch
        %163 = sbr.rel (%p161) target = $region16
      $region15: #{reason_decoder_forward.2} parent=11 // pred_region
        %p164 = scmp.lt.s32.totalorder %s19, 0
        %s165 = scalar_select %p164, %s19, 0
        %s166 = smul.addr %s165, 8
        %s167 = scalar_lea.vmem %s1, %s166
      $region16: #{reason_decoder_forward.2} parent=11 // pred_fallthru
        _
      // Predicated region
      $region17: #{reason_decoder_forward.2} parent=11 // pred_check
        %p168 = pneg %p97
      $region18: #{reason_decoder_forward.2} parent=11 // pred_check_branch
        %170 = sbr.rel (%p168) target = $region20
      $region19: #{reason_decoder_forward.2} parent=11 // pred_region
        _
      $region20: #{reason_decoder_forward.2} parent=11 // pred_fallthru
        _
      // Predicated region
      $region21: #{reason_decoder_forward.2} parent=11 // pred_check
        %p171 = pneg %p118
      $region22: #{reason_decoder_forward.2} parent=11 // pred_check_branch
        %173 = sbr.rel (%p171) target = $region24
      $region23: #{reason_decoder_forward.2} parent=11 // pred_region
        _
      $region24: #{reason_decoder_forward.2} parent=11 // pred_fallthru
        _
    $region12: #{reason_decoder_forward.2} parent=5 // pred_fallthru
      _
    %p174 = scmp.lt.s32.totalorder %s10, 2
    // Predicated region
    $region25: #{reason_decoder_forward.2} parent=5 // pred_check
      %p175 = pneg %p174
    $region26: #{reason_decoder_forward.2} parent=5 // pred_check_branch
      %177 = sbr.rel (%p175) target = $region28
    $region27: #{reason_decoder_forward.2} parent=5 // pred_region
      // Predicated region
      $region29: #{reason_decoder_forward.2} parent=27 // pred_check
        %p178 = pneg %p44
      $region30: #{reason_decoder_forward.2} parent=27 // pred_check_branch
        %180 = sbr.rel (%p178) target = $region32
      $region31: #{reason_decoder_forward.2} parent=27 // pred_region
        %s181 = smul.u32 8, %s18
        %p182 = scmp.lt.s32.totalorder %s181, 15
        %s183 = scalar_select %p182, %s181, 15
        %p184 = scmp.lt.s32.totalorder %s17, 0
        %s185 = scalar_select %p184, %s17, 0
        %s186 = smul.addr %s183, 3
        %s187 = sadd.s32 %s185, %s186
        %s188 = smul.addr %s187, 8
        %s189 = scalar_lea.vmem %s0, %s188
        %s190 = smul.u32 8, %s18
      $region32: #{reason_decoder_forward.2} parent=27 // pred_fallthru
        _
    $region28: #{reason_decoder_forward.2} parent=5 // pred_fallthru
      _
    %p191 = scmp.le.s32.totalorder 1, %s10
    %p192 = scmp.lt.s32.totalorder %s10, 3
    %p193 = pnand %p191, %p192
    %p194 = pneg %p193
    // Predicated region
    $region33: #{reason_decoder_forward.2} parent=5 // pred_check
      _
    $region34: #{reason_decoder_forward.2} parent=5 // pred_check_branch
      %196 = sbr.rel (%p193) target = $region36
    $region35: #{reason_decoder_forward.2} parent=5 // pred_region
      %s197 = ssub.s32 %s10, 1
      %s198 = smul.u32 8, %s20
      %p199 = scmp.lt.s32.totalorder %s198, 15
      %s200 = scalar_select %p199, %s198, 15
      %p201 = scmp.lt.s32.totalorder %s19, 0
      %s202 = scalar_select %p201, %s19, 0
      %s203 = smul.addr %s200, 3
      %s204 = sadd.s32 %s202, %s203
      %s205 = smul.addr %s204, 8
      %s206 = scalar_lea.vmem %s0, %s205
      %p207 = pneg %p50
      %p208 = pneg %p47
      %p209 = scmp.lt.s32.totalorder %s19, 0
      %s210 = scalar_select %p209, %s19, 0
      %s211 = smul.addr %s210, 8
      %s212 = scalar_lea.vmem %s1, %s211
      %p213 = pneg %p76
      %p214 = pneg %p73
      %p215 = pneg %p97
      %p216 = pneg %p94
      %p217 = pneg %p118
      %p218 = pneg %p115
      %p219 = pneg %p146
      %p220 = pneg %p143
      %s221 = smul.u32 8, %s20
      %p222 = scmp.lt.s32.totalorder %s221, 15
      %s223 = scalar_select %p222, %s221, 15
      %p224 = scmp.lt.s32.totalorder %s19, 0
      %s225 = scalar_select %p224, %s19, 0
      %s226 = sadd.s32 %s225, %s223
      %s227 = smul.addr %s226, 8
      %s228 = scalar_lea.vmem %s4, %s227
      %s229 = smul.u32 8, %s20
      %p230 = scmp.lt.s32.totalorder %s229, 15
      %s231 = scalar_select %p230, %s229, 15
      %p232 = scmp.lt.s32.totalorder %s19, 0
      %s233 = scalar_select %p232, %s19, 0
      %s234 = smul.addr %s231, 3
      %s235 = sadd.s32 %s233, %s234
      %s236 = smul.addr %s235, 8
      %s237 = scalar_lea.vmem %s0, %s236
      %s238 = smul.u32 8, %s20
      %p239 = scmp.lt.s32.totalorder %s19, 0
      %s240 = scalar_select %p239, %s19, 0
      %s241 = smul.addr %s240, 8
      %s242 = scalar_lea.vmem %s1, %s241
      %s243 = smul.u32 8, %s20
      %p244 = scmp.lt.s32.totalorder %s243, 15
      %s245 = scalar_select %p244, %s243, 15
      %p246 = scmp.lt.s32.totalorder %s19, 0
      %s247 = scalar_select %p246, %s19, 0
      %s248 = sadd.s32 %s247, %s245
      %s249 = smul.addr %s248, 8
      %s250 = scalar_lea.vmem %s4, %s249
      %s251 = smul.u32 8, %s20
      %p252 = scmp.eq.s32.totalorder %s20, 0
      // Predicated region
      $region37: #{reason_decoder_forward.2} parent=35 // pred_check
        %p253 = pneg %p252
      $region38: #{reason_decoder_forward.2} parent=35 // pred_check_branch
        %255 = sbr.rel (%p253) target = $region40
      $region39: #{reason_decoder_forward.2} parent=35 // pred_region
        %v256 = vld [vmem:[%s242] sm:$0xff]
        %vm257 = vcmask 261120
        %258 = vst.msk [vmem:[#allocation2] sm:$0xff] %vm257, %v256
      $region40: #{reason_decoder_forward.2} parent=35 // pred_fallthru
        _
      %v259 = vld [vmem:[%s2] sm:$0xff]
      %v260 = vld [vmem:[%s2 + $0x8] sm:$0xff]
      %v261 = vld [vmem:[%s2 + $0x10] sm:$0xff]
      %v262 = vld [vmem:[%s2 + $0x18] sm:$0xff]
      %s263 = scalar_lea.vmem %s2, 32
      %v264 = vld [vmem:[%s263] sm:$0xff]
      %v265 = vld [vmem:[%s263 + $0x8] sm:$0xff]
      %v266 = vld [vmem:[%s263 + $0x10] sm:$0xff]
      %v267 = vld [vmem:[%s263 + $0x18] sm:$0xff]
      %s268 = scalar_lea.vmem %s2, 64
      %v269 = vld [vmem:[%s268] sm:$0xff]
      %v270 = vld [vmem:[%s268 + $0x8] sm:$0xff]
      %v271 = vld [vmem:[%s268 + $0x10] sm:$0xff]
      %v272 = vld [vmem:[%s268 + $0x18] sm:$0xff]
      %v273 = vld [vmem:[%s3] sm:$0x1]
      %v275 = vlaneseq
      %v276 = vshrl.u32 %v275, 7
      %v277 = vsub.s32 0, %v276
      %v278 = vrot.slane %v273, %v277
      %v280 = vld [vmem:[#allocation2] sm:$0xff]
      %vm281 = vcmask 261120
      %v283 = vsel %vm281, %v280, 0
      %285 = vmatprep.subr.mxu0 0.0
      %286 = vmatpush1.msra.mxu0 0.0
      %287 = vmatprep.subr.mxu0 0.0
      %288 = vmatpush1.msra.mxu0 0.0
      %289 = vmatprep.subr.mxu0 0.0
      %290 = vmatpush1.msra.mxu0 0.0
      %291 = vmatprep.subr.mxu0 0.0
      %292 = vmatpush1.msra.mxu0 0.0
      %293 = vmatprep.subr.mxu0 0.0
      %294 = vmatpush1.msra.mxu0 0.0
      %295 = vmatprep.subr.mxu0 0.0
      %296 = vmatpush1.msra.mxu0 0.0
      %297 = vmatprep.subr.mxu0 0.0
      %298 = vmatpush1.msra.mxu0 0.0
      %299 = vmatprep.subr.mxu0 0.0
      %300 = vmatpush1.msra.mxu0 0.0
      %301 = vmatprep.subr.mxu0 0.0
      %302 = vmatpush1.msra.mxu0 0.0
      %303 = vmatprep.subr.mxu0 0.0
      %304 = vmatpush1.msra.mxu0 0.0
      %305 = vmatprep.subr.mxu0 0.0
      %306 = vmatpush1.msra.mxu0 0.0
      %307 = vmatprep.subr.mxu0 0.0
      %308 = vmatpush1.msra.mxu0 0.0
      %309 = vmatprep.subr.mxu0 0.0
      %310 = vmatpush1.msra.mxu0 %v262
      %311 = vmatprep.subr.mxu0 0.0
      %312 = vmatpush1.msra.mxu0 %v261
      %313 = vmatprep.subr.mxu0 0.0
      %314 = vmatpush1.msra.mxu0 %v260
      %315 = vmatprep.subr.mxu0 0.0
      %316 = vmatpush1.msra.mxu0 %v259
      %317 = vmatprep.subr.mxu0 0.0
      %318 = vmatpush2.msra.mxu0 0.0
      %319 = vmatprep.subr.mxu0 0.0
      %320 = vmatpush2.msra.mxu0 0.0
      %321 = vmatprep.subr.mxu0 0.0
      %322 = vmatpush2.msra.mxu0 0.0
      %323 = vmatprep.subr.mxu0 0.0
      %324 = vmatpush2.msra.mxu0 0.0
      %325 = vmatprep.subr.mxu0 0.0
      %326 = vmatpush2.msra.mxu0 0.0
      %327 = vmatprep.subr.mxu0 0.0
      %328 = vmatpush2.msra.mxu0 0.0
      %329 = vmatprep.subr.mxu0 0.0
      %330 = vmatpush2.msra.mxu0 0.0
      %331 = vmatprep.subr.mxu0 0.0
      %332 = vmatpush2.msra.mxu0 0.0
      %333 = vmatprep.subr.mxu0 0.0
      %334 = vmatpush2.msra.mxu0 0.0
      %335 = vmatprep.subr.mxu0 0.0
      %336 = vmatpush2.msra.mxu0 0.0
      %337 = vmatprep.subr.mxu0 0.0
      %338 = vmatpush2.msra.mxu0 0.0
      %339 = vmatprep.subr.mxu0 0.0
      %340 = vmatpush2.msra.mxu0 0.0
      %341 = vmatprep.subr.mxu0 0.0
      %342 = vmatpush2.msra.mxu0 0.0
      %343 = vmatprep.subr.mxu0 0.0
      %344 = vmatpush2.msra.mxu0 0.0
      %345 = vmatprep.subr.mxu0 0.0
      %346 = vmatpush2.msra.mxu0 0.0
      %347 = vmatprep.subr.mxu0 0.0
      %348 = vmatpush2.msra.mxu0 0.0
      %349 = vmatprep.mubr.f32.mxu0 0.0
      %350 = vmatmul.mubr.f32.gmra.mxu0 %v283
      %v351 = vpop.f32.mrf.mxu0
      %v352 = vadd.f32 0.0, %v351
      %v353 = vpop.f32.mrf.mxu0
      %354 = vdwg.mxu0
      %355 = vmatprep.subr.mxu0 0.0
      %356 = vmatpush1.msra.mxu0 0.0
      %357 = vmatprep.subr.mxu0 0.0
      %358 = vmatpush1.msra.mxu0 0.0
      %359 = vmatprep.subr.mxu0 0.0
      %360 = vmatpush1.msra.mxu0 0.0
      %361 = vmatprep.subr.mxu0 0.0
      %362 = vmatpush1.msra.mxu0 0.0
      %363 = vmatprep.subr.mxu0 0.0
      %364 = vmatpush1.msra.mxu0 0.0
      %365 = vmatprep.subr.mxu0 0.0
      %366 = vmatpush1.msra.mxu0 0.0
      %367 = vmatprep.subr.mxu0 0.0
      %368 = vmatpush1.msra.mxu0 0.0
      %369 = vmatprep.subr.mxu0 0.0
      %370 = vmatpush1.msra.mxu0 0.0
      %371 = vmatprep.subr.mxu0 0.0
      %372 = vmatpush1.msra.mxu0 0.0
      %373 = vmatprep.subr.mxu0 0.0
      %374 = vmatpush1.msra.mxu0 0.0
      %375 = vmatprep.subr.mxu0 0.0
      %376 = vmatpush1.msra.mxu0 0.0
      %377 = vmatprep.subr.mxu0 0.0
      %378 = vmatpush1.msra.mxu0 0.0
      %379 = vmatprep.subr.mxu0 0.0
      %380 = vmatpush1.msra.mxu0 %v267
      %381 = vmatprep.subr.mxu0 0.0
      %382 = vmatpush1.msra.mxu0 %v266
      %383 = vmatprep.subr.mxu0 0.0
      %384 = vmatpush1.msra.mxu0 %v265
      %385 = vmatprep.subr.mxu0 0.0
      %386 = vmatpush1.msra.mxu0 %v264
      %387 = vmatprep.subr.mxu0 0.0
      %388 = vmatpush2.msra.mxu0 0.0
      %389 = vmatprep.subr.mxu0 0.0
      %390 = vmatpush2.msra.mxu0 0.0
      %391 = vmatprep.subr.mxu0 0.0
      %392 = vmatpush2.msra.mxu0 0.0
      %393 = vmatprep.subr.mxu0 0.0
      %394 = vmatpush2.msra.mxu0 0.0
      %395 = vmatprep.subr.mxu0 0.0
      %396 = vmatpush2.msra.mxu0 0.0
      %397 = vmatprep.subr.mxu0 0.0
      %398 = vmatpush2.msra.mxu0 0.0
      %399 = vmatprep.subr.mxu0 0.0
      %400 = vmatpush2.msra.mxu0 0.0
      %401 = vmatprep.subr.mxu0 0.0
      %402 = vmatpush2.msra.mxu0 0.0
      %403 = vmatprep.subr.mxu0 0.0
      %404 = vmatpush2.msra.mxu0 0.0
      %405 = vmatprep.subr.mxu0 0.0
      %406 = vmatpush2.msra.mxu0 0.0
      %407 = vmatprep.subr.mxu0 0.0
      %408 = vmatpush2.msra.mxu0 0.0
      %409 = vmatprep.subr.mxu0 0.0
      %410 = vmatpush2.msra.mxu0 0.0
      %411 = vmatprep.subr.mxu0 0.0
      %412 = vmatpush2.msra.mxu0 0.0
      %413 = vmatprep.subr.mxu0 0.0
      %414 = vmatpush2.msra.mxu0 0.0
      %415 = vmatprep.subr.mxu0 0.0
      %416 = vmatpush2.msra.mxu0 0.0
      %417 = vmatprep.subr.mxu0 0.0
      %418 = vmatpush2.msra.mxu0 0.0
      %419 = vmatprep.mubr.f32.mxu0 0.0
      %420 = vmatmul.mubr.f32.gmra.mxu0 %v283
      %v421 = vpop.f32.mrf.mxu0
      %v422 = vadd.f32 0.0, %v421
      %v423 = vpop.f32.mrf.mxu0
      %424 = vdwg.mxu0
      %v425 = vld [vmem:[%s237] sm:$0xff]
      %v426 = vadd.f32 %v425, %v352
      %v427 = vxor.u32 %v426, 2147483648
      %v428 = vmul.f32 %v427, 1.442695
      %v429 = vpow.pop %v428
      %v430 = vadd.f32 %v429, 1.0
      %v431 = vrcp.pop %v430
      %v432 = vmul.f32 1.0, %v431
      %s433 = scalar_lea.vmem %s237, 8
      %v434 = vld [vmem:[%s433] sm:$0xff]
      %v435 = vadd.f32 %v434, %v422
      %v436 = vxor.u32 %v435, 2147483648
      %v437 = vmul.f32 %v436, 1.442695
      %v438 = vpow.pop %v437
      %v439 = vadd.f32 %v438, 1.0
      %v440 = vrcp.pop %v439
      %v441 = vmul.f32 1.0, %v440
      %s442 = scalar_lea.vmem %s237, 16
      %v443 = vld [vmem:[%s442] sm:$0xff]
      %444 = vmatprep.subr.mxu0 0.0
      %445 = vmatpush1.msra.mxu0 0.0
      %446 = vmatprep.subr.mxu0 0.0
      %447 = vmatpush1.msra.mxu0 0.0
      %448 = vmatprep.subr.mxu0 0.0
      %449 = vmatpush1.msra.mxu0 0.0
      %450 = vmatprep.subr.mxu0 0.0
      %451 = vmatpush1.msra.mxu0 0.0
      %452 = vmatprep.subr.mxu0 0.0
      %453 = vmatpush1.msra.mxu0 0.0
      %454 = vmatprep.subr.mxu0 0.0
      %455 = vmatpush1.msra.mxu0 0.0
      %456 = vmatprep.subr.mxu0 0.0
      %457 = vmatpush1.msra.mxu0 0.0
      %458 = vmatprep.subr.mxu0 0.0
      %459 = vmatpush1.msra.mxu0 0.0
      %460 = vmatprep.subr.mxu0 0.0
      %461 = vmatpush1.msra.mxu0 0.0
      %462 = vmatprep.subr.mxu0 0.0
      %463 = vmatpush1.msra.mxu0 0.0
      %464 = vmatprep.subr.mxu0 0.0
      %465 = vmatpush1.msra.mxu0 0.0
      %466 = vmatprep.subr.mxu0 0.0
      %467 = vmatpush1.msra.mxu0 0.0
      %468 = vmatprep.subr.mxu0 0.0
      %469 = vmatpush1.msra.mxu0 %v272
      %470 = vmatprep.subr.mxu0 0.0
      %471 = vmatpush1.msra.mxu0 %v271
      %472 = vmatprep.subr.mxu0 0.0
      %473 = vmatpush1.msra.mxu0 %v270
      %474 = vmatprep.subr.mxu0 0.0
      %475 = vmatpush1.msra.mxu0 %v269
      %476 = vmatprep.subr.mxu0 0.0
      %477 = vmatpush2.msra.mxu0 0.0
      %478 = vmatprep.subr.mxu0 0.0
      %479 = vmatpush2.msra.mxu0 0.0
      %480 = vmatprep.subr.mxu0 0.0
      %481 = vmatpush2.msra.mxu0 0.0
      %482 = vmatprep.subr.mxu0 0.0
      %483 = vmatpush2.msra.mxu0 0.0
      %484 = vmatprep.subr.mxu0 0.0
      %485 = vmatpush2.msra.mxu0 0.0
      %486 = vmatprep.subr.mxu0 0.0
      %487 = vmatpush2.msra.mxu0 0.0
      %488 = vmatprep.subr.mxu0 0.0
      %489 = vmatpush2.msra.mxu0 0.0
      %490 = vmatprep.subr.mxu0 0.0
      %491 = vmatpush2.msra.mxu0 0.0
      %492 = vmatprep.subr.mxu0 0.0
      %493 = vmatpush2.msra.mxu0 0.0
      %494 = vmatprep.subr.mxu0 0.0
      %495 = vmatpush2.msra.mxu0 0.0
      %496 = vmatprep.subr.mxu0 0.0
      %497 = vmatpush2.msra.mxu0 0.0
      %498 = vmatprep.subr.mxu0 0.0
      %499 = vmatpush2.msra.mxu0 0.0
      %500 = vmatprep.subr.mxu0 0.0
      %501 = vmatpush2.msra.mxu0 0.0
      %502 = vmatprep.subr.mxu0 0.0
      %503 = vmatpush2.msra.mxu0 0.0
      %504 = vmatprep.subr.mxu0 0.0
      %505 = vmatpush2.msra.mxu0 0.0
      %506 = vmatprep.subr.mxu0 0.0
      %507 = vmatpush2.msra.mxu0 0.0
      %508 = vmatprep.mubr.f32.mxu0 0.0
      %509 = vmatmul.mubr.f32.gmra.mxu0 %v283
      %v510 = vpop.f32.mrf.mxu0
      %v511 = vadd.f32 %v278, %v510
      %v512 = vpop.f32.mrf.mxu0
      %513 = vdwg.mxu0
      %v514 = vmul.f32 %v432, %v511
      %v515 = vadd.f32 %v443, %v514
      %v516 = vtanh.pop %v515
      %v517 = vsub.f32 %v280, %v516
      %v518 = vmul.f32 %v441, %v517
      %v519 = vadd.f32 %v516, %v518
      %520 = vst.msk [vmem:[%s250] sm:$0xff] %vm281, %v519
      %v522 = vsel %vm281, %v519, 0
      %524 = vmatprep.subr.mxu0 0.0
      %525 = vmatpush1.msra.mxu0 0.0
      %526 = vmatprep.subr.mxu0 0.0
      %527 = vmatpush1.msra.mxu0 0.0
      %528 = vmatprep.subr.mxu0 0.0
      %529 = vmatpush1.msra.mxu0 0.0
      %530 = vmatprep.subr.mxu0 0.0
      %531 = vmatpush1.msra.mxu0 0.0
      %532 = vmatprep.subr.mxu0 0.0
      %533 = vmatpush1.msra.mxu0 0.0
      %534 = vmatprep.subr.mxu0 0.0
      %535 = vmatpush1.msra.mxu0 0.0
      %536 = vmatprep.subr.mxu0 0.0
      %537 = vmatpush1.msra.mxu0 0.0
      %538 = vmatprep.subr.mxu0 0.0
      %539 = vmatpush1.msra.mxu0 0.0
      %540 = vmatprep.subr.mxu0 0.0
      %541 = vmatpush1.msra.mxu0 0.0
      %542 = vmatprep.subr.mxu0 0.0
      %543 = vmatpush1.msra.mxu0 0.0
      %544 = vmatprep.subr.mxu0 0.0
      %545 = vmatpush1.msra.mxu0 0.0
      %546 = vmatprep.subr.mxu0 0.0
      %547 = vmatpush1.msra.mxu0 0.0
      %548 = vmatprep.subr.mxu0 0.0
      %549 = vmatpush1.msra.mxu0 %v262
      %550 = vmatprep.subr.mxu0 0.0
      %551 = vmatpush1.msra.mxu0 %v261
      %552 = vmatprep.subr.mxu0 0.0
      %553 = vmatpush1.msra.mxu0 %v260
      %554 = vmatprep.subr.mxu0 0.0
      %555 = vmatpush1.msra.mxu0 %v259
      %556 = vmatprep.subr.mxu0 0.0
      %557 = vmatpush2.msra.mxu0 0.0
      %558 = vmatprep.subr.mxu0 0.0
      %559 = vmatpush2.msra.mxu0 0.0
      %560 = vmatprep.subr.mxu0 0.0
      %561 = vmatpush2.msra.mxu0 0.0
      %562 = vmatprep.subr.mxu0 0.0
      %563 = vmatpush2.msra.mxu0 0.0
      %564 = vmatprep.subr.mxu0 0.0
      %565 = vmatpush2.msra.mxu0 0.0
      %566 = vmatprep.subr.mxu0 0.0
      %567 = vmatpush2.msra.mxu0 0.0
      %568 = vmatprep.subr.mxu0 0.0
      %569 = vmatpush2.msra.mxu0 0.0
      %570 = vmatprep.subr.mxu0 0.0
      %571 = vmatpush2.msra.mxu0 0.0
      %572 = vmatprep.subr.mxu0 0.0
      %573 = vmatpush2.msra.mxu0 0.0
      %574 = vmatprep.subr.mxu0 0.0
      %575 = vmatpush2.msra.mxu0 0.0
      %576 = vmatprep.subr.mxu0 0.0
      %577 = vmatpush2.msra.mxu0 0.0
      %578 = vmatprep.subr.mxu0 0.0
      %579 = vmatpush2.msra.mxu0 0.0
      %580 = vmatprep.subr.mxu0 0.0
      %581 = vmatpush2.msra.mxu0 0.0
      %582 = vmatprep.subr.mxu0 0.0
      %583 = vmatpush2.msra.mxu0 0.0
      %584 = vmatprep.subr.mxu0 0.0
      %585 = vmatpush2.msra.mxu0 0.0
      %586 = vmatprep.subr.mxu0 0.0
      %587 = vmatpush2.msra.mxu0 0.0
      %588 = vmatprep.mubr.f32.mxu0 0.0
      %589 = vmatmul.mubr.f32.gmra.mxu0 %v522
      %v590 = vpop.f32.mrf.mxu0
      %v591 = vadd.f32 0.0, %v590
      %v592 = vpop.f32.mrf.mxu0
      %593 = vdwg.mxu0
      %594 = vmatprep.subr.mxu0 0.0
      %595 = vmatpush1.msra.mxu0 0.0
      %596 = vmatprep.subr.mxu0 0.0
      %597 = vmatpush1.msra.mxu0 0.0
      %598 = vmatprep.subr.mxu0 0.0
      %599 = vmatpush1.msra.mxu0 0.0
      %600 = vmatprep.subr.mxu0 0.0
      %601 = vmatpush1.msra.mxu0 0.0
      %602 = vmatprep.subr.mxu0 0.0
      %603 = vmatpush1.msra.mxu0 0.0
      %604 = vmatprep.subr.mxu0 0.0
      %605 = vmatpush1.msra.mxu0 0.0
      %606 = vmatprep.subr.mxu0 0.0
      %607 = vmatpush1.msra.mxu0 0.0
      %608 = vmatprep.subr.mxu0 0.0
      %609 = vmatpush1.msra.mxu0 0.0
      %610 = vmatprep.subr.mxu0 0.0
      %611 = vmatpush1.msra.mxu0 0.0
      %612 = vmatprep.subr.mxu0 0.0
      %613 = vmatpush1.msra.mxu0 0.0
      %614 = vmatprep.subr.mxu0 0.0
      %615 = vmatpush1.msra.mxu0 0.0
      %616 = vmatprep.subr.mxu0 0.0
      %617 = vmatpush1.msra.mxu0 0.0
      %618 = vmatprep.subr.mxu0 0.0
      %619 = vmatpush1.msra.mxu0 %v267
      %620 = vmatprep.subr.mxu0 0.0
      %621 = vmatpush1.msra.mxu0 %v266
      %622 = vmatprep.subr.mxu0 0.0
      %623 = vmatpush1.msra.mxu0 %v265
      %624 = vmatprep.subr.mxu0 0.0
      %625 = vmatpush1.msra.mxu0 %v264
      %626 = vmatprep.subr.mxu0 0.0
      %627 = vmatpush2.msra.mxu0 0.0
      %628 = vmatprep.subr.mxu0 0.0
      %629 = vmatpush2.msra.mxu0 0.0
      %630 = vmatprep.subr.mxu0 0.0
      %631 = vmatpush2.msra.mxu0 0.0
      %632 = vmatprep.subr.mxu0 0.0
      %633 = vmatpush2.msra.mxu0 0.0
      %634 = vmatprep.subr.mxu0 0.0
      %635 = vmatpush2.msra.mxu0 0.0
      %636 = vmatprep.subr.mxu0 0.0
      %637 = vmatpush2.msra.mxu0 0.0
      %638 = vmatprep.subr.mxu0 0.0
      %639 = vmatpush2.msra.mxu0 0.0
      %640 = vmatprep.subr.mxu0 0.0
      %641 = vmatpush2.msra.mxu0 0.0
      %642 = vmatprep.subr.mxu0 0.0
      %643 = vmatpush2.msra.mxu0 0.0
      %644 = vmatprep.subr.mxu0 0.0
      %645 = vmatpush2.msra.mxu0 0.0
      %646 = vmatprep.subr.mxu0 0.0
      %647 = vmatpush2.msra.mxu0 0.0
      %648 = vmatprep.subr.mxu0 0.0
      %649 = vmatpush2.msra.mxu0 0.0
      %650 = vmatprep.subr.mxu0 0.0
      %651 = vmatpush2.msra.mxu0 0.0
      %652 = vmatprep.subr.mxu0 0.0
      %653 = vmatpush2.msra.mxu0 0.0
      %654 = vmatprep.subr.mxu0 0.0
      %655 = vmatpush2.msra.mxu0 0.0
      %656 = vmatprep.subr.mxu0 0.0
      %657 = vmatpush2.msra.mxu0 0.0
      %658 = vmatprep.mubr.f32.mxu0 0.0
      %659 = vmatmul.mubr.f32.gmra.mxu0 %v522
      %v660 = vpop.f32.mrf.mxu0
      %v661 = vadd.f32 0.0, %v660
      %v662 = vpop.f32.mrf.mxu0
      %663 = vdwg.mxu0
      %s664 = scalar_lea.vmem %s237, 24
      %v665 = vld [vmem:[%s664] sm:$0xff]
      %v666 = vadd.f32 %v665, %v591
      %v667 = vxor.u32 %v666, 2147483648
      %v668 = vmul.f32 %v667, 1.442695
      %v669 = vpow.pop %v668
      %v670 = vadd.f32 %v669, 1.0
      %v671 = vrcp.pop %v670
      %v672 = vmul.f32 1.0, %v671
      %s673 = scalar_lea.vmem %s237, 32
      %v674 = vld [vmem:[%s673] sm:$0xff]
      %v675 = vadd.f32 %v674, %v661
      %v676 = vxor.u32 %v675, 2147483648
      %v677 = vmul.f32 %v676, 1.442695
      %v678 = vpow.pop %v677
      %v679 = vadd.f32 %v678, 1.0
      %v680 = vrcp.pop %v679
      %v681 = vmul.f32 1.0, %v680
      %s682 = scalar_lea.vmem %s237, 40
      %v683 = vld [vmem:[%s682] sm:$0xff]
      %684 = vmatprep.subr.mxu0 0.0
      %685 = vmatpush1.msra.mxu0 0.0
      %686 = vmatprep.subr.mxu0 0.0
      %687 = vmatpush1.msra.mxu0 0.0
      %688 = vmatprep.subr.mxu0 0.0
      %689 = vmatpush1.msra.mxu0 0.0
      %690 = vmatprep.subr.mxu0 0.0
      %691 = vmatpush1.msra.mxu0 0.0
      %692 = vmatprep.subr.mxu0 0.0
      %693 = vmatpush1.msra.mxu0 0.0
      %694 = vmatprep.subr.mxu0 0.0
      %695 = vmatpush1.msra.mxu0 0.0
      %696 = vmatprep.subr.mxu0 0.0
      %697 = vmatpush1.msra.mxu0 0.0
      %698 = vmatprep.subr.mxu0 0.0
      %699 = vmatpush1.msra.mxu0 0.0
      %700 = vmatprep.subr.mxu0 0.0
      %701 = vmatpush1.msra.mxu0 0.0
      %702 = vmatprep.subr.mxu0 0.0
      %703 = vmatpush1.msra.mxu0 0.0
      %704 = vmatprep.subr.mxu0 0.0
      %705 = vmatpush1.msra.mxu0 0.0
      %706 = vmatprep.subr.mxu0 0.0
      %707 = vmatpush1.msra.mxu0 0.0
      %708 = vmatprep.subr.mxu0 0.0
      %709 = vmatpush1.msra.mxu0 %v272
      %710 = vmatprep.subr.mxu0 0.0
      %711 = vmatpush1.msra.mxu0 %v271
      %712 = vmatprep.subr.mxu0 0.0
      %713 = vmatpush1.msra.mxu0 %v270
      %714 = vmatprep.subr.mxu0 0.0
      %715 = vmatpush1.msra.mxu0 %v269
      %716 = vmatprep.subr.mxu0 0.0
      %717 = vmatpush2.msra.mxu0 0.0
      %718 = vmatprep.subr.mxu0 0.0
      %719 = vmatpush2.msra.mxu0 0.0
      %720 = vmatprep.subr.mxu0 0.0
      %721 = vmatpush2.msra.mxu0 0.0
      %722 = vmatprep.subr.mxu0 0.0
      %723 = vmatpush2.msra.mxu0 0.0
      %724 = vmatprep.subr.mxu0 0.0
      %725 = vmatpush2.msra.mxu0 0.0
      %726 = vmatprep.subr.mxu0 0.0
      %727 = vmatpush2.msra.mxu0 0.0
      %728 = vmatprep.subr.mxu0 0.0
      %729 = vmatpush2.msra.mxu0 0.0
      %730 = vmatprep.subr.mxu0 0.0
      %731 = vmatpush2.msra.mxu0 0.0
      %732 = vmatprep.subr.mxu0 0.0
      %733 = vmatpush2.msra.mxu0 0.0
      %734 = vmatprep.subr.mxu0 0.0
      %735 = vmatpush2.msra.mxu0 0.0
      %736 = vmatprep.subr.mxu0 0.0
      %737 = vmatpush2.msra.mxu0 0.0
      %738 = vmatprep.subr.mxu0 0.0
      %739 = vmatpush2.msra.mxu0 0.0
      %740 = vmatprep.subr.mxu0 0.0
      %741 = vmatpush2.msra.mxu0 0.0
      %742 = vmatprep.subr.mxu0 0.0
      %743 = vmatpush2.msra.mxu0 0.0
      %744 = vmatprep.subr.mxu0 0.0
      %745 = vmatpush2.msra.mxu0 0.0
      %746 = vmatprep.subr.mxu0 0.0
      %747 = vmatpush2.msra.mxu0 0.0
      %748 = vmatprep.mubr.f32.mxu0 0.0
      %749 = vmatmul.mubr.f32.gmra.mxu0 %v522
      %v750 = vpop.f32.mrf.mxu0
      %v751 = vadd.f32 %v278, %v750
      %v752 = vpop.f32.mrf.mxu0
      %753 = vdwg.mxu0
      %v754 = vmul.f32 %v672, %v751
      %v755 = vadd.f32 %v683, %v754
      %v756 = vtanh.pop %v755
      %v757 = vsub.f32 %v519, %v756
      %v758 = vmul.f32 %v681, %v757
      %v759 = vadd.f32 %v756, %v758
      %s760 = scalar_lea.vmem %s250, 8
      %761 = vst.msk [vmem:[%s760] sm:$0xff] %vm281, %v759
      %v763 = vsel %vm281, %v759, 0
      %765 = vmatprep.subr.mxu0 0.0
      %766 = vmatpush1.msra.mxu0 0.0
      %767 = vmatprep.subr.mxu0 0.0
      %768 = vmatpush1.msra.mxu0 0.0
      %769 = vmatprep.subr.mxu0 0.0
      %770 = vmatpush1.msra.mxu0 0.0
      %771 = vmatprep.subr.mxu0 0.0
      %772 = vmatpush1.msra.mxu0 0.0
      %773 = vmatprep.subr.mxu0 0.0
      %774 = vmatpush1.msra.mxu0 0.0
      %775 = vmatprep.subr.mxu0 0.0
      %776 = vmatpush1.msra.mxu0 0.0
      %777 = vmatprep.subr.mxu0 0.0
      %778 = vmatpush1.msra.mxu0 0.0
      %779 = vmatprep.subr.mxu0 0.0
      %780 = vmatpush1.msra.mxu0 0.0
      %781 = vmatprep.subr.mxu0 0.0
      %782 = vmatpush1.msra.mxu0 0.0
      %783 = vmatprep.subr.mxu0 0.0
      %784 = vmatpush1.msra.mxu0 0.0
      %785 = vmatprep.subr.mxu0 0.0
      %786 = vmatpush1.msra.mxu0 0.0
      %787 = vmatprep.subr.mxu0 0.0
      %788 = vmatpush1.msra.mxu0 0.0
      %789 = vmatprep.subr.mxu0 0.0
      %790 = vmatpush1.msra.mxu0 %v262
      %791 = vmatprep.subr.mxu0 0.0
      %792 = vmatpush1.msra.mxu0 %v261
      %793 = vmatprep.subr.mxu0 0.0
      %794 = vmatpush1.msra.mxu0 %v260
      %795 = vmatprep.subr.mxu0 0.0
      %796 = vmatpush1.msra.mxu0 %v259
      %797 = vmatprep.subr.mxu0 0.0
      %798 = vmatpush2.msra.mxu0 0.0
      %799 = vmatprep.subr.mxu0 0.0
      %800 = vmatpush2.msra.mxu0 0.0
      %801 = vmatprep.subr.mxu0 0.0
      %802 = vmatpush2.msra.mxu0 0.0
      %803 = vmatprep.subr.mxu0 0.0
      %804 = vmatpush2.msra.mxu0 0.0
      %805 = vmatprep.subr.mxu0 0.0
      %806 = vmatpush2.msra.mxu0 0.0
      %807 = vmatprep.subr.mxu0 0.0
      %808 = vmatpush2.msra.mxu0 0.0
      %809 = vmatprep.subr.mxu0 0.0
      %810 = vmatpush2.msra.mxu0 0.0
      %811 = vmatprep.subr.mxu0 0.0
      %812 = vmatpush2.msra.mxu0 0.0
      %813 = vmatprep.subr.mxu0 0.0
      %814 = vmatpush2.msra.mxu0 0.0
      %815 = vmatprep.subr.mxu0 0.0
      %816 = vmatpush2.msra.mxu0 0.0
      %817 = vmatprep.subr.mxu0 0.0
      %818 = vmatpush2.msra.mxu0 0.0
      %819 = vmatprep.subr.mxu0 0.0
      %820 = vmatpush2.msra.mxu0 0.0
      %821 = vmatprep.subr.mxu0 0.0
      %822 = vmatpush2.msra.mxu0 0.0
      %823 = vmatprep.subr.mxu0 0.0
      %824 = vmatpush2.msra.mxu0 0.0
      %825 = vmatprep.subr.mxu0 0.0
      %826 = vmatpush2.msra.mxu0 0.0
      %827 = vmatprep.subr.mxu0 0.0
      %828 = vmatpush2.msra.mxu0 0.0
      %829 = vmatprep.mubr.f32.mxu0 0.0
      %830 = vmatmul.mubr.f32.gmra.mxu0 %v763
      %v831 = vpop.f32.mrf.mxu0
      %v832 = vadd.f32 0.0, %v831
      %v833 = vpop.f32.mrf.mxu0
      %834 = vdwg.mxu0
      %835 = vmatprep.subr.mxu0 0.0
      %836 = vmatpush1.msra.mxu0 0.0
      %837 = vmatprep.subr.mxu0 0.0
      %838 = vmatpush1.msra.mxu0 0.0
      %839 = vmatprep.subr.mxu0 0.0
      %840 = vmatpush1.msra.mxu0 0.0
      %841 = vmatprep.subr.mxu0 0.0
      %842 = vmatpush1.msra.mxu0 0.0
      %843 = vmatprep.subr.mxu0 0.0
      %844 = vmatpush1.msra.mxu0 0.0
      %845 = vmatprep.subr.mxu0 0.0
      %846 = vmatpush1.msra.mxu0 0.0
      %847 = vmatprep.subr.mxu0 0.0
      %848 = vmatpush1.msra.mxu0 0.0
      %849 = vmatprep.subr.mxu0 0.0
      %850 = vmatpush1.msra.mxu0 0.0
      %851 = vmatprep.subr.mxu0 0.0
      %852 = vmatpush1.msra.mxu0 0.0
      %853 = vmatprep.subr.mxu0 0.0
      %854 = vmatpush1.msra.mxu0 0.0
      %855 = vmatprep.subr.mxu0 0.0
      %856 = vmatpush1.msra.mxu0 0.0
      %857 = vmatprep.subr.mxu0 0.0
      %858 = vmatpush1.msra.mxu0 0.0
      %859 = vmatprep.subr.mxu0 0.0
      %860 = vmatpush1.msra.mxu0 %v267
      %861 = vmatprep.subr.mxu0 0.0
      %862 = vmatpush1.msra.mxu0 %v266
      %863 = vmatprep.subr.mxu0 0.0
      %864 = vmatpush1.msra.mxu0 %v265
      %865 = vmatprep.subr.mxu0 0.0
      %866 = vmatpush1.msra.mxu0 %v264
      %867 = vmatprep.subr.mxu0 0.0
      %868 = vmatpush2.msra.mxu0 0.0
      %869 = vmatprep.subr.mxu0 0.0
      %870 = vmatpush2.msra.mxu0 0.0
      %871 = vmatprep.subr.mxu0 0.0
      %872 = vmatpush2.msra.mxu0 0.0
      %873 = vmatprep.subr.mxu0 0.0
      %874 = vmatpush2.msra.mxu0 0.0
      %875 = vmatprep.subr.mxu0 0.0
      %876 = vmatpush2.msra.mxu0 0.0
      %877 = vmatprep.subr.mxu0 0.0
      %878 = vmatpush2.msra.mxu0 0.0
      %879 = vmatprep.subr.mxu0 0.0
      %880 = vmatpush2.msra.mxu0 0.0
      %881 = vmatprep.subr.mxu0 0.0
      %882 = vmatpush2.msra.mxu0 0.0
      %883 = vmatprep.subr.mxu0 0.0
      %884 = vmatpush2.msra.mxu0 0.0
      %885 = vmatprep.subr.mxu0 0.0
      %886 = vmatpush2.msra.mxu0 0.0
      %887 = vmatprep.subr.mxu0 0.0
      %888 = vmatpush2.msra.mxu0 0.0
      %889 = vmatprep.subr.mxu0 0.0
      %890 = vmatpush2.msra.mxu0 0.0
      %891 = vmatprep.subr.mxu0 0.0
      %892 = vmatpush2.msra.mxu0 0.0
      %893 = vmatprep.subr.mxu0 0.0
      %894 = vmatpush2.msra.mxu0 0.0
      %895 = vmatprep.subr.mxu0 0.0
      %896 = vmatpush2.msra.mxu0 0.0
      %897 = vmatprep.subr.mxu0 0.0
      %898 = vmatpush2.msra.mxu0 0.0
      %899 = vmatprep.mubr.f32.mxu0 0.0
      %900 = vmatmul.mubr.f32.gmra.mxu0 %v763
      %v901 = vpop.f32.mrf.mxu0
      %v902 = vadd.f32 0.0, %v901
      %v903 = vpop.f32.mrf.mxu0
      %904 = vdwg.mxu0
      %s905 = scalar_lea.vmem %s237, 48
      %v906 = vld [vmem:[%s905] sm:$0xff]
      %v907 = vadd.f32 %v906, %v832
      %v908 = vxor.u32 %v907, 2147483648
      %v909 = vmul.f32 %v908, 1.442695
      %v910 = vpow.pop %v909
      %v911 = vadd.f32 %v910, 1.0
      %v912 = vrcp.pop %v911
      %v913 = vmul.f32 1.0, %v912
      %s914 = scalar_lea.vmem %s237, 56
      %v915 = vld [vmem:[%s914] sm:$0xff]
      %v916 = vadd.f32 %v915, %v902
      %v917 = vxor.u32 %v916, 2147483648
      %v918 = vmul.f32 %v917, 1.442695
      %v919 = vpow.pop %v918
      %v920 = vadd.f32 %v919, 1.0
      %v921 = vrcp.pop %v920
      %v922 = vmul.f32 1.0, %v921
      %s923 = scalar_lea.vmem %s237, 64
      %v924 = vld [vmem:[%s923] sm:$0xff]
      %925 = vmatprep.subr.mxu0 0.0
      %926 = vmatpush1.msra.mxu0 0.0
      %927 = vmatprep.subr.mxu0 0.0
      %928 = vmatpush1.msra.mxu0 0.0
      %929 = vmatprep.subr.mxu0 0.0
      %930 = vmatpush1.msra.mxu0 0.0
      %931 = vmatprep.subr.mxu0 0.0
      %932 = vmatpush1.msra.mxu0 0.0
      %933 = vmatprep.subr.mxu0 0.0
      %934 = vmatpush1.msra.mxu0 0.0
      %935 = vmatprep.subr.mxu0 0.0
      %936 = vmatpush1.msra.mxu0 0.0
      %937 = vmatprep.subr.mxu0 0.0
      %938 = vmatpush1.msra.mxu0 0.0
      %939 = vmatprep.subr.mxu0 0.0
      %940 = vmatpush1.msra.mxu0 0.0
      %941 = vmatprep.subr.mxu0 0.0
      %942 = vmatpush1.msra.mxu0 0.0
      %943 = vmatprep.subr.mxu0 0.0
      %944 = vmatpush1.msra.mxu0 0.0
      %945 = vmatprep.subr.mxu0 0.0
      %946 = vmatpush1.msra.mxu0 0.0
      %947 = vmatprep.subr.mxu0 0.0
      %948 = vmatpush1.msra.mxu0 0.0
      %949 = vmatprep.subr.mxu0 0.0
      %950 = vmatpush1.msra.mxu0 %v272
      %951 = vmatprep.subr.mxu0 0.0
      %952 = vmatpush1.msra.mxu0 %v271
      %953 = vmatprep.subr.mxu0 0.0
      %954 = vmatpush1.msra.mxu0 %v270
      %955 = vmatprep.subr.mxu0 0.0
      %956 = vmatpush1.msra.mxu0 %v269
      %957 = vmatprep.subr.mxu0 0.0
      %958 = vmatpush2.msra.mxu0 0.0
      %959 = vmatprep.subr.mxu0 0.0
      %960 = vmatpush2.msra.mxu0 0.0
      %961 = vmatprep.subr.mxu0 0.0
      %962 = vmatpush2.msra.mxu0 0.0
      %963 = vmatprep.subr.mxu0 0.0
      %964 = vmatpush2.msra.mxu0 0.0
      %965 = vmatprep.subr.mxu0 0.0
      %966 = vmatpush2.msra.mxu0 0.0
      %967 = vmatprep.subr.mxu0 0.0
      %968 = vmatpush2.msra.mxu0 0.0
      %969 = vmatprep.subr.mxu0 0.0
      %970 = vmatpush2.msra.mxu0 0.0
      %971 = vmatprep.subr.mxu0 0.0
      %972 = vmatpush2.msra.mxu0 0.0
      %973 = vmatprep.subr.mxu0 0.0
      %974 = vmatpush2.msra.mxu0 0.0
      %975 = vmatprep.subr.mxu0 0.0
      %976 = vmatpush2.msra.mxu0 0.0
      %977 = vmatprep.subr.mxu0 0.0
      %978 = vmatpush2.msra.mxu0 0.0
      %979 = vmatprep.subr.mxu0 0.0
      %980 = vmatpush2.msra.mxu0 0.0
      %981 = vmatprep.subr.mxu0 0.0
      %982 = vmatpush2.msra.mxu0 0.0
      %983 = vmatprep.subr.mxu0 0.0
      %984 = vmatpush2.msra.mxu0 0.0
      %985 = vmatprep.subr.mxu0 0.0
      %986 = vmatpush2.msra.mxu0 0.0
      %987 = vmatprep.subr.mxu0 0.0
      %988 = vmatpush2.msra.mxu0 0.0
      %989 = vmatprep.mubr.f32.mxu0 0.0
      %990 = vmatmul.mubr.f32.gmra.mxu0 %v763
      %v991 = vpop.f32.mrf.mxu0
      %v992 = vadd.f32 %v278, %v991
      %v993 = vpop.f32.mrf.mxu0
      %994 = vdwg.mxu0
      %v995 = vmul.f32 %v913, %v992
      %v996 = vadd.f32 %v924, %v995
      %v997 = vtanh.pop %v996
      %v998 = vsub.f32 %v759, %v997
      %v999 = vmul.f32 %v922, %v998
      %v1000 = vadd.f32 %v997, %v999
      %s1001 = scalar_lea.vmem %s250, 16
      %1002 = vst.msk [vmem:[%s1001] sm:$0xff] %vm281, %v1000
      %v1004 = vsel %vm281, %v1000, 0
      %1006 = vmatprep.subr.mxu0 0.0
      %1007 = vmatpush1.msra.mxu0 0.0
      %1008 = vmatprep.subr.mxu0 0.0
      %1009 = vmatpush1.msra.mxu0 0.0
      %1010 = vmatprep.subr.mxu0 0.0
      %1011 = vmatpush1.msra.mxu0 0.0
      %1012 = vmatprep.subr.mxu0 0.0
      %1013 = vmatpush1.msra.mxu0 0.0
      %1014 = vmatprep.subr.mxu0 0.0
      %1015 = vmatpush1.msra.mxu0 0.0
      %1016 = vmatprep.subr.mxu0 0.0
      %1017 = vmatpush1.msra.mxu0 0.0
      %1018 = vmatprep.subr.mxu0 0.0
      %1019 = vmatpush1.msra.mxu0 0.0
      %1020 = vmatprep.subr.mxu0 0.0
      %1021 = vmatpush1.msra.mxu0 0.0
      %1022 = vmatprep.subr.mxu0 0.0
      %1023 = vmatpush1.msra.mxu0 0.0
      %1024 = vmatprep.subr.mxu0 0.0
      %1025 = vmatpush1.msra.mxu0 0.0
      %1026 = vmatprep.subr.mxu0 0.0
      %1027 = vmatpush1.msra.mxu0 0.0
      %1028 = vmatprep.subr.mxu0 0.0
      %1029 = vmatpush1.msra.mxu0 0.0
      %1030 = vmatprep.subr.mxu0 0.0
      %1031 = vmatpush1.msra.mxu0 %v262
      %1032 = vmatprep.subr.mxu0 0.0
      %1033 = vmatpush1.msra.mxu0 %v261
      %1034 = vmatprep.subr.mxu0 0.0
      %1035 = vmatpush1.msra.mxu0 %v260
      %1036 = vmatprep.subr.mxu0 0.0
      %1037 = vmatpush1.msra.mxu0 %v259
      %1038 = vmatprep.subr.mxu0 0.0
      %1039 = vmatpush2.msra.mxu0 0.0
      %1040 = vmatprep.subr.mxu0 0.0
      %1041 = vmatpush2.msra.mxu0 0.0
      %1042 = vmatprep.subr.mxu0 0.0
      %1043 = vmatpush2.msra.mxu0 0.0
      %1044 = vmatprep.subr.mxu0 0.0
      %1045 = vmatpush2.msra.mxu0 0.0
      %1046 = vmatprep.subr.mxu0 0.0
      %1047 = vmatpush2.msra.mxu0 0.0
      %1048 = vmatprep.subr.mxu0 0.0
      %1049 = vmatpush2.msra.mxu0 0.0
      %1050 = vmatprep.subr.mxu0 0.0
      %1051 = vmatpush2.msra.mxu0 0.0
      %1052 = vmatprep.subr.mxu0 0.0
      %1053 = vmatpush2.msra.mxu0 0.0
      %1054 = vmatprep.subr.mxu0 0.0
      %1055 = vmatpush2.msra.mxu0 0.0
      %1056 = vmatprep.subr.mxu0 0.0
      %1057 = vmatpush2.msra.mxu0 0.0
      %1058 = vmatprep.subr.mxu0 0.0
      %1059 = vmatpush2.msra.mxu0 0.0
      %1060 = vmatprep.subr.mxu0 0.0
      %1061 = vmatpush2.msra.mxu0 0.0
      %1062 = vmatprep.subr.mxu0 0.0
      %1063 = vmatpush2.msra.mxu0 0.0
      %1064 = vmatprep.subr.mxu0 0.0
      %1065 = vmatpush2.msra.mxu0 0.0
      %1066 = vmatprep.subr.mxu0 0.0
      %1067 = vmatpush2.msra.mxu0 0.0
      %1068 = vmatprep.subr.mxu0 0.0
      %1069 = vmatpush2.msra.mxu0 0.0
      %1070 = vmatprep.mubr.f32.mxu0 0.0
      %1071 = vmatmul.mubr.f32.gmra.mxu0 %v1004
      %v1072 = vpop.f32.mrf.mxu0
      %v1073 = vadd.f32 0.0, %v1072
      %v1074 = vpop.f32.mrf.mxu0
      %1075 = vdwg.mxu0
      %1076 = vmatprep.subr.mxu0 0.0
      %1077 = vmatpush1.msra.mxu0 0.0
      %1078 = vmatprep.subr.mxu0 0.0
      %1079 = vmatpush1.msra.mxu0 0.0
      %1080 = vmatprep.subr.mxu0 0.0
      %1081 = vmatpush1.msra.mxu0 0.0
      %1082 = vmatprep.subr.mxu0 0.0
      %1083 = vmatpush1.msra.mxu0 0.0
      %1084 = vmatprep.subr.mxu0 0.0
      %1085 = vmatpush1.msra.mxu0 0.0
      %1086 = vmatprep.subr.mxu0 0.0
      %1087 = vmatpush1.msra.mxu0 0.0
      %1088 = vmatprep.subr.mxu0 0.0
      %1089 = vmatpush1.msra.mxu0 0.0
      %1090 = vmatprep.subr.mxu0 0.0
      %1091 = vmatpush1.msra.mxu0 0.0
      %1092 = vmatprep.subr.mxu0 0.0
      %1093 = vmatpush1.msra.mxu0 0.0
      %1094 = vmatprep.subr.mxu0 0.0
      %1095 = vmatpush1.msra.mxu0 0.0
      %1096 = vmatprep.subr.mxu0 0.0
      %1097 = vmatpush1.msra.mxu0 0.0
      %1098 = vmatprep.subr.mxu0 0.0
      %1099 = vmatpush1.msra.mxu0 0.0
      %1100 = vmatprep.subr.mxu0 0.0
      %1101 = vmatpush1.msra.mxu0 %v267
      %1102 = vmatprep.subr.mxu0 0.0
      %1103 = vmatpush1.msra.mxu0 %v266
      %1104 = vmatprep.subr.mxu0 0.0
      %1105 = vmatpush1.msra.mxu0 %v265
      %1106 = vmatprep.subr.mxu0 0.0
      %1107 = vmatpush1.msra.mxu0 %v264
      %1108 = vmatprep.subr.mxu0 0.0
      %1109 = vmatpush2.msra.mxu0 0.0
      %1110 = vmatprep.subr.mxu0 0.0
      %1111 = vmatpush2.msra.mxu0 0.0
      %1112 = vmatprep.subr.mxu0 0.0
      %1113 = vmatpush2.msra.mxu0 0.0
      %1114 = vmatprep.subr.mxu0 0.0
      %1115 = vmatpush2.msra.mxu0 0.0
      %1116 = vmatprep.subr.mxu0 0.0
      %1117 = vmatpush2.msra.mxu0 0.0
      %1118 = vmatprep.subr.mxu0 0.0
      %1119 = vmatpush2.msra.mxu0 0.0
      %1120 = vmatprep.subr.mxu0 0.0
      %1121 = vmatpush2.msra.mxu0 0.0
      %1122 = vmatprep.subr.mxu0 0.0
      %1123 = vmatpush2.msra.mxu0 0.0
      %1124 = vmatprep.subr.mxu0 0.0
      %1125 = vmatpush2.msra.mxu0 0.0
      %1126 = vmatprep.subr.mxu0 0.0
      %1127 = vmatpush2.msra.mxu0 0.0
      %1128 = vmatprep.subr.mxu0 0.0
      %1129 = vmatpush2.msra.mxu0 0.0
      %1130 = vmatprep.subr.mxu0 0.0
      %1131 = vmatpush2.msra.mxu0 0.0
      %1132 = vmatprep.subr.mxu0 0.0
      %1133 = vmatpush2.msra.mxu0 0.0
      %1134 = vmatprep.subr.mxu0 0.0
      %1135 = vmatpush2.msra.mxu0 0.0
      %1136 = vmatprep.subr.mxu0 0.0
      %1137 = vmatpush2.msra.mxu0 0.0
      %1138 = vmatprep.subr.mxu0 0.0
      %1139 = vmatpush2.msra.mxu0 0.0
      %1140 = vmatprep.mubr.f32.mxu0 0.0
      %1141 = vmatmul.mubr.f32.gmra.mxu0 %v1004
      %v1142 = vpop.f32.mrf.mxu0
      %v1143 = vadd.f32 0.0, %v1142
      %v1144 = vpop.f32.mrf.mxu0
      %1145 = vdwg.mxu0
      %s1146 = scalar_lea.vmem %s237, 72
      %v1147 = vld [vmem:[%s1146] sm:$0xff]
      %v1148 = vadd.f32 %v1147, %v1073
      %v1149 = vxor.u32 %v1148, 2147483648
      %v1150 = vmul.f32 %v1149, 1.442695
      %v1151 = vpow.pop %v1150
      %v1152 = vadd.f32 %v1151, 1.0
      %v1153 = vrcp.pop %v1152
      %v1154 = vmul.f32 1.0, %v1153
      %s1155 = scalar_lea.vmem %s237, 80
      %v1156 = vld [vmem:[%s1155] sm:$0xff]
      %v1157 = vadd.f32 %v1156, %v1143
      %v1158 = vxor.u32 %v1157, 2147483648
      %v1159 = vmul.f32 %v1158, 1.442695
      %v1160 = vpow.pop %v1159
      %v1161 = vadd.f32 %v1160, 1.0
      %v1162 = vrcp.pop %v1161
      %v1163 = vmul.f32 1.0, %v1162
      %s1164 = scalar_lea.vmem %s237, 88
      %v1165 = vld [vmem:[%s1164] sm:$0xff]
      %1166 = vmatprep.subr.mxu0 0.0
      %1167 = vmatpush1.msra.mxu0 0.0
      %1168 = vmatprep.subr.mxu0 0.0
      %1169 = vmatpush1.msra.mxu0 0.0
      %1170 = vmatprep.subr.mxu0 0.0
      %1171 = vmatpush1.msra.mxu0 0.0
      %1172 = vmatprep.subr.mxu0 0.0
      %1173 = vmatpush1.msra.mxu0 0.0
      %1174 = vmatprep.subr.mxu0 0.0
      %1175 = vmatpush1.msra.mxu0 0.0
      %1176 = vmatprep.subr.mxu0 0.0
      %1177 = vmatpush1.msra.mxu0 0.0
      %1178 = vmatprep.subr.mxu0 0.0
      %1179 = vmatpush1.msra.mxu0 0.0
      %1180 = vmatprep.subr.mxu0 0.0
      %1181 = vmatpush1.msra.mxu0 0.0
      %1182 = vmatprep.subr.mxu0 0.0
      %1183 = vmatpush1.msra.mxu0 0.0
      %1184 = vmatprep.subr.mxu0 0.0
      %1185 = vmatpush1.msra.mxu0 0.0
      %1186 = vmatprep.subr.mxu0 0.0
      %1187 = vmatpush1.msra.mxu0 0.0
      %1188 = vmatprep.subr.mxu0 0.0
      %1189 = vmatpush1.msra.mxu0 0.0
      %1190 = vmatprep.subr.mxu0 0.0
      %1191 = vmatpush1.msra.mxu0 %v272
      %1192 = vmatprep.subr.mxu0 0.0
      %1193 = vmatpush1.msra.mxu0 %v271
      %1194 = vmatprep.subr.mxu0 0.0
      %1195 = vmatpush1.msra.mxu0 %v270
      %1196 = vmatprep.subr.mxu0 0.0
      %1197 = vmatpush1.msra.mxu0 %v269
      %1198 = vmatprep.subr.mxu0 0.0
      %1199 = vmatpush2.msra.mxu0 0.0
      %1200 = vmatprep.subr.mxu0 0.0
      %1201 = vmatpush2.msra.mxu0 0.0
      %1202 = vmatprep.subr.mxu0 0.0
      %1203 = vmatpush2.msra.mxu0 0.0
      %1204 = vmatprep.subr.mxu0 0.0
      %1205 = vmatpush2.msra.mxu0 0.0
      %1206 = vmatprep.subr.mxu0 0.0
      %1207 = vmatpush2.msra.mxu0 0.0
      %1208 = vmatprep.subr.mxu0 0.0
      %1209 = vmatpush2.msra.mxu0 0.0
      %1210 = vmatprep.subr.mxu0 0.0
      %1211 = vmatpush2.msra.mxu0 0.0
      %1212 = vmatprep.subr.mxu0 0.0
      %1213 = vmatpush2.msra.mxu0 0.0
      %1214 = vmatprep.subr.mxu0 0.0
      %1215 = vmatpush2.msra.mxu0 0.0
      %1216 = vmatprep.subr.mxu0 0.0
      %1217 = vmatpush2.msra.mxu0 0.0
      %1218 = vmatprep.subr.mxu0 0.0
      %1219 = vmatpush2.msra.mxu0 0.0
      %1220 = vmatprep.subr.mxu0 0.0
      %1221 = vmatpush2.msra.mxu0 0.0
      %1222 = vmatprep.subr.mxu0 0.0
      %1223 = vmatpush2.msra.mxu0 0.0
      %1224 = vmatprep.subr.mxu0 0.0
      %1225 = vmatpush2.msra.mxu0 0.0
      %1226 = vmatprep.subr.mxu0 0.0
      %1227 = vmatpush2.msra.mxu0 0.0
      %1228 = vmatprep.subr.mxu0 0.0
      %1229 = vmatpush2.msra.mxu0 0.0
      %1230 = vmatprep.mubr.f32.mxu0 0.0
      %1231 = vmatmul.mubr.f32.gmra.mxu0 %v1004
      %v1232 = vpop.f32.mrf.mxu0
      %v1233 = vadd.f32 %v278, %v1232
      %v1234 = vpop.f32.mrf.mxu0
      %1235 = vdwg.mxu0
      %v1236 = vmul.f32 %v1154, %v1233
      %v1237 = vadd.f32 %v1165, %v1236
      %v1238 = vtanh.pop %v1237
      %v1239 = vsub.f32 %v1000, %v1238
      %v1240 = vmul.f32 %v1163, %v1239
      %v1241 = vadd.f32 %v1238, %v1240
      %s1242 = scalar_lea.vmem %s250, 24
      %1243 = vst.msk [vmem:[%s1242] sm:$0xff] %vm281, %v1241
      %v1245 = vsel %vm281, %v1241, 0
      %1247 = vmatprep.subr.mxu0 0.0
      %1248 = vmatpush1.msra.mxu0 0.0
      %1249 = vmatprep.subr.mxu0 0.0
      %1250 = vmatpush1.msra.mxu0 0.0
      %1251 = vmatprep.subr.mxu0 0.0
      %1252 = vmatpush1.msra.mxu0 0.0
      %1253 = vmatprep.subr.mxu0 0.0
      %1254 = vmatpush1.msra.mxu0 0.0
      %1255 = vmatprep.subr.mxu0 0.0
      %1256 = vmatpush1.msra.mxu0 0.0
      %1257 = vmatprep.subr.mxu0 0.0
      %1258 = vmatpush1.msra.mxu0 0.0
      %1259 = vmatprep.subr.mxu0 0.0
      %1260 = vmatpush1.msra.mxu0 0.0
      %1261 = vmatprep.subr.mxu0 0.0
      %1262 = vmatpush1.msra.mxu0 0.0
      %1263 = vmatprep.subr.mxu0 0.0
      %1264 = vmatpush1.msra.mxu0 0.0
      %1265 = vmatprep.subr.mxu0 0.0
      %1266 = vmatpush1.msra.mxu0 0.0
      %1267 = vmatprep.subr.mxu0 0.0
      %1268 = vmatpush1.msra.mxu0 0.0
      %1269 = vmatprep.subr.mxu0 0.0
      %1270 = vmatpush1.msra.mxu0 0.0
      %1271 = vmatprep.subr.mxu0 0.0
      %1272 = vmatpush1.msra.mxu0 %v262
      %1273 = vmatprep.subr.mxu0 0.0
      %1274 = vmatpush1.msra.mxu0 %v261
      %1275 = vmatprep.subr.mxu0 0.0
      %1276 = vmatpush1.msra.mxu0 %v260
      %1277 = vmatprep.subr.mxu0 0.0
      %1278 = vmatpush1.msra.mxu0 %v259
      %1279 = vmatprep.subr.mxu0 0.0
      %1280 = vmatpush2.msra.mxu0 0.0
      %1281 = vmatprep.subr.mxu0 0.0
      %1282 = vmatpush2.msra.mxu0 0.0
      %1283 = vmatprep.subr.mxu0 0.0
      %1284 = vmatpush2.msra.mxu0 0.0
      %1285 = vmatprep.subr.mxu0 0.0
      %1286 = vmatpush2.msra.mxu0 0.0
      %1287 = vmatprep.subr.mxu0 0.0
      %1288 = vmatpush2.msra.mxu0 0.0
      %1289 = vmatprep.subr.mxu0 0.0
      %1290 = vmatpush2.msra.mxu0 0.0
      %1291 = vmatprep.subr.mxu0 0.0
      %1292 = vmatpush2.msra.mxu0 0.0
      %1293 = vmatprep.subr.mxu0 0.0
      %1294 = vmatpush2.msra.mxu0 0.0
      %1295 = vmatprep.subr.mxu0 0.0
      %1296 = vmatpush2.msra.mxu0 0.0
      %1297 = vmatprep.subr.mxu0 0.0
      %1298 = vmatpush2.msra.mxu0 0.0
      %1299 = vmatprep.subr.mxu0 0.0
      %1300 = vmatpush2.msra.mxu0 0.0
      %1301 = vmatprep.subr.mxu0 0.0
      %1302 = vmatpush2.msra.mxu0 0.0
      %1303 = vmatprep.subr.mxu0 0.0
      %1304 = vmatpush2.msra.mxu0 0.0
      %1305 = vmatprep.subr.mxu0 0.0
      %1306 = vmatpush2.msra.mxu0 0.0
      %1307 = vmatprep.subr.mxu0 0.0
      %1308 = vmatpush2.msra.mxu0 0.0
      %1309 = vmatprep.subr.mxu0 0.0
      %1310 = vmatpush2.msra.mxu0 0.0
      %1311 = vmatprep.mubr.f32.mxu0 0.0
      %1312 = vmatmul.mubr.f32.gmra.mxu0 %v1245
      %v1313 = vpop.f32.mrf.mxu0
      %v1314 = vadd.f32 0.0, %v1313
      %v1315 = vpop.f32.mrf.mxu0
      %1316 = vdwg.mxu0
      %1317 = vmatprep.subr.mxu0 0.0
      %1318 = vmatpush1.msra.mxu0 0.0
      %1319 = vmatprep.subr.mxu0 0.0
      %1320 = vmatpush1.msra.mxu0 0.0
      %1321 = vmatprep.subr.mxu0 0.0
      %1322 = vmatpush1.msra.mxu0 0.0
      %1323 = vmatprep.subr.mxu0 0.0
      %1324 = vmatpush1.msra.mxu0 0.0
      %1325 = vmatprep.subr.mxu0 0.0
      %1326 = vmatpush1.msra.mxu0 0.0
      %1327 = vmatprep.subr.mxu0 0.0
      %1328 = vmatpush1.msra.mxu0 0.0
      %1329 = vmatprep.subr.mxu0 0.0
      %1330 = vmatpush1.msra.mxu0 0.0
      %1331 = vmatprep.subr.mxu0 0.0
      %1332 = vmatpush1.msra.mxu0 0.0
      %1333 = vmatprep.subr.mxu0 0.0
      %1334 = vmatpush1.msra.mxu0 0.0
      %1335 = vmatprep.subr.mxu0 0.0
      %1336 = vmatpush1.msra.mxu0 0.0
      %1337 = vmatprep.subr.mxu0 0.0
      %1338 = vmatpush1.msra.mxu0 0.0
      %1339 = vmatprep.subr.mxu0 0.0
      %1340 = vmatpush1.msra.mxu0 0.0
      %1341 = vmatprep.subr.mxu0 0.0
      %1342 = vmatpush1.msra.mxu0 %v267
      %1343 = vmatprep.subr.mxu0 0.0
      %1344 = vmatpush1.msra.mxu0 %v266
      %1345 = vmatprep.subr.mxu0 0.0
      %1346 = vmatpush1.msra.mxu0 %v265
      %1347 = vmatprep.subr.mxu0 0.0
      %1348 = vmatpush1.msra.mxu0 %v264
      %1349 = vmatprep.subr.mxu0 0.0
      %1350 = vmatpush2.msra.mxu0 0.0
      %1351 = vmatprep.subr.mxu0 0.0
      %1352 = vmatpush2.msra.mxu0 0.0
      %1353 = vmatprep.subr.mxu0 0.0
      %1354 = vmatpush2.msra.mxu0 0.0
      %1355 = vmatprep.subr.mxu0 0.0
      %1356 = vmatpush2.msra.mxu0 0.0
      %1357 = vmatprep.subr.mxu0 0.0
      %1358 = vmatpush2.msra.mxu0 0.0
      %1359 = vmatprep.subr.mxu0 0.0
      %1360 = vmatpush2.msra.mxu0 0.0
      %1361 = vmatprep.subr.mxu0 0.0
      %1362 = vmatpush2.msra.mxu0 0.0
      %1363 = vmatprep.subr.mxu0 0.0
      %1364 = vmatpush2.msra.mxu0 0.0
      %1365 = vmatprep.subr.mxu0 0.0
      %1366 = vmatpush2.msra.mxu0 0.0
      %1367 = vmatprep.subr.mxu0 0.0
      %1368 = vmatpush2.msra.mxu0 0.0
      %1369 = vmatprep.subr.mxu0 0.0
      %1370 = vmatpush2.msra.mxu0 0.0
      %1371 = vmatprep.subr.mxu0 0.0
      %1372 = vmatpush2.msra.mxu0 0.0
      %1373 = vmatprep.subr.mxu0 0.0
      %1374 = vmatpush2.msra.mxu0 0.0
      %1375 = vmatprep.subr.mxu0 0.0
      %1376 = vmatpush2.msra.mxu0 0.0
      %1377 = vmatprep.subr.mxu0 0.0
      %1378 = vmatpush2.msra.mxu0 0.0
      %1379 = vmatprep.subr.mxu0 0.0
      %1380 = vmatpush2.msra.mxu0 0.0
      %1381 = vmatprep.mubr.f32.mxu0 0.0
      %1382 = vmatmul.mubr.f32.gmra.mxu0 %v1245
      %v1383 = vpop.f32.mrf.mxu0
      %v1384 = vadd.f32 0.0, %v1383
      %v1385 = vpop.f32.mrf.mxu0
      %1386 = vdwg.mxu0
      %s1387 = scalar_lea.vmem %s237, 96
      %v1388 = vld [vmem:[%s1387] sm:$0xff]
      %v1389 = vadd.f32 %v1388, %v1314
      %v1390 = vxor.u32 %v1389, 2147483648
      %v1391 = vmul.f32 %v1390, 1.442695
      %v1392 = vpow.pop %v1391
      %v1393 = vadd.f32 %v1392, 1.0
      %v1394 = vrcp.pop %v1393
      %v1395 = vmul.f32 1.0, %v1394
      %s1396 = scalar_lea.vmem %s237, 104
      %v1397 = vld [vmem:[%s1396] sm:$0xff]
      %v1398 = vadd.f32 %v1397, %v1384
      %v1399 = vxor.u32 %v1398, 2147483648
      %v1400 = vmul.f32 %v1399, 1.442695
      %v1401 = vpow.pop %v1400
      %v1402 = vadd.f32 %v1401, 1.0
      %v1403 = vrcp.pop %v1402
      %v1404 = vmul.f32 1.0, %v1403
      %s1405 = scalar_lea.vmem %s237, 112
      %v1406 = vld [vmem:[%s1405] sm:$0xff]
      %1407 = vmatprep.subr.mxu0 0.0
      %1408 = vmatpush1.msra.mxu0 0.0
      %1409 = vmatprep.subr.mxu0 0.0
      %1410 = vmatpush1.msra.mxu0 0.0
      %1411 = vmatprep.subr.mxu0 0.0
      %1412 = vmatpush1.msra.mxu0 0.0
      %1413 = vmatprep.subr.mxu0 0.0
      %1414 = vmatpush1.msra.mxu0 0.0
      %1415 = vmatprep.subr.mxu0 0.0
      %1416 = vmatpush1.msra.mxu0 0.0
      %1417 = vmatprep.subr.mxu0 0.0
      %1418 = vmatpush1.msra.mxu0 0.0
      %1419 = vmatprep.subr.mxu0 0.0
      %1420 = vmatpush1.msra.mxu0 0.0
      %1421 = vmatprep.subr.mxu0 0.0
      %1422 = vmatpush1.msra.mxu0 0.0
      %1423 = vmatprep.subr.mxu0 0.0
      %1424 = vmatpush1.msra.mxu0 0.0
      %1425 = vmatprep.subr.mxu0 0.0
      %1426 = vmatpush1.msra.mxu0 0.0
      %1427 = vmatprep.subr.mxu0 0.0
      %1428 = vmatpush1.msra.mxu0 0.0
      %1429 = vmatprep.subr.mxu0 0.0
      %1430 = vmatpush1.msra.mxu0 0.0
      %1431 = vmatprep.subr.mxu0 0.0
      %1432 = vmatpush1.msra.mxu0 %v272
      %1433 = vmatprep.subr.mxu0 0.0
      %1434 = vmatpush1.msra.mxu0 %v271
      %1435 = vmatprep.subr.mxu0 0.0
      %1436 = vmatpush1.msra.mxu0 %v270
      %1437 = vmatprep.subr.mxu0 0.0
      %1438 = vmatpush1.msra.mxu0 %v269
      %1439 = vmatprep.subr.mxu0 0.0
      %1440 = vmatpush2.msra.mxu0 0.0
      %1441 = vmatprep.subr.mxu0 0.0
      %1442 = vmatpush2.msra.mxu0 0.0
      %1443 = vmatprep.subr.mxu0 0.0
      %1444 = vmatpush2.msra.mxu0 0.0
      %1445 = vmatprep.subr.mxu0 0.0
      %1446 = vmatpush2.msra.mxu0 0.0
      %1447 = vmatprep.subr.mxu0 0.0
      %1448 = vmatpush2.msra.mxu0 0.0
      %1449 = vmatprep.subr.mxu0 0.0
      %1450 = vmatpush2.msra.mxu0 0.0
      %1451 = vmatprep.subr.mxu0 0.0
      %1452 = vmatpush2.msra.mxu0 0.0
      %1453 = vmatprep.subr.mxu0 0.0
      %1454 = vmatpush2.msra.mxu0 0.0
      %1455 = vmatprep.subr.mxu0 0.0
      %1456 = vmatpush2.msra.mxu0 0.0
      %1457 = vmatprep.subr.mxu0 0.0
      %1458 = vmatpush2.msra.mxu0 0.0
      %1459 = vmatprep.subr.mxu0 0.0
      %1460 = vmatpush2.msra.mxu0 0.0
      %1461 = vmatprep.subr.mxu0 0.0
      %1462 = vmatpush2.msra.mxu0 0.0
      %1463 = vmatprep.subr.mxu0 0.0
      %1464 = vmatpush2.msra.mxu0 0.0
      %1465 = vmatprep.subr.mxu0 0.0
      %1466 = vmatpush2.msra.mxu0 0.0
      %1467 = vmatprep.subr.mxu0 0.0
      %1468 = vmatpush2.msra.mxu0 0.0
      %1469 = vmatprep.subr.mxu0 0.0
      %1470 = vmatpush2.msra.mxu0 0.0
      %1471 = vmatprep.mubr.f32.mxu0 0.0
      %1472 = vmatmul.mubr.f32.gmra.mxu0 %v1245
      %v1473 = vpop.f32.mrf.mxu0
      %v1474 = vadd.f32 %v278, %v1473
      %v1475 = vpop.f32.mrf.mxu0
      %1476 = vdwg.mxu0
      %v1477 = vmul.f32 %v1395, %v1474
      %v1478 = vadd.f32 %v1406, %v1477
      %v1479 = vtanh.pop %v1478
      %v1480 = vsub.f32 %v1241, %v1479
      %v1481 = vmul.f32 %v1404, %v1480
      %v1482 = vadd.f32 %v1479, %v1481
      %s1483 = scalar_lea.vmem %s250, 32
      %1484 = vst.msk [vmem:[%s1483] sm:$0xff] %vm281, %v1482
      %v1486 = vsel %vm281, %v1482, 0
      %1488 = vmatprep.subr.mxu0 0.0
      %1489 = vmatpush1.msra.mxu0 0.0
      %1490 = vmatprep.subr.mxu0 0.0
      %1491 = vmatpush1.msra.mxu0 0.0
      %1492 = vmatprep.subr.mxu0 0.0
      %1493 = vmatpush1.msra.mxu0 0.0
      %1494 = vmatprep.subr.mxu0 0.0
      %1495 = vmatpush1.msra.mxu0 0.0
      %1496 = vmatprep.subr.mxu0 0.0
      %1497 = vmatpush1.msra.mxu0 0.0
      %1498 = vmatprep.subr.mxu0 0.0
      %1499 = vmatpush1.msra.mxu0 0.0
      %1500 = vmatprep.subr.mxu0 0.0
      %1501 = vmatpush1.msra.mxu0 0.0
      %1502 = vmatprep.subr.mxu0 0.0
      %1503 = vmatpush1.msra.mxu0 0.0
      %1504 = vmatprep.subr.mxu0 0.0
      %1505 = vmatpush1.msra.mxu0 0.0
      %1506 = vmatprep.subr.mxu0 0.0
      %1507 = vmatpush1.msra.mxu0 0.0
      %1508 = vmatprep.subr.mxu0 0.0
      %1509 = vmatpush1.msra.mxu0 0.0
      %1510 = vmatprep.subr.mxu0 0.0
      %1511 = vmatpush1.msra.mxu0 0.0
      %1512 = vmatprep.subr.mxu0 0.0
      %1513 = vmatpush1.msra.mxu0 %v262
      %1514 = vmatprep.subr.mxu0 0.0
      %1515 = vmatpush1.msra.mxu0 %v261
      %1516 = vmatprep.subr.mxu0 0.0
      %1517 = vmatpush1.msra.mxu0 %v260
      %1518 = vmatprep.subr.mxu0 0.0
      %1519 = vmatpush1.msra.mxu0 %v259
      %1520 = vmatprep.subr.mxu0 0.0
      %1521 = vmatpush2.msra.mxu0 0.0
      %1522 = vmatprep.subr.mxu0 0.0
      %1523 = vmatpush2.msra.mxu0 0.0
      %1524 = vmatprep.subr.mxu0 0.0
      %1525 = vmatpush2.msra.mxu0 0.0
      %1526 = vmatprep.subr.mxu0 0.0
      %1527 = vmatpush2.msra.mxu0 0.0
      %1528 = vmatprep.subr.mxu0 0.0
      %1529 = vmatpush2.msra.mxu0 0.0
      %1530 = vmatprep.subr.mxu0 0.0
      %1531 = vmatpush2.msra.mxu0 0.0
      %1532 = vmatprep.subr.mxu0 0.0
      %1533 = vmatpush2.msra.mxu0 0.0
      %1534 = vmatprep.subr.mxu0 0.0
      %1535 = vmatpush2.msra.mxu0 0.0
      %1536 = vmatprep.subr.mxu0 0.0
      %1537 = vmatpush2.msra.mxu0 0.0
      %1538 = vmatprep.subr.mxu0 0.0
      %1539 = vmatpush2.msra.mxu0 0.0
      %1540 = vmatprep.subr.mxu0 0.0
      %1541 = vmatpush2.msra.mxu0 0.0
      %1542 = vmatprep.subr.mxu0 0.0
      %1543 = vmatpush2.msra.mxu0 0.0
      %1544 = vmatprep.subr.mxu0 0.0
      %1545 = vmatpush2.msra.mxu0 0.0
      %1546 = vmatprep.subr.mxu0 0.0
      %1547 = vmatpush2.msra.mxu0 0.0
      %1548 = vmatprep.subr.mxu0 0.0
      %1549 = vmatpush2.msra.mxu0 0.0
      %1550 = vmatprep.subr.mxu0 0.0
      %1551 = vmatpush2.msra.mxu0 0.0
      %1552 = vmatprep.mubr.f32.mxu0 0.0
      %1553 = vmatmul.mubr.f32.gmra.mxu0 %v1486
      %v1554 = vpop.f32.mrf.mxu0
      %v1555 = vadd.f32 0.0, %v1554
      %v1556 = vpop.f32.mrf.mxu0
      %1557 = vdwg.mxu0
      %1558 = vmatprep.subr.mxu0 0.0
      %1559 = vmatpush1.msra.mxu0 0.0
      %1560 = vmatprep.subr.mxu0 0.0
      %1561 = vmatpush1.msra.mxu0 0.0
      %1562 = vmatprep.subr.mxu0 0.0
      %1563 = vmatpush1.msra.mxu0 0.0
      %1564 = vmatprep.subr.mxu0 0.0
      %1565 = vmatpush1.msra.mxu0 0.0
      %1566 = vmatprep.subr.mxu0 0.0
      %1567 = vmatpush1.msra.mxu0 0.0
      %1568 = vmatprep.subr.mxu0 0.0
      %1569 = vmatpush1.msra.mxu0 0.0
      %1570 = vmatprep.subr.mxu0 0.0
      %1571 = vmatpush1.msra.mxu0 0.0
      %1572 = vmatprep.subr.mxu0 0.0
      %1573 = vmatpush1.msra.mxu0 0.0
      %1574 = vmatprep.subr.mxu0 0.0
      %1575 = vmatpush1.msra.mxu0 0.0
      %1576 = vmatprep.subr.mxu0 0.0
      %1577 = vmatpush1.msra.mxu0 0.0
      %1578 = vmatprep.subr.mxu0 0.0
      %1579 = vmatpush1.msra.mxu0 0.0
      %1580 = vmatprep.subr.mxu0 0.0
      %1581 = vmatpush1.msra.mxu0 0.0
      %1582 = vmatprep.subr.mxu0 0.0
      %1583 = vmatpush1.msra.mxu0 %v267
      %1584 = vmatprep.subr.mxu0 0.0
      %1585 = vmatpush1.msra.mxu0 %v266
      %1586 = vmatprep.subr.mxu0 0.0
      %1587 = vmatpush1.msra.mxu0 %v265
      %1588 = vmatprep.subr.mxu0 0.0
      %1589 = vmatpush1.msra.mxu0 %v264
      %1590 = vmatprep.subr.mxu0 0.0
      %1591 = vmatpush2.msra.mxu0 0.0
      %1592 = vmatprep.subr.mxu0 0.0
      %1593 = vmatpush2.msra.mxu0 0.0
      %1594 = vmatprep.subr.mxu0 0.0
      %1595 = vmatpush2.msra.mxu0 0.0
      %1596 = vmatprep.subr.mxu0 0.0
      %1597 = vmatpush2.msra.mxu0 0.0
      %1598 = vmatprep.subr.mxu0 0.0
      %1599 = vmatpush2.msra.mxu0 0.0
      %1600 = vmatprep.subr.mxu0 0.0
      %1601 = vmatpush2.msra.mxu0 0.0
      %1602 = vmatprep.subr.mxu0 0.0
      %1603 = vmatpush2.msra.mxu0 0.0
      %1604 = vmatprep.subr.mxu0 0.0
      %1605 = vmatpush2.msra.mxu0 0.0
      %1606 = vmatprep.subr.mxu0 0.0
      %1607 = vmatpush2.msra.mxu0 0.0
      %1608 = vmatprep.subr.mxu0 0.0
      %1609 = vmatpush2.msra.mxu0 0.0
      %1610 = vmatprep.subr.mxu0 0.0
      %1611 = vmatpush2.msra.mxu0 0.0
      %1612 = vmatprep.subr.mxu0 0.0
      %1613 = vmatpush2.msra.mxu0 0.0
      %1614 = vmatprep.subr.mxu0 0.0
      %1615 = vmatpush2.msra.mxu0 0.0
      %1616 = vmatprep.subr.mxu0 0.0
      %1617 = vmatpush2.msra.mxu0 0.0
      %1618 = vmatprep.subr.mxu0 0.0
      %1619 = vmatpush2.msra.mxu0 0.0
      %1620 = vmatprep.subr.mxu0 0.0
      %1621 = vmatpush2.msra.mxu0 0.0
      %1622 = vmatprep.mubr.f32.mxu0 0.0
      %1623 = vmatmul.mubr.f32.gmra.mxu0 %v1486
      %v1624 = vpop.f32.mrf.mxu0
      %v1625 = vadd.f32 0.0, %v1624
      %v1626 = vpop.f32.mrf.mxu0
      %1627 = vdwg.mxu0
      %s1628 = scalar_lea.vmem %s237, 120
      %v1629 = vld [vmem:[%s1628] sm:$0xff]
      %v1630 = vadd.f32 %v1629, %v1555
      %v1631 = vxor.u32 %v1630, 2147483648
      %v1632 = vmul.f32 %v1631, 1.442695
      %v1633 = vpow.pop %v1632
      %v1634 = vadd.f32 %v1633, 1.0
      %v1635 = vrcp.pop %v1634
      %v1636 = vmul.f32 1.0, %v1635
      %s1637 = scalar_lea.vmem %s237, 128
      %v1638 = vld [vmem:[%s1637] sm:$0xff]
      %v1639 = vadd.f32 %v1638, %v1625
      %v1640 = vxor.u32 %v1639, 2147483648
      %v1641 = vmul.f32 %v1640, 1.442695
      %v1642 = vpow.pop %v1641
      %v1643 = vadd.f32 %v1642, 1.0
      %v1644 = vrcp.pop %v1643
      %v1645 = vmul.f32 1.0, %v1644
      %s1646 = scalar_lea.vmem %s237, 136
      %v1647 = vld [vmem:[%s1646] sm:$0xff]
      %1648 = vmatprep.subr.mxu0 0.0
      %1649 = vmatpush1.msra.mxu0 0.0
      %1650 = vmatprep.subr.mxu0 0.0
      %1651 = vmatpush1.msra.mxu0 0.0
      %1652 = vmatprep.subr.mxu0 0.0
      %1653 = vmatpush1.msra.mxu0 0.0
      %1654 = vmatprep.subr.mxu0 0.0
      %1655 = vmatpush1.msra.mxu0 0.0
      %1656 = vmatprep.subr.mxu0 0.0
      %1657 = vmatpush1.msra.mxu0 0.0
      %1658 = vmatprep.subr.mxu0 0.0
      %1659 = vmatpush1.msra.mxu0 0.0
      %1660 = vmatprep.subr.mxu0 0.0
      %1661 = vmatpush1.msra.mxu0 0.0
      %1662 = vmatprep.subr.mxu0 0.0
      %1663 = vmatpush1.msra.mxu0 0.0
      %1664 = vmatprep.subr.mxu0 0.0
      %1665 = vmatpush1.msra.mxu0 0.0
      %1666 = vmatprep.subr.mxu0 0.0
      %1667 = vmatpush1.msra.mxu0 0.0
      %1668 = vmatprep.subr.mxu0 0.0
      %1669 = vmatpush1.msra.mxu0 0.0
      %1670 = vmatprep.subr.mxu0 0.0
      %1671 = vmatpush1.msra.mxu0 0.0
      %1672 = vmatprep.subr.mxu0 0.0
      %1673 = vmatpush1.msra.mxu0 %v272
      %1674 = vmatprep.subr.mxu0 0.0
      %1675 = vmatpush1.msra.mxu0 %v271
      %1676 = vmatprep.subr.mxu0 0.0
      %1677 = vmatpush1.msra.mxu0 %v270
      %1678 = vmatprep.subr.mxu0 0.0
      %1679 = vmatpush1.msra.mxu0 %v269
      %1680 = vmatprep.subr.mxu0 0.0
      %1681 = vmatpush2.msra.mxu0 0.0
      %1682 = vmatprep.subr.mxu0 0.0
      %1683 = vmatpush2.msra.mxu0 0.0
      %1684 = vmatprep.subr.mxu0 0.0
      %1685 = vmatpush2.msra.mxu0 0.0
      %1686 = vmatprep.subr.mxu0 0.0
      %1687 = vmatpush2.msra.mxu0 0.0
      %1688 = vmatprep.subr.mxu0 0.0
      %1689 = vmatpush2.msra.mxu0 0.0
      %1690 = vmatprep.subr.mxu0 0.0
      %1691 = vmatpush2.msra.mxu0 0.0
      %1692 = vmatprep.subr.mxu0 0.0
      %1693 = vmatpush2.msra.mxu0 0.0
      %1694 = vmatprep.subr.mxu0 0.0
      %1695 = vmatpush2.msra.mxu0 0.0
      %1696 = vmatprep.subr.mxu0 0.0
      %1697 = vmatpush2.msra.mxu0 0.0
      %1698 = vmatprep.subr.mxu0 0.0
      %1699 = vmatpush2.msra.mxu0 0.0
      %1700 = vmatprep.subr.mxu0 0.0
      %1701 = vmatpush2.msra.mxu0 0.0
      %1702 = vmatprep.subr.mxu0 0.0
      %1703 = vmatpush2.msra.mxu0 0.0
      %1704 = vmatprep.subr.mxu0 0.0
      %1705 = vmatpush2.msra.mxu0 0.0
      %1706 = vmatprep.subr.mxu0 0.0
      %1707 = vmatpush2.msra.mxu0 0.0
      %1708 = vmatprep.subr.mxu0 0.0
      %1709 = vmatpush2.msra.mxu0 0.0
      %1710 = vmatprep.subr.mxu0 0.0
      %1711 = vmatpush2.msra.mxu0 0.0
      %1712 = vmatprep.mubr.f32.mxu0 0.0
      %1713 = vmatmul.mubr.f32.gmra.mxu0 %v1486
      %v1714 = vpop.f32.mrf.mxu0
      %v1715 = vadd.f32 %v278, %v1714
      %v1716 = vpop.f32.mrf.mxu0
      %1717 = vdwg.mxu0
      %v1718 = vmul.f32 %v1636, %v1715
      %v1719 = vadd.f32 %v1647, %v1718
      %v1720 = vtanh.pop %v1719
      %v1721 = vsub.f32 %v1482, %v1720
      %v1722 = vmul.f32 %v1645, %v1721
      %v1723 = vadd.f32 %v1720, %v1722
      %s1724 = scalar_lea.vmem %s250, 40
      %1725 = vst.msk [vmem:[%s1724] sm:$0xff] %vm281, %v1723
      %v1727 = vsel %vm281, %v1723, 0
      %1729 = vmatprep.subr.mxu0 0.0
      %1730 = vmatpush1.msra.mxu0 0.0
      %1731 = vmatprep.subr.mxu0 0.0
      %1732 = vmatpush1.msra.mxu0 0.0
      %1733 = vmatprep.subr.mxu0 0.0
      %1734 = vmatpush1.msra.mxu0 0.0
      %1735 = vmatprep.subr.mxu0 0.0
      %1736 = vmatpush1.msra.mxu0 0.0
      %1737 = vmatprep.subr.mxu0 0.0
      %1738 = vmatpush1.msra.mxu0 0.0
      %1739 = vmatprep.subr.mxu0 0.0
      %1740 = vmatpush1.msra.mxu0 0.0
      %1741 = vmatprep.subr.mxu0 0.0
      %1742 = vmatpush1.msra.mxu0 0.0
      %1743 = vmatprep.subr.mxu0 0.0
      %1744 = vmatpush1.msra.mxu0 0.0
      %1745 = vmatprep.subr.mxu0 0.0
      %1746 = vmatpush1.msra.mxu0 0.0
      %1747 = vmatprep.subr.mxu0 0.0
      %1748 = vmatpush1.msra.mxu0 0.0
      %1749 = vmatprep.subr.mxu0 0.0
      %1750 = vmatpush1.msra.mxu0 0.0
      %1751 = vmatprep.subr.mxu0 0.0
      %1752 = vmatpush1.msra.mxu0 0.0
      %1753 = vmatprep.subr.mxu0 0.0
      %1754 = vmatpush1.msra.mxu0 %v262
      %1755 = vmatprep.subr.mxu0 0.0
      %1756 = vmatpush1.msra.mxu0 %v261
      %1757 = vmatprep.subr.mxu0 0.0
      %1758 = vmatpush1.msra.mxu0 %v260
      %1759 = vmatprep.subr.mxu0 0.0
      %1760 = vmatpush1.msra.mxu0 %v259
      %1761 = vmatprep.subr.mxu0 0.0
      %1762 = vmatpush2.msra.mxu0 0.0
      %1763 = vmatprep.subr.mxu0 0.0
      %1764 = vmatpush2.msra.mxu0 0.0
      %1765 = vmatprep.subr.mxu0 0.0
      %1766 = vmatpush2.msra.mxu0 0.0
      %1767 = vmatprep.subr.mxu0 0.0
      %1768 = vmatpush2.msra.mxu0 0.0
      %1769 = vmatprep.subr.mxu0 0.0
      %1770 = vmatpush2.msra.mxu0 0.0
      %1771 = vmatprep.subr.mxu0 0.0
      %1772 = vmatpush2.msra.mxu0 0.0
      %1773 = vmatprep.subr.mxu0 0.0
      %1774 = vmatpush2.msra.mxu0 0.0
      %1775 = vmatprep.subr.mxu0 0.0
      %1776 = vmatpush2.msra.mxu0 0.0
      %1777 = vmatprep.subr.mxu0 0.0
      %1778 = vmatpush2.msra.mxu0 0.0
      %1779 = vmatprep.subr.mxu0 0.0
      %1780 = vmatpush2.msra.mxu0 0.0
      %1781 = vmatprep.subr.mxu0 0.0
      %1782 = vmatpush2.msra.mxu0 0.0
      %1783 = vmatprep.subr.mxu0 0.0
      %1784 = vmatpush2.msra.mxu0 0.0
      %1785 = vmatprep.subr.mxu0 0.0
      %1786 = vmatpush2.msra.mxu0 0.0
      %1787 = vmatprep.subr.mxu0 0.0
      %1788 = vmatpush2.msra.mxu0 0.0
      %1789 = vmatprep.subr.mxu0 0.0
      %1790 = vmatpush2.msra.mxu0 0.0
      %1791 = vmatprep.subr.mxu0 0.0
      %1792 = vmatpush2.msra.mxu0 0.0
      %1793 = vmatprep.mubr.f32.mxu0 0.0
      %1794 = vmatmul.mubr.f32.gmra.mxu0 %v1727
      %v1795 = vpop.f32.mrf.mxu0
      %v1796 = vadd.f32 0.0, %v1795
      %v1797 = vpop.f32.mrf.mxu0
      %1798 = vdwg.mxu0
      %1799 = vmatprep.subr.mxu0 0.0
      %1800 = vmatpush1.msra.mxu0 0.0
      %1801 = vmatprep.subr.mxu0 0.0
      %1802 = vmatpush1.msra.mxu0 0.0
      %1803 = vmatprep.subr.mxu0 0.0
      %1804 = vmatpush1.msra.mxu0 0.0
      %1805 = vmatprep.subr.mxu0 0.0
      %1806 = vmatpush1.msra.mxu0 0.0
      %1807 = vmatprep.subr.mxu0 0.0
      %1808 = vmatpush1.msra.mxu0 0.0
      %1809 = vmatprep.subr.mxu0 0.0
      %1810 = vmatpush1.msra.mxu0 0.0
      %1811 = vmatprep.subr.mxu0 0.0
      %1812 = vmatpush1.msra.mxu0 0.0
      %1813 = vmatprep.subr.mxu0 0.0
      %1814 = vmatpush1.msra.mxu0 0.0
      %1815 = vmatprep.subr.mxu0 0.0
      %1816 = vmatpush1.msra.mxu0 0.0
      %1817 = vmatprep.subr.mxu0 0.0
      %1818 = vmatpush1.msra.mxu0 0.0
      %1819 = vmatprep.subr.mxu0 0.0
      %1820 = vmatpush1.msra.mxu0 0.0
      %1821 = vmatprep.subr.mxu0 0.0
      %1822 = vmatpush1.msra.mxu0 0.0
      %1823 = vmatprep.subr.mxu0 0.0
      %1824 = vmatpush1.msra.mxu0 %v267
      %1825 = vmatprep.subr.mxu0 0.0
      %1826 = vmatpush1.msra.mxu0 %v266
      %1827 = vmatprep.subr.mxu0 0.0
      %1828 = vmatpush1.msra.mxu0 %v265
      %1829 = vmatprep.subr.mxu0 0.0
      %1830 = vmatpush1.msra.mxu0 %v264
      %1831 = vmatprep.subr.mxu0 0.0
      %1832 = vmatpush2.msra.mxu0 0.0
      %1833 = vmatprep.subr.mxu0 0.0
      %1834 = vmatpush2.msra.mxu0 0.0
      %1835 = vmatprep.subr.mxu0 0.0
      %1836 = vmatpush2.msra.mxu0 0.0
      %1837 = vmatprep.subr.mxu0 0.0
      %1838 = vmatpush2.msra.mxu0 0.0
      %1839 = vmatprep.subr.mxu0 0.0
      %1840 = vmatpush2.msra.mxu0 0.0
      %1841 = vmatprep.subr.mxu0 0.0
      %1842 = vmatpush2.msra.mxu0 0.0
      %1843 = vmatprep.subr.mxu0 0.0
      %1844 = vmatpush2.msra.mxu0 0.0
      %1845 = vmatprep.subr.mxu0 0.0
      %1846 = vmatpush2.msra.mxu0 0.0
      %1847 = vmatprep.subr.mxu0 0.0
      %1848 = vmatpush2.msra.mxu0 0.0
      %1849 = vmatprep.subr.mxu0 0.0
      %1850 = vmatpush2.msra.mxu0 0.0
      %1851 = vmatprep.subr.mxu0 0.0
      %1852 = vmatpush2.msra.mxu0 0.0
      %1853 = vmatprep.subr.mxu0 0.0
      %1854 = vmatpush2.msra.mxu0 0.0
      %1855 = vmatprep.subr.mxu0 0.0
      %1856 = vmatpush2.msra.mxu0 0.0
      %1857 = vmatprep.subr.mxu0 0.0
      %1858 = vmatpush2.msra.mxu0 0.0
      %1859 = vmatprep.subr.mxu0 0.0
      %1860 = vmatpush2.msra.mxu0 0.0
      %1861 = vmatprep.subr.mxu0 0.0
      %1862 = vmatpush2.msra.mxu0 0.0
      %1863 = vmatprep.mubr.f32.mxu0 0.0
      %1864 = vmatmul.mubr.f32.gmra.mxu0 %v1727
      %v1865 = vpop.f32.mrf.mxu0
      %v1866 = vadd.f32 0.0, %v1865
      %v1867 = vpop.f32.mrf.mxu0
      %1868 = vdwg.mxu0
      %s1869 = scalar_lea.vmem %s237, 144
      %v1870 = vld [vmem:[%s1869] sm:$0xff]
      %v1871 = vadd.f32 %v1870, %v1796
      %v1872 = vxor.u32 %v1871, 2147483648
      %v1873 = vmul.f32 %v1872, 1.442695
      %v1874 = vpow.pop %v1873
      %v1875 = vadd.f32 %v1874, 1.0
      %v1876 = vrcp.pop %v1875
      %v1877 = vmul.f32 1.0, %v1876
      %s1878 = scalar_lea.vmem %s237, 152
      %v1879 = vld [vmem:[%s1878] sm:$0xff]
      %v1880 = vadd.f32 %v1879, %v1866
      %v1881 = vxor.u32 %v1880, 2147483648
      %v1882 = vmul.f32 %v1881, 1.442695
      %v1883 = vpow.pop %v1882
      %v1884 = vadd.f32 %v1883, 1.0
      %v1885 = vrcp.pop %v1884
      %v1886 = vmul.f32 1.0, %v1885
      %s1887 = scalar_lea.vmem %s237, 160
      %v1888 = vld [vmem:[%s1887] sm:$0xff]
      %1889 = vmatprep.subr.mxu0 0.0
      %1890 = vmatpush1.msra.mxu0 0.0
      %1891 = vmatprep.subr.mxu0 0.0
      %1892 = vmatpush1.msra.mxu0 0.0
      %1893 = vmatprep.subr.mxu0 0.0
      %1894 = vmatpush1.msra.mxu0 0.0
      %1895 = vmatprep.subr.mxu0 0.0
      %1896 = vmatpush1.msra.mxu0 0.0
      %1897 = vmatprep.subr.mxu0 0.0
      %1898 = vmatpush1.msra.mxu0 0.0
      %1899 = vmatprep.subr.mxu0 0.0
      %1900 = vmatpush1.msra.mxu0 0.0
      %1901 = vmatprep.subr.mxu0 0.0
      %1902 = vmatpush1.msra.mxu0 0.0
      %1903 = vmatprep.subr.mxu0 0.0
      %1904 = vmatpush1.msra.mxu0 0.0
      %1905 = vmatprep.subr.mxu0 0.0
      %1906 = vmatpush1.msra.mxu0 0.0
      %1907 = vmatprep.subr.mxu0 0.0
      %1908 = vmatpush1.msra.mxu0 0.0
      %1909 = vmatprep.subr.mxu0 0.0
      %1910 = vmatpush1.msra.mxu0 0.0
      %1911 = vmatprep.subr.mxu0 0.0
      %1912 = vmatpush1.msra.mxu0 0.0
      %1913 = vmatprep.subr.mxu0 0.0
      %1914 = vmatpush1.msra.mxu0 %v272
      %1915 = vmatprep.subr.mxu0 0.0
      %1916 = vmatpush1.msra.mxu0 %v271
      %1917 = vmatprep.subr.mxu0 0.0
      %1918 = vmatpush1.msra.mxu0 %v270
      %1919 = vmatprep.subr.mxu0 0.0
      %1920 = vmatpush1.msra.mxu0 %v269
      %1921 = vmatprep.subr.mxu0 0.0
      %1922 = vmatpush2.msra.mxu0 0.0
      %1923 = vmatprep.subr.mxu0 0.0
      %1924 = vmatpush2.msra.mxu0 0.0
      %1925 = vmatprep.subr.mxu0 0.0
      %1926 = vmatpush2.msra.mxu0 0.0
      %1927 = vmatprep.subr.mxu0 0.0
      %1928 = vmatpush2.msra.mxu0 0.0
      %1929 = vmatprep.subr.mxu0 0.0
      %1930 = vmatpush2.msra.mxu0 0.0
      %1931 = vmatprep.subr.mxu0 0.0
      %1932 = vmatpush2.msra.mxu0 0.0
      %1933 = vmatprep.subr.mxu0 0.0
      %1934 = vmatpush2.msra.mxu0 0.0
      %1935 = vmatprep.subr.mxu0 0.0
      %1936 = vmatpush2.msra.mxu0 0.0
      %1937 = vmatprep.subr.mxu0 0.0
      %1938 = vmatpush2.msra.mxu0 0.0
      %1939 = vmatprep.subr.mxu0 0.0
      %1940 = vmatpush2.msra.mxu0 0.0
      %1941 = vmatprep.subr.mxu0 0.0
      %1942 = vmatpush2.msra.mxu0 0.0
      %1943 = vmatprep.subr.mxu0 0.0
      %1944 = vmatpush2.msra.mxu0 0.0
      %1945 = vmatprep.subr.mxu0 0.0
      %1946 = vmatpush2.msra.mxu0 0.0
      %1947 = vmatprep.subr.mxu0 0.0
      %1948 = vmatpush2.msra.mxu0 0.0
      %1949 = vmatprep.subr.mxu0 0.0
      %1950 = vmatpush2.msra.mxu0 0.0
      %1951 = vmatprep.subr.mxu0 0.0
      %1952 = vmatpush2.msra.mxu0 0.0
      %1953 = vmatprep.mubr.f32.mxu0 0.0
      %1954 = vmatmul.mubr.f32.gmra.mxu0 %v1727
      %v1955 = vpop.f32.mrf.mxu0
      %v1956 = vadd.f32 %v278, %v1955
      %v1957 = vpop.f32.mrf.mxu0
      %1958 = vdwg.mxu0
      %v1959 = vmul.f32 %v1877, %v1956
      %v1960 = vadd.f32 %v1888, %v1959
      %v1961 = vtanh.pop %v1960
      %v1962 = vsub.f32 %v1723, %v1961
      %v1963 = vmul.f32 %v1886, %v1962
      %v1964 = vadd.f32 %v1961, %v1963
      %s1965 = scalar_lea.vmem %s250, 48
      %1966 = vst.msk [vmem:[%s1965] sm:$0xff] %vm281, %v1964
      %v1968 = vsel %vm281, %v1964, 0
      %1970 = vmatprep.subr.mxu0 0.0
      %1971 = vmatpush1.msra.mxu0 0.0
      %1972 = vmatprep.subr.mxu0 0.0
      %1973 = vmatpush1.msra.mxu0 0.0
      %1974 = vmatprep.subr.mxu0 0.0
      %1975 = vmatpush1.msra.mxu0 0.0
      %1976 = vmatprep.subr.mxu0 0.0
      %1977 = vmatpush1.msra.mxu0 0.0
      %1978 = vmatprep.subr.mxu0 0.0
      %1979 = vmatpush1.msra.mxu0 0.0
      %1980 = vmatprep.subr.mxu0 0.0
      %1981 = vmatpush1.msra.mxu0 0.0
      %1982 = vmatprep.subr.mxu0 0.0
      %1983 = vmatpush1.msra.mxu0 0.0
      %1984 = vmatprep.subr.mxu0 0.0
      %1985 = vmatpush1.msra.mxu0 0.0
      %1986 = vmatprep.subr.mxu0 0.0
      %1987 = vmatpush1.msra.mxu0 0.0
      %1988 = vmatprep.subr.mxu0 0.0
      %1989 = vmatpush1.msra.mxu0 0.0
      %1990 = vmatprep.subr.mxu0 0.0
      %1991 = vmatpush1.msra.mxu0 0.0
      %1992 = vmatprep.subr.mxu0 0.0
      %1993 = vmatpush1.msra.mxu0 0.0
      %1994 = vmatprep.subr.mxu0 0.0
      %1995 = vmatpush1.msra.mxu0 %v262
      %1996 = vmatprep.subr.mxu0 0.0
      %1997 = vmatpush1.msra.mxu0 %v261
      %1998 = vmatprep.subr.mxu0 0.0
      %1999 = vmatpush1.msra.mxu0 %v260
      %2000 = vmatprep.subr.mxu0 0.0
      %2001 = vmatpush1.msra.mxu0 %v259
      %2002 = vmatprep.subr.mxu0 0.0
      %2003 = vmatpush2.msra.mxu0 0.0
      %2004 = vmatprep.subr.mxu0 0.0
      %2005 = vmatpush2.msra.mxu0 0.0
      %2006 = vmatprep.subr.mxu0 0.0
      %2007 = vmatpush2.msra.mxu0 0.0
      %2008 = vmatprep.subr.mxu0 0.0
      %2009 = vmatpush2.msra.mxu0 0.0
      %2010 = vmatprep.subr.mxu0 0.0
      %2011 = vmatpush2.msra.mxu0 0.0
      %2012 = vmatprep.subr.mxu0 0.0
      %2013 = vmatpush2.msra.mxu0 0.0
      %2014 = vmatprep.subr.mxu0 0.0
      %2015 = vmatpush2.msra.mxu0 0.0
      %2016 = vmatprep.subr.mxu0 0.0
      %2017 = vmatpush2.msra.mxu0 0.0
      %2018 = vmatprep.subr.mxu0 0.0
      %2019 = vmatpush2.msra.mxu0 0.0
      %2020 = vmatprep.subr.mxu0 0.0
      %2021 = vmatpush2.msra.mxu0 0.0
      %2022 = vmatprep.subr.mxu0 0.0
      %2023 = vmatpush2.msra.mxu0 0.0
      %2024 = vmatprep.subr.mxu0 0.0
      %2025 = vmatpush2.msra.mxu0 0.0
      %2026 = vmatprep.subr.mxu0 0.0
      %2027 = vmatpush2.msra.mxu0 0.0
      %2028 = vmatprep.subr.mxu0 0.0
      %2029 = vmatpush2.msra.mxu0 0.0
      %2030 = vmatprep.subr.mxu0 0.0
      %2031 = vmatpush2.msra.mxu0 0.0
      %2032 = vmatprep.subr.mxu0 0.0
      %2033 = vmatpush2.msra.mxu0 0.0
      %2034 = vmatprep.mubr.f32.mxu0 0.0
      %2035 = vmatmul.mubr.f32.gmra.mxu0 %v1968
      %v2036 = vpop.f32.mrf.mxu0
      %v2037 = vadd.f32 0.0, %v2036
      %v2038 = vpop.f32.mrf.mxu0
      %2039 = vdwg.mxu0
      %2040 = vmatprep.subr.mxu0 0.0
      %2041 = vmatpush1.msra.mxu0 0.0
      %2042 = vmatprep.subr.mxu0 0.0
      %2043 = vmatpush1.msra.mxu0 0.0
      %2044 = vmatprep.subr.mxu0 0.0
      %2045 = vmatpush1.msra.mxu0 0.0
      %2046 = vmatprep.subr.mxu0 0.0
      %2047 = vmatpush1.msra.mxu0 0.0
      %2048 = vmatprep.subr.mxu0 0.0
      %2049 = vmatpush1.msra.mxu0 0.0
      %2050 = vmatprep.subr.mxu0 0.0
      %2051 = vmatpush1.msra.mxu0 0.0
      %2052 = vmatprep.subr.mxu0 0.0
      %2053 = vmatpush1.msra.mxu0 0.0
      %2054 = vmatprep.subr.mxu0 0.0
      %2055 = vmatpush1.msra.mxu0 0.0
      %2056 = vmatprep.subr.mxu0 0.0
      %2057 = vmatpush1.msra.mxu0 0.0
      %2058 = vmatprep.subr.mxu0 0.0
      %2059 = vmatpush1.msra.mxu0 0.0
      %2060 = vmatprep.subr.mxu0 0.0
      %2061 = vmatpush1.msra.mxu0 0.0
      %2062 = vmatprep.subr.mxu0 0.0
      %2063 = vmatpush1.msra.mxu0 0.0
      %2064 = vmatprep.subr.mxu0 0.0
      %2065 = vmatpush1.msra.mxu0 %v267
      %2066 = vmatprep.subr.mxu0 0.0
      %2067 = vmatpush1.msra.mxu0 %v266
      %2068 = vmatprep.subr.mxu0 0.0
      %2069 = vmatpush1.msra.mxu0 %v265
      %2070 = vmatprep.subr.mxu0 0.0
      %2071 = vmatpush1.msra.mxu0 %v264
      %2072 = vmatprep.subr.mxu0 0.0
      %2073 = vmatpush2.msra.mxu0 0.0
      %2074 = vmatprep.subr.mxu0 0.0
      %2075 = vmatpush2.msra.mxu0 0.0
      %2076 = vmatprep.subr.mxu0 0.0
      %2077 = vmatpush2.msra.mxu0 0.0
      %2078 = vmatprep.subr.mxu0 0.0
      %2079 = vmatpush2.msra.mxu0 0.0
      %2080 = vmatprep.subr.mxu0 0.0
      %2081 = vmatpush2.msra.mxu0 0.0
      %2082 = vmatprep.subr.mxu0 0.0
      %2083 = vmatpush2.msra.mxu0 0.0
      %2084 = vmatprep.subr.mxu0 0.0
      %2085 = vmatpush2.msra.mxu0 0.0
      %2086 = vmatprep.subr.mxu0 0.0
      %2087 = vmatpush2.msra.mxu0 0.0
      %2088 = vmatprep.subr.mxu0 0.0
      %2089 = vmatpush2.msra.mxu0 0.0
      %2090 = vmatprep.subr.mxu0 0.0
      %2091 = vmatpush2.msra.mxu0 0.0
      %2092 = vmatprep.subr.mxu0 0.0
      %2093 = vmatpush2.msra.mxu0 0.0
      %2094 = vmatprep.subr.mxu0 0.0
      %2095 = vmatpush2.msra.mxu0 0.0
      %2096 = vmatprep.subr.mxu0 0.0
      %2097 = vmatpush2.msra.mxu0 0.0
      %2098 = vmatprep.subr.mxu0 0.0
      %2099 = vmatpush2.msra.mxu0 0.0
      %2100 = vmatprep.subr.mxu0 0.0
      %2101 = vmatpush2.msra.mxu0 0.0
      %2102 = vmatprep.subr.mxu0 0.0
      %2103 = vmatpush2.msra.mxu0 0.0
      %2104 = vmatprep.mubr.f32.mxu0 0.0
      %2105 = vmatmul.mubr.f32.gmra.mxu0 %v1968
      %v2106 = vpop.f32.mrf.mxu0
      %v2107 = vadd.f32 0.0, %v2106
      %v2108 = vpop.f32.mrf.mxu0
      %2109 = vdwg.mxu0
      %s2110 = scalar_lea.vmem %s237, 168
      %v2111 = vld [vmem:[%s2110] sm:$0xff]
      %v2112 = vadd.f32 %v2111, %v2037
      %v2113 = vxor.u32 %v2112, 2147483648
      %v2114 = vmul.f32 %v2113, 1.442695
      %v2115 = vpow.pop %v2114
      %v2116 = vadd.f32 %v2115, 1.0
      %v2117 = vrcp.pop %v2116
      %v2118 = vmul.f32 1.0, %v2117
      %s2119 = scalar_lea.vmem %s237, 176
      %v2120 = vld [vmem:[%s2119] sm:$0xff]
      %v2121 = vadd.f32 %v2120, %v2107
      %v2122 = vxor.u32 %v2121, 2147483648
      %v2123 = vmul.f32 %v2122, 1.442695
      %v2124 = vpow.pop %v2123
      %v2125 = vadd.f32 %v2124, 1.0
      %v2126 = vrcp.pop %v2125
      %v2127 = vmul.f32 1.0, %v2126
      %s2128 = scalar_lea.vmem %s237, 184
      %v2129 = vld [vmem:[%s2128] sm:$0xff]
      %2130 = vmatprep.subr.mxu0 0.0
      %2131 = vmatpush1.msra.mxu0 0.0
      %2132 = vmatprep.subr.mxu0 0.0
      %2133 = vmatpush1.msra.mxu0 0.0
      %2134 = vmatprep.subr.mxu0 0.0
      %2135 = vmatpush1.msra.mxu0 0.0
      %2136 = vmatprep.subr.mxu0 0.0
      %2137 = vmatpush1.msra.mxu0 0.0
      %2138 = vmatprep.subr.mxu0 0.0
      %2139 = vmatpush1.msra.mxu0 0.0
      %2140 = vmatprep.subr.mxu0 0.0
      %2141 = vmatpush1.msra.mxu0 0.0
      %2142 = vmatprep.subr.mxu0 0.0
      %2143 = vmatpush1.msra.mxu0 0.0
      %2144 = vmatprep.subr.mxu0 0.0
      %2145 = vmatpush1.msra.mxu0 0.0
      %2146 = vmatprep.subr.mxu0 0.0
      %2147 = vmatpush1.msra.mxu0 0.0
      %2148 = vmatprep.subr.mxu0 0.0
      %2149 = vmatpush1.msra.mxu0 0.0
      %2150 = vmatprep.subr.mxu0 0.0
      %2151 = vmatpush1.msra.mxu0 0.0
      %2152 = vmatprep.subr.mxu0 0.0
      %2153 = vmatpush1.msra.mxu0 0.0
      %2154 = vmatprep.subr.mxu0 0.0
      %2155 = vmatpush1.msra.mxu0 %v272
      %2156 = vmatprep.subr.mxu0 0.0
      %2157 = vmatpush1.msra.mxu0 %v271
      %2158 = vmatprep.subr.mxu0 0.0
      %2159 = vmatpush1.msra.mxu0 %v270
      %2160 = vmatprep.subr.mxu0 0.0
      %2161 = vmatpush1.msra.mxu0 %v269
      %2162 = vmatprep.subr.mxu0 0.0
      %2163 = vmatpush2.msra.mxu0 0.0
      %2164 = vmatprep.subr.mxu0 0.0
      %2165 = vmatpush2.msra.mxu0 0.0
      %2166 = vmatprep.subr.mxu0 0.0
      %2167 = vmatpush2.msra.mxu0 0.0
      %2168 = vmatprep.subr.mxu0 0.0
      %2169 = vmatpush2.msra.mxu0 0.0
      %2170 = vmatprep.subr.mxu0 0.0
      %2171 = vmatpush2.msra.mxu0 0.0
      %2172 = vmatprep.subr.mxu0 0.0
      %2173 = vmatpush2.msra.mxu0 0.0
      %2174 = vmatprep.subr.mxu0 0.0
      %2175 = vmatpush2.msra.mxu0 0.0
      %2176 = vmatprep.subr.mxu0 0.0
      %2177 = vmatpush2.msra.mxu0 0.0
      %2178 = vmatprep.subr.mxu0 0.0
      %2179 = vmatpush2.msra.mxu0 0.0
      %2180 = vmatprep.subr.mxu0 0.0
      %2181 = vmatpush2.msra.mxu0 0.0
      %2182 = vmatprep.subr.mxu0 0.0
      %2183 = vmatpush2.msra.mxu0 0.0
      %2184 = vmatprep.subr.mxu0 0.0
      %2185 = vmatpush2.msra.mxu0 0.0
      %2186 = vmatprep.subr.mxu0 0.0
      %2187 = vmatpush2.msra.mxu0 0.0
      %2188 = vmatprep.subr.mxu0 0.0
      %2189 = vmatpush2.msra.mxu0 0.0
      %2190 = vmatprep.subr.mxu0 0.0
      %2191 = vmatpush2.msra.mxu0 0.0
      %2192 = vmatprep.subr.mxu0 0.0
      %2193 = vmatpush2.msra.mxu0 0.0
      %2194 = vmatprep.mubr.f32.mxu0 0.0
      %2195 = vmatmul.mubr.f32.gmra.mxu0 %v1968
      %v2196 = vpop.f32.mrf.mxu0
      %v2197 = vadd.f32 %v278, %v2196
      %v2198 = vpop.f32.mrf.mxu0
      %2199 = vdwg.mxu0
      %v2200 = vmul.f32 %v2118, %v2197
      %v2201 = vadd.f32 %v2129, %v2200
      %v2202 = vtanh.pop %v2201
      %v2203 = vsub.f32 %v1964, %v2202
      %v2204 = vmul.f32 %v2127, %v2203
      %v2205 = vadd.f32 %v2202, %v2204
      %s2206 = scalar_lea.vmem %s250, 56
      %2207 = vst.msk [vmem:[%s2206] sm:$0xff] %vm281, %v2205
      %2208 = vst.msk [vmem:[#allocation2] sm:$0xff] %vm281, %v2205
      %s2209 = smul.u32 8, %s20
      %p2210 = scmp.lt.s32.totalorder %s2209, 15
      %s2211 = scalar_select %p2210, %s2209, 15
      %p2212 = scmp.lt.s32.totalorder %s19, 0
      %s2213 = scalar_select %p2212, %s19, 0
      %s2214 = sadd.s32 %s2213, %s2211
      %s2215 = smul.addr %s2214, 8
      %s2216 = scalar_lea.vmem %s4, %s2215
      // Predicated region
      $region41: #{reason_decoder_forward.2} parent=35 // pred_check
        %p2217 = pneg %p143
      $region42: #{reason_decoder_forward.2} parent=35 // pred_check_branch
        %2219 = sbr.rel (%p2217) target = $region44
      $region43: #{reason_decoder_forward.2} parent=35 // pred_region
        %s2220 = smul.u32 8, %s20
      $region44: #{reason_decoder_forward.2} parent=35 // pred_fallthru
        _
    $region36: #{reason_decoder_forward.2} parent=5 // pred_fallthru
      _
    %p2221 = scmp.le.s32.totalorder 2, %s10
    // Predicated region
    $region45: #{reason_decoder_forward.2} parent=5 // pred_check
      %p2222 = pneg %p2221
    $region46: #{reason_decoder_forward.2} parent=5 // pred_check_branch
      %2224 = sbr.rel (%p2222) target = $region48
    $region47: #{reason_decoder_forward.2} parent=5 // pred_region
      %s2225 = ssub.s32 %s10, 2
      // Predicated region
      $region49: #{reason_decoder_forward.2} parent=47 // pred_check
        %p2226 = pneg %p149
      $region50: #{reason_decoder_forward.2} parent=47 // pred_check_branch
        %2228 = sbr.rel (%p2226) target = $region52
      $region51: #{reason_decoder_forward.2} parent=47 // pred_region
        %s2229 = smul.u32 8, %s22
        %p2230 = scmp.lt.s32.totalorder %s2229, 15
        %s2231 = scalar_select %p2230, %s2229, 15
        %p2232 = scmp.lt.s32.totalorder %s21, 0
        %s2233 = scalar_select %p2232, %s21, 0
        %s2234 = sadd.s32 %s2233, %s2231
        %s2235 = smul.addr %s2234, 8
        %s2236 = scalar_lea.vmem %s4, %s2235
      $region52: #{reason_decoder_forward.2} parent=47 // pred_fallthru
        _
    $region48: #{reason_decoder_forward.2} parent=5 // pred_fallthru
      _
  $region6: #{reason_decoder_forward.2} parent=0 // loop_footer
    %s14 = sadd.s32 1, %s10
  $region7: #{reason_decoder_forward.2} parent=0 // loop_footer_branch
    %9 = sbr.rel target = $region3
  $region8: #{reason_decoder_forward.2} parent=0 // loop_exit
    _

// kernel: reason_decoder_forward.3
$region0: #{reason_decoder_forward.3}
  #allocation0 [shape = 'u32[]', space=smem, size = 0x4, offset = 0x4, fixed_abs, tag = 'smem constant byte address 0x4 - core index']
  #allocation1 [shape = 'u32[144,128]{1,0:T(1,128)}', space=vmem, size = 0x12000, scoped, tag = 'internal scratch']
  %s0 = inlined_call_operand.vmem [shape: f32[64,32], index: 0, kind: input, shape index: {}]
  %s1 = inlined_call_operand.vmem [shape: f32[32,128], index: 1, kind: input, shape index: {}]
  %s2 = inlined_call_operand.hbm [shape: f32[64,128], index: 2, kind: output, shape index: {}]
  %s3 = sld [smem:[#allocation0]]
  $region18: #{reason_decoder_forward.3} parent=0
    _
  %s5 = ssub.s32 1, %s3
  %s6 = scalar_select 0, %s5, %s3
  $region1: #{reason_decoder_forward.3} parent=0
    #allocation2 [shape = 'u8[32768]{0}', space=vmem, size = 0x8000, scoped, tag = 'output window, operand 0, single buffered']
    #allocation3 [shape = 's32[1]{0}', space=sflag, size = 0x4, scoped, tag = 'scoped memory for reason_decoder_forward.3']
    %7 = vsyncpa [#allocation3], 0
    // Predicated region
    $region2: #{reason_decoder_forward.3} parent=1 // pred_check
      _
    $region3: #{reason_decoder_forward.3} parent=1 // pred_check_branch
      %9 = sbr.rel (0) target = $region5
    $region4: #{reason_decoder_forward.3} parent=1 // pred_region
      _
    $region5: #{reason_decoder_forward.3} parent=1 // pred_fallthru
      _
    // Predicated region
    $region6: #{reason_decoder_forward.3} parent=1 // pred_check
      _
    $region7: #{reason_decoder_forward.3} parent=1 // pred_check_branch
      %11 = sbr.rel (0) target = $region9
    $region8: #{reason_decoder_forward.3} parent=1 // pred_region
      _
    $region9: #{reason_decoder_forward.3} parent=1 // pred_fallthru
      _
    %v12 = vld [vmem:[%s0] sm:$0xff]
    %v13 = vld [vmem:[%s0 + $0x8] sm:$0xff]
    %v14 = vld [vmem:[%s0 + $0x10] sm:$0xff]
    %v15 = vld [vmem:[%s0 + $0x18] sm:$0xff]
    %v16 = vld [vmem:[%s0 + $0x20] sm:$0xff]
    %v17 = vld [vmem:[%s0 + $0x28] sm:$0xff]
    %v18 = vld [vmem:[%s0 + $0x30] sm:$0xff]
    %v19 = vld [vmem:[%s0 + $0x38] sm:$0xff]
    %v20 = vld [vmem:[%s1] sm:$0xff]
    %v21 = vld [vmem:[%s1 + $0x8] sm:$0xff]
    %v22 = vld [vmem:[%s1 + $0x10] sm:$0xff]
    %v23 = vld [vmem:[%s1 + $0x18] sm:$0xff]
    %vm24 = vcmask 261120
    %v26 = vsel %vm24, %v12, 0
    %v29 = vsel %vm24, %v13, 0
    %v32 = vsel %vm24, %v14, 0
    %v35 = vsel %vm24, %v15, 0
    %v38 = vsel %vm24, %v16, 0
    %v41 = vsel %vm24, %v17, 0
    %v44 = vsel %vm24, %v18, 0
    %v47 = vsel %vm24, %v19, 0
    %49 = vmatprep.subr.mxu0 0.0
    %50 = vmatpush1.msra.mxu0 0.0
    %51 = vmatprep.subr.mxu0 0.0
    %52 = vmatpush1.msra.mxu0 0.0
    %53 = vmatprep.subr.mxu0 0.0
    %54 = vmatpush1.msra.mxu0 0.0
    %55 = vmatprep.subr.mxu0 0.0
    %56 = vmatpush1.msra.mxu0 0.0
    %57 = vmatprep.subr.mxu0 0.0
    %58 = vmatpush1.msra.mxu0 0.0
    %59 = vmatprep.subr.mxu0 0.0
    %60 = vmatpush1.msra.mxu0 0.0
    %61 = vmatprep.subr.mxu0 0.0
    %62 = vmatpush1.msra.mxu0 0.0
    %63 = vmatprep.subr.mxu0 0.0
    %64 = vmatpush1.msra.mxu0 0.0
    %65 = vmatprep.subr.mxu0 0.0
    %66 = vmatpush1.msra.mxu0 0.0
    %67 = vmatprep.subr.mxu0 0.0
    %68 = vmatpush1.msra.mxu0 0.0
    %69 = vmatprep.subr.mxu0 0.0
    %70 = vmatpush1.msra.mxu0 0.0
    %71 = vmatprep.subr.mxu0 0.0
    %72 = vmatpush1.msra.mxu0 0.0
    %73 = vmatprep.subr.mxu0 0.0
    %74 = vmatpush1.msra.mxu0 %v23
    %75 = vmatprep.subr.mxu0 0.0
    %76 = vmatpush1.msra.mxu0 %v22
    %77 = vmatprep.subr.mxu0 0.0
    %78 = vmatpush1.msra.mxu0 %v21
    %79 = vmatprep.subr.mxu0 0.0
    %80 = vmatpush1.msra.mxu0 %v20
    %81 = vmatprep.subr.mxu0 0.0
    %82 = vmatpush2.msra.mxu0 0.0
    %83 = vmatprep.subr.mxu0 0.0
    %84 = vmatpush2.msra.mxu0 0.0
    %85 = vmatprep.subr.mxu0 0.0
    %86 = vmatpush2.msra.mxu0 0.0
    %87 = vmatprep.subr.mxu0 0.0
    %88 = vmatpush2.msra.mxu0 0.0
    %89 = vmatprep.subr.mxu0 0.0
    %90 = vmatpush2.msra.mxu0 0.0
    %91 = vmatprep.subr.mxu0 0.0
    %92 = vmatpush2.msra.mxu0 0.0
    %93 = vmatprep.subr.mxu0 0.0
    %94 = vmatpush2.msra.mxu0 0.0
    %95 = vmatprep.subr.mxu0 0.0
    %96 = vmatpush2.msra.mxu0 0.0
    %97 = vmatprep.subr.mxu0 0.0
    %98 = vmatpush2.msra.mxu0 0.0
    %99 = vmatprep.subr.mxu0 0.0
    %100 = vmatpush2.msra.mxu0 0.0
    %101 = vmatprep.subr.mxu0 0.0
    %102 = vmatpush2.msra.mxu0 0.0
    %103 = vmatprep.subr.mxu0 0.0
    %104 = vmatpush2.msra.mxu0 0.0
    %105 = vmatprep.subr.mxu0 0.0
    %106 = vmatpush2.msra.mxu0 0.0
    %107 = vmatprep.subr.mxu0 0.0
    %108 = vmatpush2.msra.mxu0 0.0
    %109 = vmatprep.subr.mxu0 0.0
    %110 = vmatpush2.msra.mxu0 0.0
    %111 = vmatprep.subr.mxu0 0.0
    %112 = vmatpush2.msra.mxu0 0.0
    %113 = vmatprep.mubr.f32.mxu0 0.0
    %114 = vmatmul.mubr.f32.gmra.mxu0 %v26
    %v115 = vpop.f32.mrf.mxu0
    %v116 = vadd.f32 0.0, %v115
    %v117 = vpop.f32.mrf.mxu0
    %118 = vmatprep.mubr.f32.mxu0 0.0
    %119 = vmatmul.mubr.f32.gmra.mxu0 %v29
    %v120 = vpop.f32.mrf.mxu0
    %v121 = vadd.f32 0.0, %v120
    %v122 = vpop.f32.mrf.mxu0
    %123 = vmatprep.mubr.f32.mxu0 0.0
    %124 = vmatmul.mubr.f32.gmra.mxu0 %v32
    %v125 = vpop.f32.mrf.mxu0
    %v126 = vadd.f32 0.0, %v125
    %v127 = vpop.f32.mrf.mxu0
    %128 = vmatprep.mubr.f32.mxu0 0.0
    %129 = vmatmul.mubr.f32.gmra.mxu0 %v35
    %v130 = vpop.f32.mrf.mxu0
    %v131 = vadd.f32 0.0, %v130
    %v132 = vpop.f32.mrf.mxu0
    %133 = vmatprep.mubr.f32.mxu0 0.0
    %134 = vmatmul.mubr.f32.gmra.mxu0 %v38
    %v135 = vpop.f32.mrf.mxu0
    %v136 = vadd.f32 0.0, %v135
    %v137 = vpop.f32.mrf.mxu0
    %138 = vmatprep.mubr.f32.mxu0 0.0
    %139 = vmatmul.mubr.f32.gmra.mxu0 %v41
    %v140 = vpop.f32.mrf.mxu0
    %v141 = vadd.f32 0.0, %v140
    %v142 = vpop.f32.mrf.mxu0
    %143 = vmatprep.mubr.f32.mxu0 0.0
    %144 = vmatmul.mubr.f32.gmra.mxu0 %v44
    %v145 = vpop.f32.mrf.mxu0
    %v146 = vadd.f32 0.0, %v145
    %v147 = vpop.f32.mrf.mxu0
    %148 = vmatprep.mubr.f32.mxu0 0.0
    %149 = vmatmul.mubr.f32.gmra.mxu0 %v47
    %v150 = vpop.f32.mrf.mxu0
    %v151 = vadd.f32 0.0, %v150
    %v152 = vpop.f32.mrf.mxu0
    %153 = vdwg.mxu0
    %154 = vst [vmem:[#allocation2] sm:$0xff] %v116
    %155 = vst [vmem:[#allocation2 + $0x8] sm:$0xff] %v121
    %156 = vst [vmem:[#allocation2 + $0x10] sm:$0xff] %v126
    %157 = vst [vmem:[#allocation2 + $0x18] sm:$0xff] %v131
    %158 = vst [vmem:[#allocation2 + $0x20] sm:$0xff] %v136
    %159 = vst [vmem:[#allocation2 + $0x28] sm:$0xff] %v141
    %160 = vst [vmem:[#allocation2 + $0x30] sm:$0xff] %v146
    %161 = vst [vmem:[#allocation2 + $0x38] sm:$0xff] %v151
    // Predicated region
    $region10: #{reason_decoder_forward.3} parent=1 // pred_check
      _
    $region11: #{reason_decoder_forward.3} parent=1 // pred_check_branch
      %163 = sbr.rel (0) target = $region13
    $region12: #{reason_decoder_forward.3} parent=1 // pred_region
      %s165 = ssub.s32 1024, 1024
      %166 = vsyncadd [#allocation3], %s165
      %s167 = sshll.u32 [#allocation2], 4
      %s168 = int_to_ptr.vmem [resolvable:$true] %s167
      %173 = dma.vmem_to_hbm [thread:$0]  %s168, 1024, %s2, [#allocation3], 128, 128, 8
    $region13: #{reason_decoder_forward.3} parent=1 // pred_fallthru
      _
    // Predicated region
    $region14: #{reason_decoder_forward.3} parent=1 // pred_check
      _
    $region15: #{reason_decoder_forward.3} parent=1 // pred_check_branch
      %175 = sbr.rel (0) target = $region17
    $region16: #{reason_decoder_forward.3} parent=1 // pred_region
      %176 = dma.done [#allocation3], 1024
    $region17: #{reason_decoder_forward.3} parent=1 // pred_fallthru
      _
    %177 = vsyncpa [#allocation3], 1

</llo_original>
